<compile_context>
chip_gen: v7x
topology: tpu7x:2x2x1
jax: 0.10.0
libtpu: 0.0.40
codegen_flags: <defaults>
</compile_context>

<pallas_src>
import math
import jax
import jax.numpy as jnp
from jax import lax
from jax.experimental import pallas as pl
from jax.experimental.pallas import tpu as pltpu

HEAD_PAD = 128  # lane-dense head output width; real logits live in cols [0:3]


# ----------------------------- helpers -------------------------------------- #

def _layer_norm(x, g, b, eps=1e-12):
    mu = jnp.mean(x, axis=-1, keepdims=True)
    var = jnp.mean((x - mu) ** 2, axis=-1, keepdims=True)
    return (x - mu) * lax.rsqrt(var + eps) * g + b


def _ffn_chunk_size(f):
    """Largest lane-aligned chunk (<=512) that divides F."""
    if f <= 512:
        return f
    for fc in (512, 384, 256, 128):
        if f % fc == 0:
            return fc
    return f


# ----------------------------- kernel -------------------------------------- #

def encoder_heads_kernel(emb_ref, bias_ref,
                         wq_ref, wk_ref, wv_ref, wo_ref,
                         w1_ref, w2_ref,
                         lne_g_ref, lne_b_ref,
                         ln1_g_ref, ln1_b_ref,
                         ln2_g_ref, ln2_b_ref,
                         wh_ref, bh_ref,
                         out_ref):
    # Processes TB batch rows per grid step.
    #   emb:  (TB, L, H) bf16 token+position embeddings
    #   bias: (TB, 1, L) f32 additive attention mask (-1e4 on padding keys)
    #   out:  (TB, 128)  f32 fused head logits (cols 0..2 used)
    TB, L, H = emb_ref.shape
    F = w1_ref.shape[1]
    bf = jnp.bfloat16

    x = emb_ref[...].astype(jnp.float32)          # (TB, L, H)
    bias = bias_ref[...]                          # (TB, 1, L)

    # embedding layernorm (f32 stats; gamma/beta broadcast once per step)
    x = _layer_norm(x, lne_g_ref[...], lne_b_ref[...])

    # --- single-head self-attention (bf16 MXU operands, f32 accumulation) ---
    x2 = x.reshape(TB * L, H).astype(bf)
    # 1/sqrt(H) is pre-folded into wq in the wrapper; q/k/v go bf16 at the dot
    # output so no f32 (TB, L, H) copies stay live.
    q = jnp.dot(x2, wq_ref[...],
                preferred_element_type=jnp.float32).astype(bf).reshape(TB, L, H)
    k = jnp.dot(x2, wk_ref[...],
                preferred_element_type=jnp.float32).astype(bf).reshape(TB, L, H)
    v = jnp.dot(x2, wv_ref[...],
                preferred_element_type=jnp.float32).astype(bf).reshape(TB, L, H)

    # batched q @ k^T via contraction of the last dims (no explicit transpose)
    scores = jnp.einsum('bqd,bkd->bqk', q, k,
                        preferred_element_type=jnp.float32)    # (TB, L, L)
    scores = scores + bias
    scores = scores - jnp.max(scores, axis=-1, keepdims=True)
    p = jnp.exp(scores)
    p = (p * pl.reciprocal(jnp.sum(p, axis=-1, keepdims=True),
                           approx=True)).astype(bf)
    # TODO(synk): for L >= 1024 tile the key dimension (flash-style online
    # softmax) so the (TB, L, L) scores temp stays inside v7x's 64 MiB VMEM.

    attn = jnp.einsum('bqk,bkd->bqd', p, v,
                      preferred_element_type=jnp.float32).astype(bf)
    attn = jnp.dot(attn.reshape(TB * L, H), wo_ref[...],
                   preferred_element_type=jnp.float32).reshape(TB, L, H)
    x = _layer_norm(x + attn, ln1_g_ref[...], ln1_b_ref[...])

    # --- feed-forward, chunked over F (only a (TB*L, FC) temp is ever live) ---
    x2 = x.reshape(TB * L, H).astype(bf)
    FC = _ffn_chunk_size(F)
    n_chunks = F // FC

    def ffn_body(c, acc):
        f0 = pl.multiple_of(c * FC, FC)
        h = jnp.dot(x2, w1_ref[:, pl.ds(f0, FC)],
                    preferred_element_type=jnp.float32)         # (TB*L, FC)
        # TODO(synk): PyTorch nn.GELU defaults to exact erf; tanh approx used here.
        h = jax.nn.gelu(h, approximate=True).astype(bf)
        return acc + jnp.dot(h, w2_ref[pl.ds(f0, FC), :],
                             preferred_element_type=jnp.float32)

    ffn = lax.fori_loop(0, n_chunks, ffn_body,
                        jnp.zeros((TB * L, H), jnp.float32), unroll=True)
    x = _layer_norm(x + ffn.reshape(TB, L, H), ln2_g_ref[...], ln2_b_ref[...])

    # --- fused Reranker heads on the CLS token ---
    # cols of wh: [binary_0, binary_1, qa, 0-pad ...] -> lane-dense 128-wide store
    cls = x[:, 0, :].astype(bf)                                  # (TB, H)
    out_ref[...] = (jnp.dot(cls, wh_ref[...],
                            preferred_element_type=jnp.float32)
                    + bh_ref[...])


# ----------------------------- wrapper -------------------------------------- #

def run_encoder_heads(emb, mask_bias, params, tb=8):
    """emb: (B, L, H) bf16, mask_bias: (B, 1, L) f32 -> head logits (B, HEAD_PAD)."""
    B, L, H = emb.shape
    F = params["w1"].shape[1]
    FC = _ffn_chunk_size(F)

    # Grid must be >= 2 so the "parallel" batch axis can shard across both
    # TensorCores on v7x; tb stays a multiple of 8 for unmasked (8,128) stores.
    grid_n = max(2, -(-B // tb))
    b_pad = grid_n * tb
    if b_pad != B:
        emb = jnp.pad(emb, ((0, b_pad - B), (0, 0), (0, 0)))
        mask_bias = jnp.pad(mask_bias, ((0, b_pad - B), (0, 0), (0, 0)))

    bf = jnp.bfloat16
    inv_sqrt_h = 1.0 / math.sqrt(float(H))
    wq = (params["wq"] * inv_sqrt_h).astype(bf)      # fold attention scale into wq
    wk, wv, wo = (params[n].astype(bf) for n in ("wk", "wv", "wo"))
    w1, w2 = params["w1"].astype(bf), params["w2"].astype(bf)
    wh = params["w_heads"].astype(bf)                # (H, HEAD_PAD)
    bh = params["b_heads"]                           # (1, HEAD_PAD) f32
    # TODO(synk): on v7x, optionally cast w1/w2 (and wq..wo) to fp8 for the MXU.

    try:
        vmem_cap = int(pltpu.get_tpu_info().vmem_capacity_bytes)
    except Exception:
        vmem_cap = 64 << 20                          # conservative (v7x per-TC)

    def vmem_estimate(weight_buffers):
        # Resident bf16 weights (single- or double-buffered) + f32 LN params.
        weight_bytes = weight_buffers * (
            2 * (4 * H * H + 2 * H * F + H * HEAD_PAD) + 6 * H * 4 + HEAD_PAD * 4)
        # Double-buffered per-step streams: emb (bf16), mask (f32), logits (f32).
        stream_bytes = 2 * (tb * L * H * 2 + tb * L * 4 + tb * HEAD_PAD * 4)
        # In-kernel temporaries (x f32, x2/q/k/v/attn bf16, scores f32 + p bf16,
        # FFN chunk f32+bf16, FFN f32 accumulator), generous upper bound.
        temp_bytes = tb * L * (22 * H + 6 * L + 6 * FC)
        return weight_bytes + stream_bytes + temp_bytes + (2 << 20)

    def call(single_buffer_weights):
        kw = {"pipeline_mode": pl.Buffered(1)} if single_buffer_weights else {}
        nbuf = 1 if single_buffer_weights else 2
        vmem_limit = min(vmem_estimate(nbuf), max(vmem_cap - (4 << 20), 8 << 20))
        vmem_limit = int(max(vmem_limit, 16 << 20))

        hh_spec = pl.BlockSpec((H, H), lambda b: (0, 0), **kw)
        row_spec = pl.BlockSpec((1, H), lambda b: (0, 0), **kw)

        return pl.pallas_call(
            encoder_heads_kernel,
            out_shape=jax.ShapeDtypeStruct((b_pad, HEAD_PAD), jnp.float32),
            grid=(b_pad // tb,),
            in_specs=[
                pl.BlockSpec((tb, L, H), lambda b: (b, 0, 0)),        # embeddings
                pl.BlockSpec((tb, 1, L), lambda b: (b, 0, 0)),        # mask bias
                hh_spec, hh_spec, hh_spec, hh_spec,                   # wq wk wv wo
                pl.BlockSpec((H, F), lambda b: (0, 0), **kw),         # w1
                pl.BlockSpec((F, H), lambda b: (0, 0), **kw),         # w2
                row_spec, row_spec,                                   # emb LN g/b
                row_spec, row_spec,                                   # attn LN g/b
                row_spec, row_spec,                                   # ffn  LN g/b
                pl.BlockSpec((H, HEAD_PAD), lambda b: (0, 0), **kw),  # head weight
                pl.BlockSpec((1, HEAD_PAD), lambda b: (0, 0), **kw),  # head bias
            ],
            out_specs=pl.BlockSpec((tb, HEAD_PAD), lambda b: (b, 0)),
            compiler_params=pltpu.CompilerParams(
                dimension_semantics=("parallel",),
                vmem_limit_bytes=vmem_limit),
        )(emb, mask_bias,
          wq, wk, wv, wo, w1, w2,
          params["lne_g"], params["lne_b"],
          params["ln1_g"], params["ln1_b"],
          params["ln2_g"], params["ln2_b"],
          wh, bh)

    try:
        out = call(True)
    except Exception:
        # Fallback if this JAX build rejects pl.Buffered(1) on constant-index specs.
        out = call(False)

    return out[:B]                                    # (B, HEAD_PAD)


def reranker_forward(input_ids, attention_mask, params):
    """Semantics of Reranker.forward:
       returns (binary_logits (N,M,2), relevance_logits (N,M), None)."""
    N, M, L = input_ids.shape
    B = N * M
    ids = input_ids.reshape(B, L)
    mask = attention_mask.reshape(B, L)

    # --- encoder embeddings (glue: gathers stay in XLA) ---
    # Tables cast to bf16 once (small) so the full (B, L, H) activation never
    # needs a separate f32->bf16 cast pass through HBM.
    word_emb = params["word_emb"].astype(jnp.bfloat16)
    pos_emb = params["pos_emb"].astype(jnp.bfloat16)
    emb = word_emb[ids] + pos_emb[None, :L, :]                       # (B, L, H) bf16
    mask_bias = ((1.0 - mask.astype(jnp.float32)) * -10000.0).reshape(B, 1, L)

    # --- fused encoder + CLS heads (single Pallas kernel) ---
    logits = run_encoder_heads(emb, mask_bias, params)               # (B, 128)

    binary_logits = logits[:, 0:2].reshape(N, M, 2)
    relevance_logits = logits[:, 2].reshape(N, M)
    return binary_logits, relevance_logits, None


# ----------------------------- parameters ----------------------------------- #

def make_params(key, vocab, max_len, hidden):
    ks = jax.random.split(key, 12)
    H, F = hidden, 4 * hidden
    std = 0.02  # init_weights: Linear/Embedding ~ N(0, 0.02), biases 0, LN (1, 0)
    p = {
        "word_emb": std * jax.random.normal(ks[0], (vocab, H), jnp.float32),
        "pos_emb":  std * jax.random.normal(ks[1], (max_len, H), jnp.float32),
        "wq": std * jax.random.normal(ks[2], (H, H), jnp.float32),
        "wk": std * jax.random.normal(ks[3], (H, H), jnp.float32),
        "wv": std * jax.random.normal(ks[4], (H, H), jnp.float32),
        "wo": std * jax.random.normal(ks[5], (H, H), jnp.float32),
        "w1": std * jax.random.normal(ks[6], (H, F), jnp.float32),
        "w2": std * jax.random.normal(ks[7], (F, H), jnp.float32),
        "lne_g": jnp.ones((1, H), jnp.float32), "lne_b": jnp.zeros((1, H), jnp.float32),
        "ln1_g": jnp.ones((1, H), jnp.float32), "ln1_b": jnp.zeros((1, H), jnp.float32),
        "ln2_g": jnp.ones((1, H), jnp.float32), "ln2_b": jnp.zeros((1, H), jnp.float32),
    }
    # Reranker heads: binary = Linear(H, 2), qa_classifier = Linear(H, 1);
    # PyTorch Linear is x @ W.T so columns of the fused weight are
    # [binary_0, binary_1, qa], zero-padded to HEAD_PAD lanes.
    w_binary = std * jax.random.normal(ks[8], (2, H), jnp.float32)   # (out, in)
    w_qa = std * jax.random.normal(ks[9], (1, H), jnp.float32)
    w_heads = jnp.concatenate([w_binary, w_qa], axis=0).T            # (H, 3)
    p["w_heads"] = jnp.pad(w_heads, ((0, 0), (0, HEAD_PAD - 3)))     # (H, 128)
    p["b_heads"] = jnp.zeros((1, HEAD_PAD), jnp.float32)             # zero biases
    return p


# ------------------------------- main ---------------------------------------- #

if __name__ == "__main__":
    N, M, L, H, VOCAB = 2, 3, 8, 32, 64

    key = jax.random.PRNGKey(0)
    k_ids, k_params = jax.random.split(key)

    input_ids = jax.random.randint(k_ids, (N, M, L), 0, VOCAB, dtype=jnp.int32)
    attention_mask = jnp.ones((N, M, L), jnp.int32)

    params = make_params(k_params, VOCAB, L, H)

    binary_logits, relevance_logits, _ = reranker_forward(
        input_ids, attention_mask, params)
    jax.block_until_ready((binary_logits, relevance_logits))

    assert binary_logits.shape == (N, M, 2)
    assert relevance_logits.shape == (N, M)
    assert bool(jnp.all(jnp.isfinite(binary_logits)))
    assert bool(jnp.all(jnp.isfinite(relevance_logits)))
    print("KERNEL_OK")
</pallas_src>

<mosaic_0001>
module attributes {stable_mosaic.version = 11 : i64} {
  func.func @encoder_heads_kernel(%arg0: i32, %arg1: memref<8x8x32xbf16, #tpu.memory_space<vmem>>, %arg2: memref<8x1x8xf32, #tpu.memory_space<vmem>>, %arg3: memref<32x32xbf16, #tpu.memory_space<vmem>>, %arg4: memref<32x32xbf16, #tpu.memory_space<vmem>>, %arg5: memref<32x32xbf16, #tpu.memory_space<vmem>>, %arg6: memref<32x32xbf16, #tpu.memory_space<vmem>>, %arg7: memref<32x128xbf16, #tpu.memory_space<vmem>>, %arg8: memref<128x32xbf16, #tpu.memory_space<vmem>>, %arg9: memref<1x32xf32, #tpu.memory_space<vmem>>, %arg10: memref<1x32xf32, #tpu.memory_space<vmem>>, %arg11: memref<1x32xf32, #tpu.memory_space<vmem>>, %arg12: memref<1x32xf32, #tpu.memory_space<vmem>>, %arg13: memref<1x32xf32, #tpu.memory_space<vmem>>, %arg14: memref<1x32xf32, #tpu.memory_space<vmem>>, %arg15: memref<32x128xbf16, #tpu.memory_space<vmem>>, %arg16: memref<1x128xf32, #tpu.memory_space<vmem>>, %arg17: memref<8x128xf32, #tpu.memory_space<vmem>>) attributes {dimension_semantics = [#tpu.dimension_semantics<parallel>], iteration_bounds = array<i64: 2>, scalar_prefetch = 0 : i64, scratch_operands = 0 : i64, tpu.core_type = #tpu.core_type<tc>, window_params = [{transform_indices = @transform_0, window_bounds = array<i64: 8, 8, 32>}, {transform_indices = @transform_1, window_bounds = array<i64: 8, 1, 8>}, {pipeline_mode = #tpu.pipeline_mode<synchronous>, transform_indices = @transform_2, window_bounds = array<i64: 32, 32>}, {pipeline_mode = #tpu.pipeline_mode<synchronous>, transform_indices = @transform_3, window_bounds = array<i64: 32, 32>}, {pipeline_mode = #tpu.pipeline_mode<synchronous>, transform_indices = @transform_4, window_bounds = array<i64: 32, 32>}, {pipeline_mode = #tpu.pipeline_mode<synchronous>, transform_indices = @transform_5, window_bounds = array<i64: 32, 32>}, {pipeline_mode = #tpu.pipeline_mode<synchronous>, transform_indices = @transform_6, window_bounds = array<i64: 32, 128>}, {pipeline_mode = #tpu.pipeline_mode<synchronous>, transform_indices = @transform_7, window_bounds = array<i64: 128, 32>}, {pipeline_mode = #tpu.pipeline_mode<synchronous>, transform_indices = @transform_8, window_bounds = array<i64: 1, 32>}, {pipeline_mode = #tpu.pipeline_mode<synchronous>, transform_indices = @transform_9, window_bounds = array<i64: 1, 32>}, {pipeline_mode = #tpu.pipeline_mode<synchronous>, transform_indices = @transform_10, window_bounds = array<i64: 1, 32>}, {pipeline_mode = #tpu.pipeline_mode<synchronous>, transform_indices = @transform_11, window_bounds = array<i64: 1, 32>}, {pipeline_mode = #tpu.pipeline_mode<synchronous>, transform_indices = @transform_12, window_bounds = array<i64: 1, 32>}, {pipeline_mode = #tpu.pipeline_mode<synchronous>, transform_indices = @transform_13, window_bounds = array<i64: 1, 32>}, {pipeline_mode = #tpu.pipeline_mode<synchronous>, transform_indices = @transform_14, window_bounds = array<i64: 32, 128>}, {pipeline_mode = #tpu.pipeline_mode<synchronous>, transform_indices = @transform_15, window_bounds = array<i64: 1, 128>}, {transform_indices = @transform_16, window_bounds = array<i64: 8, 128>}]} {
    %c0 = arith.constant 0 : index
    %c0_0 = arith.constant 0 : index
    %c0_1 = arith.constant 0 : index
    %0 = vector.load %arg1[%c0, %c0_0, %c0_1] : memref<8x8x32xbf16, #tpu.memory_space<vmem>>, vector<8x8x32xbf16>
    %1 = arith.extf %0 : vector<8x8x32xbf16> to vector<8x8x32xf32>
    %c0_2 = arith.constant 0 : index
    %c0_3 = arith.constant 0 : index
    %c0_4 = arith.constant 0 : index
    %2 = vector.load %arg2[%c0_2, %c0_3, %c0_4] : memref<8x1x8xf32, #tpu.memory_space<vmem>>, vector<8x1x8xf32>
    %c0_5 = arith.constant 0 : index
    %c0_6 = arith.constant 0 : index
    %3 = vector.load %arg9[%c0_5, %c0_6] : memref<1x32xf32, #tpu.memory_space<vmem>>, vector<1x32xf32>
    %c0_7 = arith.constant 0 : index
    %c0_8 = arith.constant 0 : index
    %4 = vector.load %arg10[%c0_7, %c0_8] : memref<1x32xf32, #tpu.memory_space<vmem>>, vector<1x32xf32>
    %cst = arith.constant dense<0.000000e+00> : vector<8x8xf32>
    %5 = vector.multi_reduction <add>, %1, %cst [2] : vector<8x8x32xf32> to vector<8x8xf32>
    %6 = vector.shape_cast %5 : vector<8x8xf32> to vector<8x8x1xf32>
    %cst_9 = arith.constant 3.200000e+01 : f32
    %7 = vector.broadcast %cst_9 : f32 to vector<8x8x1xf32>
    %8 = arith.divf %6, %7 : vector<8x8x1xf32>
    %9 = vector.broadcast %8 : vector<8x8x1xf32> to vector<8x8x32xf32>
    %10 = arith.subf %1, %9 : vector<8x8x32xf32>
    %11 = arith.mulf %10, %10 : vector<8x8x32xf32>
    %cst_10 = arith.constant dense<0.000000e+00> : vector<8x8xf32>
    %12 = vector.multi_reduction <add>, %11, %cst_10 [2] : vector<8x8x32xf32> to vector<8x8xf32>
    %13 = vector.shape_cast %12 : vector<8x8xf32> to vector<8x8x1xf32>
    %cst_11 = arith.constant 3.200000e+01 : f32
    %14 = vector.broadcast %cst_11 : f32 to vector<8x8x1xf32>
    %15 = arith.divf %13, %14 : vector<8x8x1xf32>
    %16 = vector.broadcast %8 : vector<8x8x1xf32> to vector<8x8x32xf32>
    %17 = arith.subf %1, %16 : vector<8x8x32xf32>
    %cst_12 = arith.constant 9.99999996E-13 : f32
    %18 = vector.broadcast %cst_12 : f32 to vector<8x8x1xf32>
    %19 = arith.addf %15, %18 : vector<8x8x1xf32>
    %20 = math.rsqrt %19 : vector<8x8x1xf32>
    %21 = vector.broadcast %20 : vector<8x8x1xf32> to vector<8x8x32xf32>
    %22 = arith.mulf %17, %21 : vector<8x8x32xf32>
    %23 = vector.shape_cast %3 : vector<1x32xf32> to vector<1x1x32xf32>
    %24 = vector.broadcast %23 : vector<1x1x32xf32> to vector<8x8x32xf32>
    %25 = arith.mulf %22, %24 : vector<8x8x32xf32>
    %26 = vector.shape_cast %4 : vector<1x32xf32> to vector<1x1x32xf32>
    %27 = vector.broadcast %26 : vector<1x1x32xf32> to vector<8x8x32xf32>
    %28 = arith.addf %25, %27 : vector<8x8x32xf32>
    %29 = vector.shape_cast %28 : vector<8x8x32xf32> to vector<64x32xf32>
    %30 = arith.truncf %29 : vector<64x32xf32> to vector<64x32xbf16>
    %c0_13 = arith.constant 0 : index
    %c0_14 = arith.constant 0 : index
    %31 = vector.load %arg3[%c0_13, %c0_14] : memref<32x32xbf16, #tpu.memory_space<vmem>>, vector<32x32xbf16>
    %cst_15 = arith.constant dense<0.000000e+00> : vector<64x32xf32>
    %32 = tpu.matmul %30, %31, %cst_15 {dimension_numbers = #tpu.dot_dimension_numbers<[1], [0], [0], [1], [0, 0, 1, 1], [], []>} : vector<64x32xbf16>, vector<32x32xbf16>, vector<64x32xf32> -> vector<64x32xf32>
    %33 = arith.truncf %32 : vector<64x32xf32> to vector<64x32xbf16>
    %34 = vector.shape_cast %33 : vector<64x32xbf16> to vector<8x8x32xbf16>
    %c0_16 = arith.constant 0 : index
    %c0_17 = arith.constant 0 : index
    %35 = vector.load %arg4[%c0_16, %c0_17] : memref<32x32xbf16, #tpu.memory_space<vmem>>, vector<32x32xbf16>
    %cst_18 = arith.constant dense<0.000000e+00> : vector<64x32xf32>
    %36 = tpu.matmul %30, %35, %cst_18 {dimension_numbers = #tpu.dot_dimension_numbers<[1], [0], [0], [1], [0, 0, 1, 1], [], []>} : vector<64x32xbf16>, vector<32x32xbf16>, vector<64x32xf32> -> vector<64x32xf32>
    %37 = arith.truncf %36 : vector<64x32xf32> to vector<64x32xbf16>
    %38 = vector.shape_cast %37 : vector<64x32xbf16> to vector<8x8x32xbf16>
    %c0_19 = arith.constant 0 : index
    %c0_20 = arith.constant 0 : index
    %39 = vector.load %arg5[%c0_19, %c0_20] : memref<32x32xbf16, #tpu.memory_space<vmem>>, vector<32x32xbf16>
    %cst_21 = arith.constant dense<0.000000e+00> : vector<64x32xf32>
    %40 = tpu.matmul %30, %39, %cst_21 {dimension_numbers = #tpu.dot_dimension_numbers<[1], [0], [0], [1], [0, 0, 1, 1], [], []>} : vector<64x32xbf16>, vector<32x32xbf16>, vector<64x32xf32> -> vector<64x32xf32>
    %41 = arith.truncf %40 : vector<64x32xf32> to vector<64x32xbf16>
    %42 = vector.shape_cast %41 : vector<64x32xbf16> to vector<8x8x32xbf16>
    "tpu.trace_start"() <{level = 10 : i32, message = "bqd,bkd->bqk"}> : () -> ()
    %cst_22 = arith.constant dense<0.000000e+00> : vector<8x8x8xf32>
    %43 = tpu.matmul %34, %38, %cst_22 {dimension_numbers = #tpu.dot_dimension_numbers<[2], [2], [1], [1], [0, 0, 0, 1, 1, 1], [0], [0]>} : vector<8x8x32xbf16>, vector<8x8x32xbf16>, vector<8x8x8xf32> -> vector<8x8x8xf32>
    "tpu.trace_stop"() : () -> ()
    %44 = vector.broadcast %2 : vector<8x1x8xf32> to vector<8x8x8xf32>
    %45 = arith.addf %43, %44 : vector<8x8x8xf32>
    %cst_23 = arith.constant dense<0xFF800000> : vector<8x8xf32>
    %46 = vector.multi_reduction <maximumf>, %45, %cst_23 [2] : vector<8x8x8xf32> to vector<8x8xf32>
    %47 = vector.shape_cast %46 : vector<8x8xf32> to vector<8x8x1xf32>
    %48 = vector.broadcast %47 : vector<8x8x1xf32> to vector<8x8x8xf32>
    %49 = arith.subf %45, %48 : vector<8x8x8xf32>
    %50 = math.exp %49 : vector<8x8x8xf32>
    %cst_24 = arith.constant dense<0.000000e+00> : vector<8x8xf32>
    %51 = vector.multi_reduction <add>, %50, %cst_24 [2] : vector<8x8x8xf32> to vector<8x8xf32>
    %52 = vector.shape_cast %51 : vector<8x8xf32> to vector<8x8x1xf32>
    %53 = tpu.reciprocal %52 {approx = true} : vector<8x8x1xf32> -> vector<8x8x1xf32>
    %54 = vector.broadcast %53 : vector<8x8x1xf32> to vector<8x8x8xf32>
    %55 = arith.mulf %50, %54 : vector<8x8x8xf32>
    %56 = arith.truncf %55 : vector<8x8x8xf32> to vector<8x8x8xbf16>
    "tpu.trace_start"() <{level = 10 : i32, message = "bqk,bkd->bqd"}> : () -> ()
    %cst_25 = arith.constant dense<0.000000e+00> : vector<8x8x32xf32>
    %57 = tpu.matmul %56, %42, %cst_25 {dimension_numbers = #tpu.dot_dimension_numbers<[2], [1], [1], [2], [0, 0, 0, 1, 1, 2], [0], [0]>} : vector<8x8x8xbf16>, vector<8x8x32xbf16>, vector<8x8x32xf32> -> vector<8x8x32xf32>
    "tpu.trace_stop"() : () -> ()
    %58 = arith.truncf %57 : vector<8x8x32xf32> to vector<8x8x32xbf16>
    %59 = vector.shape_cast %58 : vector<8x8x32xbf16> to vector<64x32xbf16>
    %c0_26 = arith.constant 0 : index
    %c0_27 = arith.constant 0 : index
    %60 = vector.load %arg6[%c0_26, %c0_27] : memref<32x32xbf16, #tpu.memory_space<vmem>>, vector<32x32xbf16>
    %cst_28 = arith.constant dense<0.000000e+00> : vector<64x32xf32>
    %61 = tpu.matmul %59, %60, %cst_28 {dimension_numbers = #tpu.dot_dimension_numbers<[1], [0], [0], [1], [0, 0, 1, 1], [], []>} : vector<64x32xbf16>, vector<32x32xbf16>, vector<64x32xf32> -> vector<64x32xf32>
    %62 = vector.shape_cast %61 : vector<64x32xf32> to vector<8x8x32xf32>
    %63 = arith.addf %28, %62 : vector<8x8x32xf32>
    %c0_29 = arith.constant 0 : index
    %c0_30 = arith.constant 0 : index
    %64 = vector.load %arg11[%c0_29, %c0_30] : memref<1x32xf32, #tpu.memory_space<vmem>>, vector<1x32xf32>
    %c0_31 = arith.constant 0 : index
    %c0_32 = arith.constant 0 : index
    %65 = vector.load %arg12[%c0_31, %c0_32] : memref<1x32xf32, #tpu.memory_space<vmem>>, vector<1x32xf32>
    %cst_33 = arith.constant dense<0.000000e+00> : vector<8x8xf32>
    %66 = vector.multi_reduction <add>, %63, %cst_33 [2] : vector<8x8x32xf32> to vector<8x8xf32>
    %67 = vector.shape_cast %66 : vector<8x8xf32> to vector<8x8x1xf32>
    %cst_34 = arith.constant 3.200000e+01 : f32
    %68 = vector.broadcast %cst_34 : f32 to vector<8x8x1xf32>
    %69 = arith.divf %67, %68 : vector<8x8x1xf32>
    %70 = vector.broadcast %69 : vector<8x8x1xf32> to vector<8x8x32xf32>
    %71 = arith.subf %63, %70 : vector<8x8x32xf32>
    %72 = arith.mulf %71, %71 : vector<8x8x32xf32>
    %cst_35 = arith.constant dense<0.000000e+00> : vector<8x8xf32>
    %73 = vector.multi_reduction <add>, %72, %cst_35 [2] : vector<8x8x32xf32> to vector<8x8xf32>
    %74 = vector.shape_cast %73 : vector<8x8xf32> to vector<8x8x1xf32>
    %cst_36 = arith.constant 3.200000e+01 : f32
    %75 = vector.broadcast %cst_36 : f32 to vector<8x8x1xf32>
    %76 = arith.divf %74, %75 : vector<8x8x1xf32>
    %77 = vector.broadcast %69 : vector<8x8x1xf32> to vector<8x8x32xf32>
    %78 = arith.subf %63, %77 : vector<8x8x32xf32>
    %cst_37 = arith.constant 9.99999996E-13 : f32
    %79 = vector.broadcast %cst_37 : f32 to vector<8x8x1xf32>
    %80 = arith.addf %76, %79 : vector<8x8x1xf32>
    %81 = math.rsqrt %80 : vector<8x8x1xf32>
    %82 = vector.broadcast %81 : vector<8x8x1xf32> to vector<8x8x32xf32>
    %83 = arith.mulf %78, %82 : vector<8x8x32xf32>
    %84 = vector.shape_cast %64 : vector<1x32xf32> to vector<1x1x32xf32>
    %85 = vector.broadcast %84 : vector<1x1x32xf32> to vector<8x8x32xf32>
    %86 = arith.mulf %83, %85 : vector<8x8x32xf32>
    %87 = vector.shape_cast %65 : vector<1x32xf32> to vector<1x1x32xf32>
    %88 = vector.broadcast %87 : vector<1x1x32xf32> to vector<8x8x32xf32>
    %89 = arith.addf %86, %88 : vector<8x8x32xf32>
    %90 = vector.shape_cast %89 : vector<8x8x32xf32> to vector<64x32xf32>
    %91 = arith.truncf %90 : vector<64x32xf32> to vector<64x32xbf16>
    %cst_38 = arith.constant 0.000000e+00 : f32
    %92 = vector.broadcast %cst_38 : f32 to vector<64x32xf32>
    %c0_i32 = arith.constant 0 : i32
    %c128_i32 = arith.constant 128 : i32
    %93 = arith.muli %c0_i32, %c128_i32 : i32
    %94 = tpu.assume_multiple %93, 128 : i32
    %c0_39 = arith.constant 0 : index
    %95 = arith.index_cast %94 : i32 to index
    %96 = vector.load %arg7[%c0_39, %95] : memref<32x128xbf16, #tpu.memory_space<vmem>>, vector<32x128xbf16>
    %cst_40 = arith.constant dense<0.000000e+00> : vector<64x128xf32>
    %97 = tpu.matmul %91, %96, %cst_40 {dimension_numbers = #tpu.dot_dimension_numbers<[1], [0], [0], [1], [0, 0, 1, 1], [], []>} : vector<64x32xbf16>, vector<32x128xbf16>, vector<64x128xf32> -> vector<64x128xf32>
    %98 = arith.mulf %97, %97 : vector<64x128xf32>
    %99 = arith.mulf %97, %98 : vector<64x128xf32>
    %cst_41 = arith.constant 4.471500e-02 : f32
    %100 = vector.broadcast %cst_41 : f32 to vector<64x128xf32>
    %101 = arith.mulf %100, %99 : vector<64x128xf32>
    %102 = arith.addf %97, %101 : vector<64x128xf32>
    %cst_42 = arith.constant 0.797884583 : f32
    %103 = vector.broadcast %cst_42 : f32 to vector<64x128xf32>
    %104 = arith.mulf %103, %102 : vector<64x128xf32>
    %105 = math.tanh %104 : vector<64x128xf32>
    %cst_43 = arith.constant 1.000000e+00 : f32
    %106 = vector.broadcast %cst_43 : f32 to vector<64x128xf32>
    %107 = arith.addf %106, %105 : vector<64x128xf32>
    %cst_44 = arith.constant 5.000000e-01 : f32
    %108 = vector.broadcast %cst_44 : f32 to vector<64x128xf32>
    %109 = arith.mulf %108, %107 : vector<64x128xf32>
    %110 = arith.mulf %97, %109 : vector<64x128xf32>
    %111 = arith.truncf %110 : vector<64x128xf32> to vector<64x128xbf16>
    %112 = arith.index_cast %94 : i32 to index
    %c0_45 = arith.constant 0 : index
    %113 = vector.load %arg8[%112, %c0_45] : memref<128x32xbf16, #tpu.memory_space<vmem>>, vector<128x32xbf16>
    %cst_46 = arith.constant dense<0.000000e+00> : vector<64x32xf32>
    %114 = tpu.matmul %111, %113, %cst_46 {dimension_numbers = #tpu.dot_dimension_numbers<[1], [0], [0], [1], [0, 0, 1, 1], [], []>} : vector<64x128xbf16>, vector<128x32xbf16>, vector<64x32xf32> -> vector<64x32xf32>
    %115 = arith.addf %92, %114 : vector<64x32xf32>
    %c1_i32 = arith.constant 1 : i32
    %116 = vector.shape_cast %115 : vector<64x32xf32> to vector<8x8x32xf32>
    %117 = arith.addf %89, %116 : vector<8x8x32xf32>
    %c0_47 = arith.constant 0 : index
    %c0_48 = arith.constant 0 : index
    %118 = vector.load %arg13[%c0_47, %c0_48] : memref<1x32xf32, #tpu.memory_space<vmem>>, vector<1x32xf32>
    %c0_49 = arith.constant 0 : index
    %c0_50 = arith.constant 0 : index
    %119 = vector.load %arg14[%c0_49, %c0_50] : memref<1x32xf32, #tpu.memory_space<vmem>>, vector<1x32xf32>
    %cst_51 = arith.constant dense<0.000000e+00> : vector<8x8xf32>
    %120 = vector.multi_reduction <add>, %117, %cst_51 [2] : vector<8x8x32xf32> to vector<8x8xf32>
    %121 = vector.shape_cast %120 : vector<8x8xf32> to vector<8x8x1xf32>
    %cst_52 = arith.constant 3.200000e+01 : f32
    %122 = vector.broadcast %cst_52 : f32 to vector<8x8x1xf32>
    %123 = arith.divf %121, %122 : vector<8x8x1xf32>
    %124 = vector.broadcast %123 : vector<8x8x1xf32> to vector<8x8x32xf32>
    %125 = arith.subf %117, %124 : vector<8x8x32xf32>
    %126 = arith.mulf %125, %125 : vector<8x8x32xf32>
    %cst_53 = arith.constant dense<0.000000e+00> : vector<8x8xf32>
    %127 = vector.multi_reduction <add>, %126, %cst_53 [2] : vector<8x8x32xf32> to vector<8x8xf32>
    %128 = vector.shape_cast %127 : vector<8x8xf32> to vector<8x8x1xf32>
    %cst_54 = arith.constant 3.200000e+01 : f32
    %129 = vector.broadcast %cst_54 : f32 to vector<8x8x1xf32>
    %130 = arith.divf %128, %129 : vector<8x8x1xf32>
    %131 = vector.broadcast %123 : vector<8x8x1xf32> to vector<8x8x32xf32>
    %132 = arith.subf %117, %131 : vector<8x8x32xf32>
    %cst_55 = arith.constant 9.99999996E-13 : f32
    %133 = vector.broadcast %cst_55 : f32 to vector<8x8x1xf32>
    %134 = arith.addf %130, %133 : vector<8x8x1xf32>
    %135 = math.rsqrt %134 : vector<8x8x1xf32>
    %136 = vector.broadcast %135 : vector<8x8x1xf32> to vector<8x8x32xf32>
    %137 = arith.mulf %132, %136 : vector<8x8x32xf32>
    %138 = vector.shape_cast %118 : vector<1x32xf32> to vector<1x1x32xf32>
    %139 = vector.broadcast %138 : vector<1x1x32xf32> to vector<8x8x32xf32>
    %140 = arith.mulf %137, %139 : vector<8x8x32xf32>
    %141 = vector.shape_cast %119 : vector<1x32xf32> to vector<1x1x32xf32>
    %142 = vector.broadcast %141 : vector<1x1x32xf32> to vector<8x8x32xf32>
    %143 = arith.addf %140, %142 : vector<8x8x32xf32>
    %144 = vector.extract_strided_slice %143 {offsets = [0, 0, 0], sizes = [8, 1, 32], strides = [1, 1, 1]} : vector<8x8x32xf32> to vector<8x1x32xf32>
    %145 = vector.shape_cast %144 : vector<8x1x32xf32> to vector<8x32xf32>
    %146 = arith.truncf %145 : vector<8x32xf32> to vector<8x32xbf16>
    %c0_56 = arith.constant 0 : index
    %c0_57 = arith.constant 0 : index
    %147 = vector.load %arg15[%c0_56, %c0_57] : memref<32x128xbf16, #tpu.memory_space<vmem>>, vector<32x128xbf16>
    %cst_58 = arith.constant dense<0.000000e+00> : vector<8x128xf32>
    %148 = tpu.matmul %146, %147, %cst_58 {dimension_numbers = #tpu.dot_dimension_numbers<[1], [0], [0], [1], [0, 0, 1, 1], [], []>} : vector<8x32xbf16>, vector<32x128xbf16>, vector<8x128xf32> -> vector<8x128xf32>
    %c0_59 = arith.constant 0 : index
    %c0_60 = arith.constant 0 : index
    %149 = vector.load %arg16[%c0_59, %c0_60] : memref<1x128xf32, #tpu.memory_space<vmem>>, vector<1x128xf32>
    %150 = vector.broadcast %149 : vector<1x128xf32> to vector<8x128xf32>
    %151 = arith.addf %148, %150 : vector<8x128xf32>
    %c0_61 = arith.constant 0 : index
    %c0_62 = arith.constant 0 : index
    %152 = vector.load %arg17[%c0_61, %c0_62] : memref<8x128xf32, #tpu.memory_space<vmem>>, vector<8x128xf32>
    tpu.vector_store %arg17[%c0_61, %c0_62], %151 {strides = array<i32>} : memref<8x128xf32, #tpu.memory_space<vmem>>, vector<8x128xf32>,
    return
  }
  func.func @transform_0(%arg0: i32) -> (i32, i32, i32) {
    %c0_i32 = arith.constant 0 : i32
    %c0_i32_0 = arith.constant 0 : i32
    %c0_i32_1 = arith.constant 0 : i32
    return %arg0, %c0_i32, %c0_i32_0 : i32, i32, i32
  }
  func.func @transform_1(%arg0: i32) -> (i32, i32, i32) {
    %c0_i32 = arith.constant 0 : i32
    %c0_i32_0 = arith.constant 0 : i32
    %c0_i32_1 = arith.constant 0 : i32
    return %arg0, %c0_i32, %c0_i32_0 : i32, i32, i32
  }
  func.func @transform_2(%arg0: i32) -> (i32, i32) {
    %c0_i32 = arith.constant 0 : i32
    %c0_i32_0 = arith.constant 0 : i32
    %c0_i32_1 = arith.constant 0 : i32
    return %c0_i32, %c0_i32_0 : i32, i32
  }
  func.func @transform_3(%arg0: i32) -> (i32, i32) {
    %c0_i32 = arith.constant 0 : i32
    %c0_i32_0 = arith.constant 0 : i32
    %c0_i32_1 = arith.constant 0 : i32
    return %c0_i32, %c0_i32_0 : i32, i32
  }
  func.func @transform_4(%arg0: i32) -> (i32, i32) {
    %c0_i32 = arith.constant 0 : i32
    %c0_i32_0 = arith.constant 0 : i32
    %c0_i32_1 = arith.constant 0 : i32
    return %c0_i32, %c0_i32_0 : i32, i32
  }
  func.func @transform_5(%arg0: i32) -> (i32, i32) {
    %c0_i32 = arith.constant 0 : i32
    %c0_i32_0 = arith.constant 0 : i32
    %c0_i32_1 = arith.constant 0 : i32
    return %c0_i32, %c0_i32_0 : i32, i32
  }
  func.func @transform_6(%arg0: i32) -> (i32, i32) {
    %c0_i32 = arith.constant 0 : i32
    %c0_i32_0 = arith.constant 0 : i32
    %c0_i32_1 = arith.constant 0 : i32
    return %c0_i32, %c0_i32_0 : i32, i32
  }
  func.func @transform_7(%arg0: i32) -> (i32, i32) {
    %c0_i32 = arith.constant 0 : i32
    %c0_i32_0 = arith.constant 0 : i32
    %c0_i32_1 = arith.constant 0 : i32
    return %c0_i32, %c0_i32_0 : i32, i32
  }
  func.func @transform_8(%arg0: i32) -> (i32, i32) {
    %c0_i32 = arith.constant 0 : i32
    %c0_i32_0 = arith.constant 0 : i32
    %c0_i32_1 = arith.constant 0 : i32
    return %c0_i32, %c0_i32_0 : i32, i32
  }
  func.func @transform_9(%arg0: i32) -> (i32, i32) {
    %c0_i32 = arith.constant 0 : i32
    %c0_i32_0 = arith.constant 0 : i32
    %c0_i32_1 = arith.constant 0 : i32
    return %c0_i32, %c0_i32_0 : i32, i32
  }
  func.func @transform_10(%arg0: i32) -> (i32, i32) {
    %c0_i32 = arith.constant 0 : i32
    %c0_i32_0 = arith.constant 0 : i32
    %c0_i32_1 = arith.constant 0 : i32
    return %c0_i32, %c0_i32_0 : i32, i32
  }
  func.func @transform_11(%arg0: i32) -> (i32, i32) {
    %c0_i32 = arith.constant 0 : i32
    %c0_i32_0 = arith.constant 0 : i32
    %c0_i32_1 = arith.constant 0 : i32
    return %c0_i32, %c0_i32_0 : i32, i32
  }
  func.func @transform_12(%arg0: i32) -> (i32, i32) {
    %c0_i32 = arith.constant 0 : i32
    %c0_i32_0 = arith.constant 0 : i32
    %c0_i32_1 = arith.constant 0 : i32
    return %c0_i32, %c0_i32_0 : i32, i32
  }
  func.func @transform_13(%arg0: i32) -> (i32, i32) {
    %c0_i32 = arith.constant 0 : i32
    %c0_i32_0 = arith.constant 0 : i32
    %c0_i32_1 = arith.constant 0 : i32
    return %c0_i32, %c0_i32_0 : i32, i32
  }
  func.func @transform_14(%arg0: i32) -> (i32, i32) {
    %c0_i32 = arith.constant 0 : i32
    %c0_i32_0 = arith.constant 0 : i32
    %c0_i32_1 = arith.constant 0 : i32
    return %c0_i32, %c0_i32_0 : i32, i32
  }
  func.func @transform_15(%arg0: i32) -> (i32, i32) {
    %c0_i32 = arith.constant 0 : i32
    %c0_i32_0 = arith.constant 0 : i32
    %c0_i32_1 = arith.constant 0 : i32
    return %c0_i32, %c0_i32_0 : i32, i32
  }
  func.func @transform_16(%arg0: i32) -> (i32, i32) {
    %c0_i32 = arith.constant 0 : i32
    %c0_i32_0 = arith.constant 0 : i32
    return %arg0, %c0_i32 : i32, i32
  }
}

module attributes {stable_mosaic.version = 11 : i64} {
  func.func @encoder_heads_kernel(%arg0: i32, %arg1: memref<8x8x32xbf16, #tpu.memory_space<vmem>>, %arg2: memref<8x1x8xf32, #tpu.memory_space<vmem>>, %arg3: memref<32x32xbf16, #tpu.memory_space<vmem>>, %arg4: memref<32x32xbf16, #tpu.memory_space<vmem>>, %arg5: memref<32x32xbf16, #tpu.memory_space<vmem>>, %arg6: memref<32x32xbf16, #tpu.memory_space<vmem>>, %arg7: memref<32x128xbf16, #tpu.memory_space<vmem>>, %arg8: memref<128x32xbf16, #tpu.memory_space<vmem>>, %arg9: memref<1x32xf32, #tpu.memory_space<vmem>>, %arg10: memref<1x32xf32, #tpu.memory_space<vmem>>, %arg11: memref<1x32xf32, #tpu.memory_space<vmem>>, %arg12: memref<1x32xf32, #tpu.memory_space<vmem>>, %arg13: memref<1x32xf32, #tpu.memory_space<vmem>>, %arg14: memref<1x32xf32, #tpu.memory_space<vmem>>, %arg15: memref<32x128xbf16, #tpu.memory_space<vmem>>, %arg16: memref<1x128xf32, #tpu.memory_space<vmem>>, %arg17: memref<8x128xf32, #tpu.memory_space<vmem>>) attributes {dimension_semantics = [#tpu.dimension_semantics<parallel>], iteration_bounds = array<i64: 2>, scalar_prefetch = 0 : i64, scratch_operands = 0 : i64, tpu.core_type = #tpu.core_type<tc>, window_params = [{transform_indices = @transform_0, window_bounds = array<i64: 8, 8, 32>}, {transform_indices = @transform_1, window_bounds = array<i64: 8, 1, 8>}, {pipeline_mode = #tpu.pipeline_mode<synchronous>, transform_indices = @transform_2, window_bounds = array<i64: 32, 32>}, {pipeline_mode = #tpu.pipeline_mode<synchronous>, transform_indices = @transform_3, window_bounds = array<i64: 32, 32>}, {pipeline_mode = #tpu.pipeline_mode<synchronous>, transform_indices = @transform_4, window_bounds = array<i64: 32, 32>}, {pipeline_mode = #tpu.pipeline_mode<synchronous>, transform_indices = @transform_5, window_bounds = array<i64: 32, 32>}, {pipeline_mode = #tpu.pipeline_mode<synchronous>, transform_indices = @transform_6, window_bounds = array<i64: 32, 128>}, {pipeline_mode = #tpu.pipeline_mode<synchronous>, transform_indices = @transform_7, window_bounds = array<i64: 128, 32>}, {pipeline_mode = #tpu.pipeline_mode<synchronous>, transform_indices = @transform_8, window_bounds = array<i64: 1, 32>}, {pipeline_mode = #tpu.pipeline_mode<synchronous>, transform_indices = @transform_9, window_bounds = array<i64: 1, 32>}, {pipeline_mode = #tpu.pipeline_mode<synchronous>, transform_indices = @transform_10, window_bounds = array<i64: 1, 32>}, {pipeline_mode = #tpu.pipeline_mode<synchronous>, transform_indices = @transform_11, window_bounds = array<i64: 1, 32>}, {pipeline_mode = #tpu.pipeline_mode<synchronous>, transform_indices = @transform_12, window_bounds = array<i64: 1, 32>}, {pipeline_mode = #tpu.pipeline_mode<synchronous>, transform_indices = @transform_13, window_bounds = array<i64: 1, 32>}, {pipeline_mode = #tpu.pipeline_mode<synchronous>, transform_indices = @transform_14, window_bounds = array<i64: 32, 128>}, {pipeline_mode = #tpu.pipeline_mode<synchronous>, transform_indices = @transform_15, window_bounds = array<i64: 1, 128>}, {transform_indices = @transform_16, window_bounds = array<i64: 8, 128>}]} {
    %c0 = arith.constant 0 : index
    %c0_0 = arith.constant 0 : index
    %c0_1 = arith.constant 0 : index
    %0 = vector.load %arg1[%c0, %c0_0, %c0_1] : memref<8x8x32xbf16, #tpu.memory_space<vmem>>, vector<8x8x32xbf16>
    %1 = arith.extf %0 : vector<8x8x32xbf16> to vector<8x8x32xf32>
    %c0_2 = arith.constant 0 : index
    %c0_3 = arith.constant 0 : index
    %c0_4 = arith.constant 0 : index
    %2 = vector.load %arg2[%c0_2, %c0_3, %c0_4] : memref<8x1x8xf32, #tpu.memory_space<vmem>>, vector<8x1x8xf32>
    %c0_5 = arith.constant 0 : index
    %c0_6 = arith.constant 0 : index
    %3 = vector.load %arg9[%c0_5, %c0_6] : memref<1x32xf32, #tpu.memory_space<vmem>>, vector<1x32xf32>
    %c0_7 = arith.constant 0 : index
    %c0_8 = arith.constant 0 : index
    %4 = vector.load %arg10[%c0_7, %c0_8] : memref<1x32xf32, #tpu.memory_space<vmem>>, vector<1x32xf32>
    %cst = arith.constant dense<0.000000e+00> : vector<8x8xf32>
    %5 = vector.multi_reduction <add>, %1, %cst [2] : vector<8x8x32xf32> to vector<8x8xf32>
    %6 = vector.shape_cast %5 : vector<8x8xf32> to vector<8x8x1xf32>
    %cst_9 = arith.constant 3.200000e+01 : f32
    %7 = vector.broadcast %cst_9 : f32 to vector<8x8x1xf32>
    %8 = arith.divf %6, %7 : vector<8x8x1xf32>
    %9 = vector.broadcast %8 : vector<8x8x1xf32> to vector<8x8x32xf32>
    %10 = arith.subf %1, %9 : vector<8x8x32xf32>
    %11 = arith.mulf %10, %10 : vector<8x8x32xf32>
    %cst_10 = arith.constant dense<0.000000e+00> : vector<8x8xf32>
    %12 = vector.multi_reduction <add>, %11, %cst_10 [2] : vector<8x8x32xf32> to vector<8x8xf32>
    %13 = vector.shape_cast %12 : vector<8x8xf32> to vector<8x8x1xf32>
    %cst_11 = arith.constant 3.200000e+01 : f32
    %14 = vector.broadcast %cst_11 : f32 to vector<8x8x1xf32>
    %15 = arith.divf %13, %14 : vector<8x8x1xf32>
    %16 = vector.broadcast %8 : vector<8x8x1xf32> to vector<8x8x32xf32>
    %17 = arith.subf %1, %16 : vector<8x8x32xf32>
    %cst_12 = arith.constant 9.99999996E-13 : f32
    %18 = vector.broadcast %cst_12 : f32 to vector<8x8x1xf32>
    %19 = arith.addf %15, %18 : vector<8x8x1xf32>
    %20 = math.rsqrt %19 : vector<8x8x1xf32>
    %21 = vector.broadcast %20 : vector<8x8x1xf32> to vector<8x8x32xf32>
    %22 = arith.mulf %17, %21 : vector<8x8x32xf32>
    %23 = vector.shape_cast %3 : vector<1x32xf32> to vector<1x1x32xf32>
    %24 = vector.broadcast %23 : vector<1x1x32xf32> to vector<8x8x32xf32>
    %25 = arith.mulf %22, %24 : vector<8x8x32xf32>
    %26 = vector.shape_cast %4 : vector<1x32xf32> to vector<1x1x32xf32>
    %27 = vector.broadcast %26 : vector<1x1x32xf32> to vector<8x8x32xf32>
    %28 = arith.addf %25, %27 : vector<8x8x32xf32>
    %29 = vector.shape_cast %28 : vector<8x8x32xf32> to vector<64x32xf32>
    %30 = arith.truncf %29 : vector<64x32xf32> to vector<64x32xbf16>
    %c0_13 = arith.constant 0 : index
    %c0_14 = arith.constant 0 : index
    %31 = vector.load %arg3[%c0_13, %c0_14] : memref<32x32xbf16, #tpu.memory_space<vmem>>, vector<32x32xbf16>
    %cst_15 = arith.constant dense<0.000000e+00> : vector<64x32xf32>
    %32 = tpu.matmul %30, %31, %cst_15 {dimension_numbers = #tpu.dot_dimension_numbers<[1], [0], [0], [1], [0, 0, 1, 1], [], []>} : vector<64x32xbf16>, vector<32x32xbf16>, vector<64x32xf32> -> vector<64x32xf32>
    %33 = arith.truncf %32 : vector<64x32xf32> to vector<64x32xbf16>
    %34 = vector.shape_cast %33 : vector<64x32xbf16> to vector<8x8x32xbf16>
    %c0_16 = arith.constant 0 : index
    %c0_17 = arith.constant 0 : index
    %35 = vector.load %arg4[%c0_16, %c0_17] : memref<32x32xbf16, #tpu.memory_space<vmem>>, vector<32x32xbf16>
    %cst_18 = arith.constant dense<0.000000e+00> : vector<64x32xf32>
    %36 = tpu.matmul %30, %35, %cst_18 {dimension_numbers = #tpu.dot_dimension_numbers<[1], [0], [0], [1], [0, 0, 1, 1], [], []>} : vector<64x32xbf16>, vector<32x32xbf16>, vector<64x32xf32> -> vector<64x32xf32>
    %37 = arith.truncf %36 : vector<64x32xf32> to vector<64x32xbf16>
    %38 = vector.shape_cast %37 : vector<64x32xbf16> to vector<8x8x32xbf16>
    %c0_19 = arith.constant 0 : index
    %c0_20 = arith.constant 0 : index
    %39 = vector.load %arg5[%c0_19, %c0_20] : memref<32x32xbf16, #tpu.memory_space<vmem>>, vector<32x32xbf16>
    %cst_21 = arith.constant dense<0.000000e+00> : vector<64x32xf32>
    %40 = tpu.matmul %30, %39, %cst_21 {dimension_numbers = #tpu.dot_dimension_numbers<[1], [0], [0], [1], [0, 0, 1, 1], [], []>} : vector<64x32xbf16>, vector<32x32xbf16>, vector<64x32xf32> -> vector<64x32xf32>
    %41 = arith.truncf %40 : vector<64x32xf32> to vector<64x32xbf16>
    %42 = vector.shape_cast %41 : vector<64x32xbf16> to vector<8x8x32xbf16>
    "tpu.trace_start"() <{level = 10 : i32, message = "bqd,bkd->bqk"}> : () -> ()
    %cst_22 = arith.constant dense<0.000000e+00> : vector<8x8x8xf32>
    %43 = tpu.matmul %34, %38, %cst_22 {dimension_numbers = #tpu.dot_dimension_numbers<[2], [2], [1], [1], [0, 0, 0, 1, 1, 1], [0], [0]>} : vector<8x8x32xbf16>, vector<8x8x32xbf16>, vector<8x8x8xf32> -> vector<8x8x8xf32>
    "tpu.trace_stop"() : () -> ()
    %44 = vector.broadcast %2 : vector<8x1x8xf32> to vector<8x8x8xf32>
    %45 = arith.addf %43, %44 : vector<8x8x8xf32>
    %cst_23 = arith.constant dense<0xFF800000> : vector<8x8xf32>
    %46 = vector.multi_reduction <maximumf>, %45, %cst_23 [2] : vector<8x8x8xf32> to vector<8x8xf32>
    %47 = vector.shape_cast %46 : vector<8x8xf32> to vector<8x8x1xf32>
    %48 = vector.broadcast %47 : vector<8x8x1xf32> to vector<8x8x8xf32>
    %49 = arith.subf %45, %48 : vector<8x8x8xf32>
    %50 = math.exp %49 : vector<8x8x8xf32>
    %cst_24 = arith.constant dense<0.000000e+00> : vector<8x8xf32>
    %51 = vector.multi_reduction <add>, %50, %cst_24 [2] : vector<8x8x8xf32> to vector<8x8xf32>
    %52 = vector.shape_cast %51 : vector<8x8xf32> to vector<8x8x1xf32>
    %53 = tpu.reciprocal %52 {approx = true} : vector<8x8x1xf32> -> vector<8x8x1xf32>
    %54 = vector.broadcast %53 : vector<8x8x1xf32> to vector<8x8x8xf32>
    %55 = arith.mulf %50, %54 : vector<8x8x8xf32>
    %56 = arith.truncf %55 : vector<8x8x8xf32> to vector<8x8x8xbf16>
    "tpu.trace_start"() <{level = 10 : i32, message = "bqk,bkd->bqd"}> : () -> ()
    %cst_25 = arith.constant dense<0.000000e+00> : vector<8x8x32xf32>
    %57 = tpu.matmul %56, %42, %cst_25 {dimension_numbers = #tpu.dot_dimension_numbers<[2], [1], [1], [2], [0, 0, 0, 1, 1, 2], [0], [0]>} : vector<8x8x8xbf16>, vector<8x8x32xbf16>, vector<8x8x32xf32> -> vector<8x8x32xf32>
    "tpu.trace_stop"() : () -> ()
    %58 = arith.truncf %57 : vector<8x8x32xf32> to vector<8x8x32xbf16>
    %59 = vector.shape_cast %58 : vector<8x8x32xbf16> to vector<64x32xbf16>
    %c0_26 = arith.constant 0 : index
    %c0_27 = arith.constant 0 : index
    %60 = vector.load %arg6[%c0_26, %c0_27] : memref<32x32xbf16, #tpu.memory_space<vmem>>, vector<32x32xbf16>
    %cst_28 = arith.constant dense<0.000000e+00> : vector<64x32xf32>
    %61 = tpu.matmul %59, %60, %cst_28 {dimension_numbers = #tpu.dot_dimension_numbers<[1], [0], [0], [1], [0, 0, 1, 1], [], []>} : vector<64x32xbf16>, vector<32x32xbf16>, vector<64x32xf32> -> vector<64x32xf32>
    %62 = vector.shape_cast %61 : vector<64x32xf32> to vector<8x8x32xf32>
    %63 = arith.addf %28, %62 : vector<8x8x32xf32>
    %c0_29 = arith.constant 0 : index
    %c0_30 = arith.constant 0 : index
    %64 = vector.load %arg11[%c0_29, %c0_30] : memref<1x32xf32, #tpu.memory_space<vmem>>, vector<1x32xf32>
    %c0_31 = arith.constant 0 : index
    %c0_32 = arith.constant 0 : index
    %65 = vector.load %arg12[%c0_31, %c0_32] : memref<1x32xf32, #tpu.memory_space<vmem>>, vector<1x32xf32>
    %cst_33 = arith.constant dense<0.000000e+00> : vector<8x8xf32>
    %66 = vector.multi_reduction <add>, %63, %cst_33 [2] : vector<8x8x32xf32> to vector<8x8xf32>
    %67 = vector.shape_cast %66 : vector<8x8xf32> to vector<8x8x1xf32>
    %cst_34 = arith.constant 3.200000e+01 : f32
    %68 = vector.broadcast %cst_34 : f32 to vector<8x8x1xf32>
    %69 = arith.divf %67, %68 : vector<8x8x1xf32>
    %70 = vector.broadcast %69 : vector<8x8x1xf32> to vector<8x8x32xf32>
    %71 = arith.subf %63, %70 : vector<8x8x32xf32>
    %72 = arith.mulf %71, %71 : vector<8x8x32xf32>
    %cst_35 = arith.constant dense<0.000000e+00> : vector<8x8xf32>
    %73 = vector.multi_reduction <add>, %72, %cst_35 [2] : vector<8x8x32xf32> to vector<8x8xf32>
    %74 = vector.shape_cast %73 : vector<8x8xf32> to vector<8x8x1xf32>
    %cst_36 = arith.constant 3.200000e+01 : f32
    %75 = vector.broadcast %cst_36 : f32 to vector<8x8x1xf32>
    %76 = arith.divf %74, %75 : vector<8x8x1xf32>
    %77 = vector.broadcast %69 : vector<8x8x1xf32> to vector<8x8x32xf32>
    %78 = arith.subf %63, %77 : vector<8x8x32xf32>
    %cst_37 = arith.constant 9.99999996E-13 : f32
    %79 = vector.broadcast %cst_37 : f32 to vector<8x8x1xf32>
    %80 = arith.addf %76, %79 : vector<8x8x1xf32>
    %81 = math.rsqrt %80 : vector<8x8x1xf32>
    %82 = vector.broadcast %81 : vector<8x8x1xf32> to vector<8x8x32xf32>
    %83 = arith.mulf %78, %82 : vector<8x8x32xf32>
    %84 = vector.shape_cast %64 : vector<1x32xf32> to vector<1x1x32xf32>
    %85 = vector.broadcast %84 : vector<1x1x32xf32> to vector<8x8x32xf32>
    %86 = arith.mulf %83, %85 : vector<8x8x32xf32>
    %87 = vector.shape_cast %65 : vector<1x32xf32> to vector<1x1x32xf32>
    %88 = vector.broadcast %87 : vector<1x1x32xf32> to vector<8x8x32xf32>
    %89 = arith.addf %86, %88 : vector<8x8x32xf32>
    %90 = vector.shape_cast %89 : vector<8x8x32xf32> to vector<64x32xf32>
    %91 = arith.truncf %90 : vector<64x32xf32> to vector<64x32xbf16>
    %cst_38 = arith.constant 0.000000e+00 : f32
    %92 = vector.broadcast %cst_38 : f32 to vector<64x32xf32>
    %c0_i32 = arith.constant 0 : i32
    %c128_i32 = arith.constant 128 : i32
    %93 = arith.muli %c0_i32, %c128_i32 : i32
    %94 = tpu.assume_multiple %93, 128 : i32
    %c0_39 = arith.constant 0 : index
    %95 = arith.index_cast %94 : i32 to index
    %96 = vector.load %arg7[%c0_39, %95] : memref<32x128xbf16, #tpu.memory_space<vmem>>, vector<32x128xbf16>
    %cst_40 = arith.constant dense<0.000000e+00> : vector<64x128xf32>
    %97 = tpu.matmul %91, %96, %cst_40 {dimension_numbers = #tpu.dot_dimension_numbers<[1], [0], [0], [1], [0, 0, 1, 1], [], []>} : vector<64x32xbf16>, vector<32x128xbf16>, vector<64x128xf32> -> vector<64x128xf32>
    %98 = arith.mulf %97, %97 : vector<64x128xf32>
    %99 = arith.mulf %97, %98 : vector<64x128xf32>
    %cst_41 = arith.constant 4.471500e-02 : f32
    %100 = vector.broadcast %cst_41 : f32 to vector<64x128xf32>
    %101 = arith.mulf %100, %99 : vector<64x128xf32>
    %102 = arith.addf %97, %101 : vector<64x128xf32>
    %cst_42 = arith.constant 0.797884583 : f32
    %103 = vector.broadcast %cst_42 : f32 to vector<64x128xf32>
    %104 = arith.mulf %103, %102 : vector<64x128xf32>
    %105 = math.tanh %104 : vector<64x128xf32>
    %cst_43 = arith.constant 1.000000e+00 : f32
    %106 = vector.broadcast %cst_43 : f32 to vector<64x128xf32>
    %107 = arith.addf %106, %105 : vector<64x128xf32>
    %cst_44 = arith.constant 5.000000e-01 : f32
    %108 = vector.broadcast %cst_44 : f32 to vector<64x128xf32>
    %109 = arith.mulf %108, %107 : vector<64x128xf32>
    %110 = arith.mulf %97, %109 : vector<64x128xf32>
    %111 = arith.truncf %110 : vector<64x128xf32> to vector<64x128xbf16>
    %112 = arith.index_cast %94 : i32 to index
    %c0_45 = arith.constant 0 : index
    %113 = vector.load %arg8[%112, %c0_45] : memref<128x32xbf16, #tpu.memory_space<vmem>>, vector<128x32xbf16>
    %cst_46 = arith.constant dense<0.000000e+00> : vector<64x32xf32>
    %114 = tpu.matmul %111, %113, %cst_46 {dimension_numbers = #tpu.dot_dimension_numbers<[1], [0], [0], [1], [0, 0, 1, 1], [], []>} : vector<64x128xbf16>, vector<128x32xbf16>, vector<64x32xf32> -> vector<64x32xf32>
    %115 = arith.addf %92, %114 : vector<64x32xf32>
    %c1_i32 = arith.constant 1 : i32
    %116 = vector.shape_cast %115 : vector<64x32xf32> to vector<8x8x32xf32>
    %117 = arith.addf %89, %116 : vector<8x8x32xf32>
    %c0_47 = arith.constant 0 : index
    %c0_48 = arith.constant 0 : index
    %118 = vector.load %arg13[%c0_47, %c0_48] : memref<1x32xf32, #tpu.memory_space<vmem>>, vector<1x32xf32>
    %c0_49 = arith.constant 0 : index
    %c0_50 = arith.constant 0 : index
    %119 = vector.load %arg14[%c0_49, %c0_50] : memref<1x32xf32, #tpu.memory_space<vmem>>, vector<1x32xf32>
    %cst_51 = arith.constant dense<0.000000e+00> : vector<8x8xf32>
    %120 = vector.multi_reduction <add>, %117, %cst_51 [2] : vector<8x8x32xf32> to vector<8x8xf32>
    %121 = vector.shape_cast %120 : vector<8x8xf32> to vector<8x8x1xf32>
    %cst_52 = arith.constant 3.200000e+01 : f32
    %122 = vector.broadcast %cst_52 : f32 to vector<8x8x1xf32>
    %123 = arith.divf %121, %122 : vector<8x8x1xf32>
    %124 = vector.broadcast %123 : vector<8x8x1xf32> to vector<8x8x32xf32>
    %125 = arith.subf %117, %124 : vector<8x8x32xf32>
    %126 = arith.mulf %125, %125 : vector<8x8x32xf32>
    %cst_53 = arith.constant dense<0.000000e+00> : vector<8x8xf32>
    %127 = vector.multi_reduction <add>, %126, %cst_53 [2] : vector<8x8x32xf32> to vector<8x8xf32>
    %128 = vector.shape_cast %127 : vector<8x8xf32> to vector<8x8x1xf32>
    %cst_54 = arith.constant 3.200000e+01 : f32
    %129 = vector.broadcast %cst_54 : f32 to vector<8x8x1xf32>
    %130 = arith.divf %128, %129 : vector<8x8x1xf32>
    %131 = vector.broadcast %123 : vector<8x8x1xf32> to vector<8x8x32xf32>
    %132 = arith.subf %117, %131 : vector<8x8x32xf32>
    %cst_55 = arith.constant 9.99999996E-13 : f32
    %133 = vector.broadcast %cst_55 : f32 to vector<8x8x1xf32>
    %134 = arith.addf %130, %133 : vector<8x8x1xf32>
    %135 = math.rsqrt %134 : vector<8x8x1xf32>
    %136 = vector.broadcast %135 : vector<8x8x1xf32> to vector<8x8x32xf32>
    %137 = arith.mulf %132, %136 : vector<8x8x32xf32>
    %138 = vector.shape_cast %118 : vector<1x32xf32> to vector<1x1x32xf32>
    %139 = vector.broadcast %138 : vector<1x1x32xf32> to vector<8x8x32xf32>
    %140 = arith.mulf %137, %139 : vector<8x8x32xf32>
    %141 = vector.shape_cast %119 : vector<1x32xf32> to vector<1x1x32xf32>
    %142 = vector.broadcast %141 : vector<1x1x32xf32> to vector<8x8x32xf32>
    %143 = arith.addf %140, %142 : vector<8x8x32xf32>
    %144 = vector.extract_strided_slice %143 {offsets = [0, 0, 0], sizes = [8, 1, 32], strides = [1, 1, 1]} : vector<8x8x32xf32> to vector<8x1x32xf32>
    %145 = vector.shape_cast %144 : vector<8x1x32xf32> to vector<8x32xf32>
    %146 = arith.truncf %145 : vector<8x32xf32> to vector<8x32xbf16>
    %c0_56 = arith.constant 0 : index
    %c0_57 = arith.constant 0 : index
    %147 = vector.load %arg15[%c0_56, %c0_57] : memref<32x128xbf16, #tpu.memory_space<vmem>>, vector<32x128xbf16>
    %cst_58 = arith.constant dense<0.000000e+00> : vector<8x128xf32>
    %148 = tpu.matmul %146, %147, %cst_58 {dimension_numbers = #tpu.dot_dimension_numbers<[1], [0], [0], [1], [0, 0, 1, 1], [], []>} : vector<8x32xbf16>, vector<32x128xbf16>, vector<8x128xf32> -> vector<8x128xf32>
    %c0_59 = arith.constant 0 : index
    %c0_60 = arith.constant 0 : index
    %149 = vector.load %arg16[%c0_59, %c0_60] : memref<1x128xf32, #tpu.memory_space<vmem>>, vector<1x128xf32>
    %150 = vector.broadcast %149 : vector<1x128xf32> to vector<8x128xf32>
    %151 = arith.addf %148, %150 : vector<8x128xf32>
    %c0_61 = arith.constant 0 : index
    %c0_62 = arith.constant 0 : index
    %152 = vector.load %arg17[%c0_61, %c0_62] : memref<8x128xf32, #tpu.memory_space<vmem>>, vector<8x128xf32>
    tpu.vector_store %arg17[%c0_61, %c0_62], %151 {strides = array<i32>} : memref<8x128xf32, #tpu.memory_space<vmem>>, vector<8x128xf32>,
    return
  }
  func.func @transform_0(%arg0: i32) -> (i32, i32, i32) {
    %c0_i32 = arith.constant 0 : i32
    %c0_i32_0 = arith.constant 0 : i32
    %c0_i32_1 = arith.constant 0 : i32
    return %arg0, %c0_i32, %c0_i32_0 : i32, i32, i32
  }
  func.func @transform_1(%arg0: i32) -> (i32, i32, i32) {
    %c0_i32 = arith.constant 0 : i32
    %c0_i32_0 = arith.constant 0 : i32
    %c0_i32_1 = arith.constant 0 : i32
    return %arg0, %c0_i32, %c0_i32_0 : i32, i32, i32
  }
  func.func @transform_2(%arg0: i32) -> (i32, i32) {
    %c0_i32 = arith.constant 0 : i32
    %c0_i32_0 = arith.constant 0 : i32
    %c0_i32_1 = arith.constant 0 : i32
    return %c0_i32, %c0_i32_0 : i32, i32
  }
  func.func @transform_3(%arg0: i32) -> (i32, i32) {
    %c0_i32 = arith.constant 0 : i32
    %c0_i32_0 = arith.constant 0 : i32
    %c0_i32_1 = arith.constant 0 : i32
    return %c0_i32, %c0_i32_0 : i32, i32
  }
  func.func @transform_4(%arg0: i32) -> (i32, i32) {
    %c0_i32 = arith.constant 0 : i32
    %c0_i32_0 = arith.constant 0 : i32
    %c0_i32_1 = arith.constant 0 : i32
    return %c0_i32, %c0_i32_0 : i32, i32
  }
  func.func @transform_5(%arg0: i32) -> (i32, i32) {
    %c0_i32 = arith.constant 0 : i32
    %c0_i32_0 = arith.constant 0 : i32
    %c0_i32_1 = arith.constant 0 : i32
    return %c0_i32, %c0_i32_0 : i32, i32
  }
  func.func @transform_6(%arg0: i32) -> (i32, i32) {
    %c0_i32 = arith.constant 0 : i32
    %c0_i32_0 = arith.constant 0 : i32
    %c0_i32_1 = arith.constant 0 : i32
    return %c0_i32, %c0_i32_0 : i32, i32
  }
  func.func @transform_7(%arg0: i32) -> (i32, i32) {
    %c0_i32 = arith.constant 0 : i32
    %c0_i32_0 = arith.constant 0 : i32
    %c0_i32_1 = arith.constant 0 : i32
    return %c0_i32, %c0_i32_0 : i32, i32
  }
  func.func @transform_8(%arg0: i32) -> (i32, i32) {
    %c0_i32 = arith.constant 0 : i32
    %c0_i32_0 = arith.constant 0 : i32
    %c0_i32_1 = arith.constant 0 : i32
    return %c0_i32, %c0_i32_0 : i32, i32
  }
  func.func @transform_9(%arg0: i32) -> (i32, i32) {
    %c0_i32 = arith.constant 0 : i32
    %c0_i32_0 = arith.constant 0 : i32
    %c0_i32_1 = arith.constant 0 : i32
    return %c0_i32, %c0_i32_0 : i32, i32
  }
  func.func @transform_10(%arg0: i32) -> (i32, i32) {
    %c0_i32 = arith.constant 0 : i32
    %c0_i32_0 = arith.constant 0 : i32
    %c0_i32_1 = arith.constant 0 : i32
    return %c0_i32, %c0_i32_0 : i32, i32
  }
  func.func @transform_11(%arg0: i32) -> (i32, i32) {
    %c0_i32 = arith.constant 0 : i32
    %c0_i32_0 = arith.constant 0 : i32
    %c0_i32_1 = arith.constant 0 : i32
    return %c0_i32, %c0_i32_0 : i32, i32
  }
  func.func @transform_12(%arg0: i32) -> (i32, i32) {
    %c0_i32 = arith.constant 0 : i32
    %c0_i32_0 = arith.constant 0 : i32
    %c0_i32_1 = arith.constant 0 : i32
    return %c0_i32, %c0_i32_0 : i32, i32
  }
  func.func @transform_13(%arg0: i32) -> (i32, i32) {
    %c0_i32 = arith.constant 0 : i32
    %c0_i32_0 = arith.constant 0 : i32
    %c0_i32_1 = arith.constant 0 : i32
    return %c0_i32, %c0_i32_0 : i32, i32
  }
  func.func @transform_14(%arg0: i32) -> (i32, i32) {
    %c0_i32 = arith.constant 0 : i32
    %c0_i32_0 = arith.constant 0 : i32
    %c0_i32_1 = arith.constant 0 : i32
    return %c0_i32, %c0_i32_0 : i32, i32
  }
  func.func @transform_15(%arg0: i32) -> (i32, i32) {
    %c0_i32 = arith.constant 0 : i32
    %c0_i32_0 = arith.constant 0 : i32
    %c0_i32_1 = arith.constant 0 : i32
    return %c0_i32, %c0_i32_0 : i32, i32
  }
  func.func @transform_16(%arg0: i32) -> (i32, i32) {
    %c0_i32 = arith.constant 0 : i32
    %c0_i32_0 = arith.constant 0 : i32
    return %arg0, %c0_i32 : i32, i32
  }
}

</mosaic_0001>

<llo_original>
// kernel: tpu_custom_call.1
$region0: #{tpu_custom_call.1}
  #allocation0 [shape = 'u32[]', space=smem, size = 0x4, offset = 0x4, fixed_abs, tag = 'smem constant byte address 0x4 - core index']
  #allocation1 [shape = 'u32[144,128]{1,0:T(1,128)}', space=vmem, size = 0x12000, scoped, tag = 'internal scratch']
  %s0 = inlined_call_operand.vmem [shape: bf16[16,8,32], index: 0, kind: input, shape index: {}]
  %s1 = inlined_call_operand.vmem [shape: f32[16,1,8], index: 1, kind: input, shape index: {}]
  %s2 = inlined_call_operand.vmem [shape: bf16[32,32], index: 2, kind: input, shape index: {}]
  %s3 = inlined_call_operand.vmem [shape: bf16[32,32], index: 3, kind: input, shape index: {}]
  %s4 = inlined_call_operand.hbm [shape: bf16[32,32], index: 4, kind: input, shape index: {}]
  %s5 = inlined_call_operand.hbm [shape: bf16[32,32], index: 5, kind: input, shape index: {}]
  %s6 = inlined_call_operand.hbm [shape: bf16[32,128], index: 6, kind: input, shape index: {}]
  %s7 = inlined_call_operand.vmem [shape: bf16[128,32], index: 7, kind: input, shape index: {}]
  %s8 = inlined_call_operand.vmem [shape: f32[1,32], index: 8, kind: input, shape index: {}]
  %s9 = inlined_call_operand.vmem [shape: f32[1,32], index: 9, kind: input, shape index: {}]
  %s10 = inlined_call_operand.vmem [shape: f32[1,32], index: 10, kind: input, shape index: {}]
  %s11 = inlined_call_operand.vmem [shape: f32[1,32], index: 11, kind: input, shape index: {}]
  %s12 = inlined_call_operand.vmem [shape: f32[1,32], index: 12, kind: input, shape index: {}]
  %s13 = inlined_call_operand.vmem [shape: f32[1,32], index: 13, kind: input, shape index: {}]
  %s14 = inlined_call_operand.vmem [shape: bf16[32,128], index: 14, kind: input, shape index: {}]
  %s15 = inlined_call_operand.vmem [shape: f32[1,128], index: 15, kind: input, shape index: {}]
  %s16 = inlined_call_operand.hbm [shape: f32[16,128], index: 16, kind: output, shape index: {}]
  %s17 = sld [smem:[#allocation0]]
  $region109: #{tpu_custom_call.1} parent=0
    _
  %s19 = ssub.s32 1, %s17
  %s20 = scalar_select 0, %s19, %s17
  $region1: #{tpu_custom_call.1} parent=0
    #allocation2 [shape = 'u8[8192]{0}', space=vmem, size = 0x2000, scoped, tag = 'input window, operand 4, single buffered']
    #allocation3 [shape = 's32[2]{0}', space=sflag, size = 0x8, scoped, tag = 'scoped memory for tpu_custom_call.1']
    #allocation4 [shape = 's32[2]{0}', space=sflag, size = 0x8, scoped, tag = 'scoped memory for tpu_custom_call.1']
    #allocation5 [shape = 'u8[8192]{0}', space=vmem, size = 0x2000, scoped, tag = 'input window, operand 5, single buffered']
    #allocation6 [shape = 's32[1]{0}', space=sflag, size = 0x4, scoped, tag = 'scoped memory for tpu_custom_call.1']
    #allocation7 [shape = 'u8[8192]{0}', space=vmem, size = 0x2000, scoped, tag = 'input window, operand 6, single buffered']
    #allocation8 [shape = 'u8[8192]{0}', space=vmem, size = 0x2000, scoped, tag = 'output window, operand 0']
    %21 = vsyncpa [#allocation3], 0
    %22 = vsyncpa [#allocation6], 0
    %23 = vsyncpa [#allocation4], 0
    %s24 = scalar_lea.sflag [#allocation4], 1
    %25 = vsyncpa %s24, 0
    loop: start=0, step=1, limit=4
    $region2: #{tpu_custom_call.1} parent=1 // loop_pre_header
      _
    $region3: #{tpu_custom_call.1} parent=1 // loop_header
      %s27 = sphi 0, %s31
      %p28 = scmp.ge.s32.totalorder %s27, 4
      %s37 = sphi 0, %s39
      %s40 = sphi 0, %s37
      %s41 = sphi 0, %s40
      %s57 = sphi 0, %s41
      %s63 = sphi 0, %s65
      %s66 = sphi 0, %s63
      %s67 = sphi 0, %s66
      %s83 = sphi 0, %s67
      %s87 = sphi 0, %s87
      %s89 = sphi 0, %s87
      %s90 = sphi 0, %s89
      %s104 = sphi 0, %s90
      %s108 = sphi 0, %s108
      %s110 = sphi 0, %s108
      %s111 = sphi 0, %s110
      %s125 = sphi 0, %s111
      %s129 = sphi 0, %s129
      %s131 = sphi 0, %s129
      %s132 = sphi 0, %s131
      %s146 = sphi 0, %s132
      %s150 = sphi 0, %s150
      %s152 = sphi 0, %s150
      %s153 = sphi 0, %s152
      %s167 = sphi 0, %s153
      %s171 = sphi 0, %s171
      %s173 = sphi 0, %s171
      %s174 = sphi 0, %s173
      %s188 = sphi 0, %s174
      %s192 = sphi 0, %s192
      %s194 = sphi 0, %s192
      %s195 = sphi 0, %s194
      %s209 = sphi 0, %s195
      %s213 = sphi 0, %s213
      %s215 = sphi 0, %s213
      %s216 = sphi 0, %s215
      %s230 = sphi 0, %s216
      %s234 = sphi 0, %s234
      %s236 = sphi 0, %s234
      %s237 = sphi 0, %s236
      %s251 = sphi 0, %s237
      %s255 = sphi 0, %s255
      %s257 = sphi 0, %s255
      %s258 = sphi 0, %s257
      %s272 = sphi 0, %s258
      %s276 = sphi 0, %s276
      %s278 = sphi 0, %s276
      %s279 = sphi 0, %s278
      %s293 = sphi 0, %s279
      %s297 = sphi 0, %s297
      %s299 = sphi 0, %s297
      %s300 = sphi 0, %s299
      %s314 = sphi 0, %s300
      %s318 = sphi 0, %s318
      %s320 = sphi 0, %s318
      %s321 = sphi 0, %s320
      %s335 = sphi 0, %s321
      %s339 = sphi 0, %s339
      %s341 = sphi 0, %s339
      %s342 = sphi 0, %s341
      %s356 = sphi 0, %s342
      %s360 = sphi 0, %s360
      %s362 = sphi 0, %s360
      %s363 = sphi 0, %s362
      %s377 = sphi 0, %s363
      %s383 = sphi 0, %s385
      %s386 = sphi 0, %s383
      %s387 = sphi 0, %s386
      %s403 = sphi 0, %s387
    $region4: #{tpu_custom_call.1} parent=1 // loop_header_branch
      %30 = sbr.rel (%p28) target = $region8
    $region5: #{tpu_custom_call.1} parent=1 // loop_body
      %s32 = ssub.s32 %s27, 1
      %s33 = ssub.s32 %s27, 2
      %s34 = sadd.s32 %s27, 1
      %s35 = ssub.s32 %s27, %s34
      %p36 = scmp.eq.s32.totalorder %s35, 0
      %s38 = sadd.s32 %s37, 1
      %s39 = scalar_select %p36, %s37, %s38
      %p42 = pneg %p36
      %p43 = scmp.eq.s32.totalorder %s27, 1
      %p44 = por %p42, %p43
      %p45 = scmp.ne.s32.totalorder %s37, %s40
      %p46 = scmp.eq.s32.totalorder %s27, 0
      %p47 = por %p45, %p46
      %p48 = scmp.ne.s32.totalorder %s37, %s40
      %p49 = scmp.eq.s32.totalorder %s32, 1
      %p50 = por %p48, %p49
      %p51 = scmp.ne.s32.totalorder %s40, %s41
      %p52 = scmp.eq.s32.totalorder %s32, 0
      %p53 = por %p51, %p52
      %p54 = scmp.ne.s32.totalorder %s40, %s41
      %p55 = scmp.eq.s32.totalorder %s33, 1
      %p56 = por %p54, %p55
      %p58 = scmp.ne.s32.totalorder %s41, %s57
      %p59 = scmp.eq.s32.totalorder %s33, 0
      %p60 = por %p58, %p59
      %s61 = ssub.s32 %s27, %s34
      %p62 = scmp.eq.s32.totalorder %s61, 0
      %s64 = sadd.s32 %s63, 1
      %s65 = scalar_select %p62, %s63, %s64
      %p68 = pneg %p62
      %p69 = scmp.eq.s32.totalorder %s27, 1
      %p70 = por %p68, %p69
      %p71 = scmp.ne.s32.totalorder %s63, %s66
      %p72 = scmp.eq.s32.totalorder %s27, 0
      %p73 = por %p71, %p72
      %p74 = scmp.ne.s32.totalorder %s63, %s66
      %p75 = scmp.eq.s32.totalorder %s32, 1
      %p76 = por %p74, %p75
      %p77 = scmp.ne.s32.totalorder %s66, %s67
      %p78 = scmp.eq.s32.totalorder %s32, 0
      %p79 = por %p77, %p78
      %p80 = scmp.ne.s32.totalorder %s66, %s67
      %p81 = scmp.eq.s32.totalorder %s33, 1
      %p82 = por %p80, %p81
      %p84 = scmp.ne.s32.totalorder %s67, %s83
      %p85 = scmp.eq.s32.totalorder %s33, 0
      %p86 = por %p84, %p85
      %s88 = sadd.s32 %s87, 1
      %p91 = scmp.eq.s32.totalorder %s27, 1
      %p92 = scmp.ne.s32.totalorder %s87, %s89
      %p93 = scmp.eq.s32.totalorder %s27, 0
      %p94 = por %p92, %p93
      %p95 = scmp.ne.s32.totalorder %s87, %s89
      %p96 = scmp.eq.s32.totalorder %s32, 1
      %p97 = por %p95, %p96
      %p98 = scmp.ne.s32.totalorder %s89, %s90
      %p99 = scmp.eq.s32.totalorder %s32, 0
      %p100 = por %p98, %p99
      %p101 = scmp.ne.s32.totalorder %s89, %s90
      %p102 = scmp.eq.s32.totalorder %s33, 1
      %p103 = por %p101, %p102
      %p105 = scmp.ne.s32.totalorder %s90, %s104
      %p106 = scmp.eq.s32.totalorder %s33, 0
      %p107 = por %p105, %p106
      %s109 = sadd.s32 %s108, 1
      %p112 = scmp.eq.s32.totalorder %s27, 1
      %p113 = scmp.ne.s32.totalorder %s108, %s110
      %p114 = scmp.eq.s32.totalorder %s27, 0
      %p115 = por %p113, %p114
      %p116 = scmp.ne.s32.totalorder %s108, %s110
      %p117 = scmp.eq.s32.totalorder %s32, 1
      %p118 = por %p116, %p117
      %p119 = scmp.ne.s32.totalorder %s110, %s111
      %p120 = scmp.eq.s32.totalorder %s32, 0
      %p121 = por %p119, %p120
      %p122 = scmp.ne.s32.totalorder %s110, %s111
      %p123 = scmp.eq.s32.totalorder %s33, 1
      %p124 = por %p122, %p123
      %p126 = scmp.ne.s32.totalorder %s111, %s125
      %p127 = scmp.eq.s32.totalorder %s33, 0
      %p128 = por %p126, %p127
      %s130 = sadd.s32 %s129, 1
      %p133 = scmp.eq.s32.totalorder %s27, 1
      %p134 = scmp.ne.s32.totalorder %s129, %s131
      %p135 = scmp.eq.s32.totalorder %s27, 0
      %p136 = por %p134, %p135
      %p137 = scmp.ne.s32.totalorder %s129, %s131
      %p138 = scmp.eq.s32.totalorder %s32, 1
      %p139 = por %p137, %p138
      %p140 = scmp.ne.s32.totalorder %s131, %s132
      %p141 = scmp.eq.s32.totalorder %s32, 0
      %p142 = por %p140, %p141
      %p143 = scmp.ne.s32.totalorder %s131, %s132
      %p144 = scmp.eq.s32.totalorder %s33, 1
      %p145 = por %p143, %p144
      %p147 = scmp.ne.s32.totalorder %s132, %s146
      %p148 = scmp.eq.s32.totalorder %s33, 0
      %p149 = por %p147, %p148
      %s151 = sadd.s32 %s150, 1
      %p154 = scmp.eq.s32.totalorder %s27, 1
      %p155 = scmp.ne.s32.totalorder %s150, %s152
      %p156 = scmp.eq.s32.totalorder %s27, 0
      %p157 = por %p155, %p156
      %p158 = scmp.ne.s32.totalorder %s150, %s152
      %p159 = scmp.eq.s32.totalorder %s32, 1
      %p160 = por %p158, %p159
      %p161 = scmp.ne.s32.totalorder %s152, %s153
      %p162 = scmp.eq.s32.totalorder %s32, 0
      %p163 = por %p161, %p162
      %p164 = scmp.ne.s32.totalorder %s152, %s153
      %p165 = scmp.eq.s32.totalorder %s33, 1
      %p166 = por %p164, %p165
      %p168 = scmp.ne.s32.totalorder %s153, %s167
      %p169 = scmp.eq.s32.totalorder %s33, 0
      %p170 = por %p168, %p169
      %s172 = sadd.s32 %s171, 1
      %p175 = scmp.eq.s32.totalorder %s27, 1
      %p176 = scmp.ne.s32.totalorder %s171, %s173
      %p177 = scmp.eq.s32.totalorder %s27, 0
      %p178 = por %p176, %p177
      %p179 = scmp.ne.s32.totalorder %s171, %s173
      %p180 = scmp.eq.s32.totalorder %s32, 1
      %p181 = por %p179, %p180
      %p182 = scmp.ne.s32.totalorder %s173, %s174
      %p183 = scmp.eq.s32.totalorder %s32, 0
      %p184 = por %p182, %p183
      %p185 = scmp.ne.s32.totalorder %s173, %s174
      %p186 = scmp.eq.s32.totalorder %s33, 1
      %p187 = por %p185, %p186
      %p189 = scmp.ne.s32.totalorder %s174, %s188
      %p190 = scmp.eq.s32.totalorder %s33, 0
      %p191 = por %p189, %p190
      %s193 = sadd.s32 %s192, 1
      %p196 = scmp.eq.s32.totalorder %s27, 1
      %p197 = scmp.ne.s32.totalorder %s192, %s194
      %p198 = scmp.eq.s32.totalorder %s27, 0
      %p199 = por %p197, %p198
      %p200 = scmp.ne.s32.totalorder %s192, %s194
      %p201 = scmp.eq.s32.totalorder %s32, 1
      %p202 = por %p200, %p201
      %p203 = scmp.ne.s32.totalorder %s194, %s195
      %p204 = scmp.eq.s32.totalorder %s32, 0
      %p205 = por %p203, %p204
      %p206 = scmp.ne.s32.totalorder %s194, %s195
      %p207 = scmp.eq.s32.totalorder %s33, 1
      %p208 = por %p206, %p207
      %p210 = scmp.ne.s32.totalorder %s195, %s209
      %p211 = scmp.eq.s32.totalorder %s33, 0
      %p212 = por %p210, %p211
      %s214 = sadd.s32 %s213, 1
      %p217 = scmp.eq.s32.totalorder %s27, 1
      %p218 = scmp.ne.s32.totalorder %s213, %s215
      %p219 = scmp.eq.s32.totalorder %s27, 0
      %p220 = por %p218, %p219
      %p221 = scmp.ne.s32.totalorder %s213, %s215
      %p222 = scmp.eq.s32.totalorder %s32, 1
      %p223 = por %p221, %p222
      %p224 = scmp.ne.s32.totalorder %s215, %s216
      %p225 = scmp.eq.s32.totalorder %s32, 0
      %p226 = por %p224, %p225
      %p227 = scmp.ne.s32.totalorder %s215, %s216
      %p228 = scmp.eq.s32.totalorder %s33, 1
      %p229 = por %p227, %p228
      %p231 = scmp.ne.s32.totalorder %s216, %s230
      %p232 = scmp.eq.s32.totalorder %s33, 0
      %p233 = por %p231, %p232
      %s235 = sadd.s32 %s234, 1
      %p238 = scmp.eq.s32.totalorder %s27, 1
      %p239 = scmp.ne.s32.totalorder %s234, %s236
      %p240 = scmp.eq.s32.totalorder %s27, 0
      %p241 = por %p239, %p240
      %p242 = scmp.ne.s32.totalorder %s234, %s236
      %p243 = scmp.eq.s32.totalorder %s32, 1
      %p244 = por %p242, %p243
      %p245 = scmp.ne.s32.totalorder %s236, %s237
      %p246 = scmp.eq.s32.totalorder %s32, 0
      %p247 = por %p245, %p246
      %p248 = scmp.ne.s32.totalorder %s236, %s237
      %p249 = scmp.eq.s32.totalorder %s33, 1
      %p250 = por %p248, %p249
      %p252 = scmp.ne.s32.totalorder %s237, %s251
      %p253 = scmp.eq.s32.totalorder %s33, 0
      %p254 = por %p252, %p253
      %s256 = sadd.s32 %s255, 1
      %p259 = scmp.eq.s32.totalorder %s27, 1
      %p260 = scmp.ne.s32.totalorder %s255, %s257
      %p261 = scmp.eq.s32.totalorder %s27, 0
      %p262 = por %p260, %p261
      %p263 = scmp.ne.s32.totalorder %s255, %s257
      %p264 = scmp.eq.s32.totalorder %s32, 1
      %p265 = por %p263, %p264
      %p266 = scmp.ne.s32.totalorder %s257, %s258
      %p267 = scmp.eq.s32.totalorder %s32, 0
      %p268 = por %p266, %p267
      %p269 = scmp.ne.s32.totalorder %s257, %s258
      %p270 = scmp.eq.s32.totalorder %s33, 1
      %p271 = por %p269, %p270
      %p273 = scmp.ne.s32.totalorder %s258, %s272
      %p274 = scmp.eq.s32.totalorder %s33, 0
      %p275 = por %p273, %p274
      %s277 = sadd.s32 %s276, 1
      %p280 = scmp.eq.s32.totalorder %s27, 1
      %p281 = scmp.ne.s32.totalorder %s276, %s278
      %p282 = scmp.eq.s32.totalorder %s27, 0
      %p283 = por %p281, %p282
      %p284 = scmp.ne.s32.totalorder %s276, %s278
      %p285 = scmp.eq.s32.totalorder %s32, 1
      %p286 = por %p284, %p285
      %p287 = scmp.ne.s32.totalorder %s278, %s279
      %p288 = scmp.eq.s32.totalorder %s32, 0
      %p289 = por %p287, %p288
      %p290 = scmp.ne.s32.totalorder %s278, %s279
      %p291 = scmp.eq.s32.totalorder %s33, 1
      %p292 = por %p290, %p291
      %p294 = scmp.ne.s32.totalorder %s279, %s293
      %p295 = scmp.eq.s32.totalorder %s33, 0
      %p296 = por %p294, %p295
      %s298 = sadd.s32 %s297, 1
      %p301 = scmp.eq.s32.totalorder %s27, 1
      %p302 = scmp.ne.s32.totalorder %s297, %s299
      %p303 = scmp.eq.s32.totalorder %s27, 0
      %p304 = por %p302, %p303
      %p305 = scmp.ne.s32.totalorder %s297, %s299
      %p306 = scmp.eq.s32.totalorder %s32, 1
      %p307 = por %p305, %p306
      %p308 = scmp.ne.s32.totalorder %s299, %s300
      %p309 = scmp.eq.s32.totalorder %s32, 0
      %p310 = por %p308, %p309
      %p311 = scmp.ne.s32.totalorder %s299, %s300
      %p312 = scmp.eq.s32.totalorder %s33, 1
      %p313 = por %p311, %p312
      %p315 = scmp.ne.s32.totalorder %s300, %s314
      %p316 = scmp.eq.s32.totalorder %s33, 0
      %p317 = por %p315, %p316
      %s319 = sadd.s32 %s318, 1
      %p322 = scmp.eq.s32.totalorder %s27, 1
      %p323 = scmp.ne.s32.totalorder %s318, %s320
      %p324 = scmp.eq.s32.totalorder %s27, 0
      %p325 = por %p323, %p324
      %p326 = scmp.ne.s32.totalorder %s318, %s320
      %p327 = scmp.eq.s32.totalorder %s32, 1
      %p328 = por %p326, %p327
      %p329 = scmp.ne.s32.totalorder %s320, %s321
      %p330 = scmp.eq.s32.totalorder %s32, 0
      %p331 = por %p329, %p330
      %p332 = scmp.ne.s32.totalorder %s320, %s321
      %p333 = scmp.eq.s32.totalorder %s33, 1
      %p334 = por %p332, %p333
      %p336 = scmp.ne.s32.totalorder %s321, %s335
      %p337 = scmp.eq.s32.totalorder %s33, 0
      %p338 = por %p336, %p337
      %s340 = sadd.s32 %s339, 1
      %p343 = scmp.eq.s32.totalorder %s27, 1
      %p344 = scmp.ne.s32.totalorder %s339, %s341
      %p345 = scmp.eq.s32.totalorder %s27, 0
      %p346 = por %p344, %p345
      %p347 = scmp.ne.s32.totalorder %s339, %s341
      %p348 = scmp.eq.s32.totalorder %s32, 1
      %p349 = por %p347, %p348
      %p350 = scmp.ne.s32.totalorder %s341, %s342
      %p351 = scmp.eq.s32.totalorder %s32, 0
      %p352 = por %p350, %p351
      %p353 = scmp.ne.s32.totalorder %s341, %s342
      %p354 = scmp.eq.s32.totalorder %s33, 1
      %p355 = por %p353, %p354
      %p357 = scmp.ne.s32.totalorder %s342, %s356
      %p358 = scmp.eq.s32.totalorder %s33, 0
      %p359 = por %p357, %p358
      %s361 = sadd.s32 %s360, 1
      %p364 = scmp.eq.s32.totalorder %s27, 1
      %p365 = scmp.ne.s32.totalorder %s360, %s362
      %p366 = scmp.eq.s32.totalorder %s27, 0
      %p367 = por %p365, %p366
      %p368 = scmp.ne.s32.totalorder %s360, %s362
      %p369 = scmp.eq.s32.totalorder %s32, 1
      %p370 = por %p368, %p369
      %p371 = scmp.ne.s32.totalorder %s362, %s363
      %p372 = scmp.eq.s32.totalorder %s32, 0
      %p373 = por %p371, %p372
      %p374 = scmp.ne.s32.totalorder %s362, %s363
      %p375 = scmp.eq.s32.totalorder %s33, 1
      %p376 = por %p374, %p375
      %p378 = scmp.ne.s32.totalorder %s363, %s377
      %p379 = scmp.eq.s32.totalorder %s33, 0
      %p380 = por %p378, %p379
      %s381 = ssub.s32 %s27, %s34
      %p382 = scmp.eq.s32.totalorder %s381, 0
      %s384 = sadd.s32 %s383, 1
      %s385 = scalar_select %p382, %s383, %s384
      %p388 = pneg %p382
      %p389 = scmp.eq.s32.totalorder %s27, 1
      %p390 = por %p388, %p389
      %p391 = scmp.ne.s32.totalorder %s383, %s386
      %p392 = scmp.eq.s32.totalorder %s27, 0
      %p393 = por %p391, %p392
      %p394 = scmp.ne.s32.totalorder %s383, %s386
      %p395 = scmp.eq.s32.totalorder %s32, 1
      %p396 = por %p394, %p395
      %p397 = scmp.ne.s32.totalorder %s386, %s387
      %p398 = scmp.eq.s32.totalorder %s32, 0
      %p399 = por %p397, %p398
      %p400 = scmp.ne.s32.totalorder %s386, %s387
      %p401 = scmp.eq.s32.totalorder %s33, 1
      %p402 = por %p400, %p401
      %p404 = scmp.ne.s32.totalorder %s387, %s403
      %p405 = scmp.eq.s32.totalorder %s33, 0
      %p406 = por %p404, %p405
      %p407 = scmp.le.s32.totalorder 1, %s27
      %p408 = scmp.lt.s32.totalorder %s27, 3
      %p409 = pnand %p407, %p408
      %p410 = pneg %p409
      // Predicated region
      $region9: #{tpu_custom_call.1} parent=5 // pred_check
        _
      $region10: #{tpu_custom_call.1} parent=5 // pred_check_branch
        %412 = sbr.rel (%p409) target = $region12
      $region11: #{tpu_custom_call.1} parent=5 // pred_region
        %s413 = ssub.s32 %s27, 1
        // Predicated region
        $region13: #{tpu_custom_call.1} parent=11 // pred_check
          %p414 = pneg %p100
        $region14: #{tpu_custom_call.1} parent=11 // pred_check_branch
          %416 = sbr.rel (%p414) target = $region16
        $region15: #{tpu_custom_call.1} parent=11 // pred_region
          _
        $region16: #{tpu_custom_call.1} parent=11 // pred_fallthru
          _
        // Predicated region
        $region17: #{tpu_custom_call.1} parent=11 // pred_check
          %p417 = pneg %p121
        $region18: #{tpu_custom_call.1} parent=11 // pred_check_branch
          %419 = sbr.rel (%p417) target = $region20
        $region19: #{tpu_custom_call.1} parent=11 // pred_region
          _
        $region20: #{tpu_custom_call.1} parent=11 // pred_fallthru
          _
        // Predicated region
        $region21: #{tpu_custom_call.1} parent=11 // pred_check
          %p420 = pneg %p142
        $region22: #{tpu_custom_call.1} parent=11 // pred_check_branch
          %422 = sbr.rel (%p420) target = $region24
        $region23: #{tpu_custom_call.1} parent=11 // pred_region
          %s424 = ssub.s32 256, 256
          %425 = vsyncadd [#allocation3], %s424
          %s426 = sshll.u32 [#allocation2], 4
          %s427 = int_to_ptr.vmem [resolvable:$true] %s426
          %432 = dma.hbm_to_vmem [thread:$0]  %s4, 256, %s427, [#allocation3], 64, 64, 4
        $region24: #{tpu_custom_call.1} parent=11 // pred_fallthru
          _
        // Predicated region
        $region25: #{tpu_custom_call.1} parent=11 // pred_check
          %p433 = pneg %p163
        $region26: #{tpu_custom_call.1} parent=11 // pred_check_branch
          %435 = sbr.rel (%p433) target = $region28
        $region27: #{tpu_custom_call.1} parent=11 // pred_region
          %s437 = ssub.s32 256, 256
          %438 = vsyncadd [#allocation6], %s437
          %s439 = sshll.u32 [#allocation5], 4
          %s440 = int_to_ptr.vmem [resolvable:$true] %s439
          %445 = dma.hbm_to_vmem [thread:$0]  %s5, 256, %s440, [#allocation6], 64, 64, 4
        $region28: #{tpu_custom_call.1} parent=11 // pred_fallthru
          _
        // Predicated region
        $region29: #{tpu_custom_call.1} parent=11 // pred_check
          %p446 = pneg %p184
        $region30: #{tpu_custom_call.1} parent=11 // pred_check_branch
          %448 = sbr.rel (%p446) target = $region32
        $region31: #{tpu_custom_call.1} parent=11 // pred_region
          %s450 = ssub.s32 256, 256
          %451 = vsyncadd [#allocation6], %s450
          %s452 = sshll.u32 [#allocation7], 4
          %s453 = int_to_ptr.vmem [resolvable:$true] %s452
          %458 = dma.hbm_to_vmem [thread:$0]  %s6, 256, %s453, [#allocation6], 64, 64, 4
        $region32: #{tpu_custom_call.1} parent=11 // pred_fallthru
          _
        // Predicated region
        $region33: #{tpu_custom_call.1} parent=11 // pred_check
          %p459 = pneg %p205
        $region34: #{tpu_custom_call.1} parent=11 // pred_check_branch
          %461 = sbr.rel (%p459) target = $region36
        $region35: #{tpu_custom_call.1} parent=11 // pred_region
          _
        $region36: #{tpu_custom_call.1} parent=11 // pred_fallthru
          _
        // Predicated region
        $region37: #{tpu_custom_call.1} parent=11 // pred_check
          %p462 = pneg %p226
        $region38: #{tpu_custom_call.1} parent=11 // pred_check_branch
          %464 = sbr.rel (%p462) target = $region40
        $region39: #{tpu_custom_call.1} parent=11 // pred_region
          _
        $region40: #{tpu_custom_call.1} parent=11 // pred_fallthru
          _
        // Predicated region
        $region41: #{tpu_custom_call.1} parent=11 // pred_check
          %p465 = pneg %p247
        $region42: #{tpu_custom_call.1} parent=11 // pred_check_branch
          %467 = sbr.rel (%p465) target = $region44
        $region43: #{tpu_custom_call.1} parent=11 // pred_region
          _
        $region44: #{tpu_custom_call.1} parent=11 // pred_fallthru
          _
        // Predicated region
        $region45: #{tpu_custom_call.1} parent=11 // pred_check
          %p468 = pneg %p268
        $region46: #{tpu_custom_call.1} parent=11 // pred_check_branch
          %470 = sbr.rel (%p468) target = $region48
        $region47: #{tpu_custom_call.1} parent=11 // pred_region
          _
        $region48: #{tpu_custom_call.1} parent=11 // pred_fallthru
          _
        // Predicated region
        $region49: #{tpu_custom_call.1} parent=11 // pred_check
          %p471 = pneg %p289
        $region50: #{tpu_custom_call.1} parent=11 // pred_check_branch
          %473 = sbr.rel (%p471) target = $region52
        $region51: #{tpu_custom_call.1} parent=11 // pred_region
          _
        $region52: #{tpu_custom_call.1} parent=11 // pred_fallthru
          _
        // Predicated region
        $region53: #{tpu_custom_call.1} parent=11 // pred_check
          %p474 = pneg %p310
        $region54: #{tpu_custom_call.1} parent=11 // pred_check_branch
          %476 = sbr.rel (%p474) target = $region56
        $region55: #{tpu_custom_call.1} parent=11 // pred_region
          _
        $region56: #{tpu_custom_call.1} parent=11 // pred_fallthru
          _
        // Predicated region
        $region57: #{tpu_custom_call.1} parent=11 // pred_check
          %p477 = pneg %p331
        $region58: #{tpu_custom_call.1} parent=11 // pred_check_branch
          %479 = sbr.rel (%p477) target = $region60
        $region59: #{tpu_custom_call.1} parent=11 // pred_region
          _
        $region60: #{tpu_custom_call.1} parent=11 // pred_fallthru
          _
        // Predicated region
        $region61: #{tpu_custom_call.1} parent=11 // pred_check
          %p480 = pneg %p352
        $region62: #{tpu_custom_call.1} parent=11 // pred_check_branch
          %482 = sbr.rel (%p480) target = $region64
        $region63: #{tpu_custom_call.1} parent=11 // pred_region
          _
        $region64: #{tpu_custom_call.1} parent=11 // pred_fallthru
          _
        // Predicated region
        $region65: #{tpu_custom_call.1} parent=11 // pred_check
          %p483 = pneg %p373
        $region66: #{tpu_custom_call.1} parent=11 // pred_check_branch
          %485 = sbr.rel (%p483) target = $region68
        $region67: #{tpu_custom_call.1} parent=11 // pred_region
          _
        $region68: #{tpu_custom_call.1} parent=11 // pred_fallthru
          _
      $region12: #{tpu_custom_call.1} parent=5 // pred_fallthru
        _
      %p486 = scmp.lt.s32.totalorder %s27, 2
      // Predicated region
      $region69: #{tpu_custom_call.1} parent=5 // pred_check
        %p487 = pneg %p486
      $region70: #{tpu_custom_call.1} parent=5 // pred_check_branch
        %489 = sbr.rel (%p487) target = $region72
      $region71: #{tpu_custom_call.1} parent=5 // pred_region
        // Predicated region
        $region73: #{tpu_custom_call.1} parent=71 // pred_check
          %p490 = pneg %p47
        $region74: #{tpu_custom_call.1} parent=71 // pred_check_branch
          %492 = sbr.rel (%p490) target = $region76
        $region75: #{tpu_custom_call.1} parent=71 // pred_region
          %s493 = smul.u32 8, %s27
          %p494 = scmp.lt.s32.totalorder %s493, 15
          %s495 = scalar_select %p494, %s493, 15
          %s496 = smul.addr %s495, 4
          %s497 = scalar_lea.vmem %s0, %s496
          %s498 = smul.u32 8, %s27
        $region76: #{tpu_custom_call.1} parent=71 // pred_fallthru
          _
        // Predicated region
        $region77: #{tpu_custom_call.1} parent=71 // pred_check
          %p499 = pneg %p73
        $region78: #{tpu_custom_call.1} parent=71 // pred_check_branch
          %501 = sbr.rel (%p499) target = $region80
        $region79: #{tpu_custom_call.1} parent=71 // pred_region
          %s502 = smul.u32 8, %s27
          %p503 = scmp.lt.s32.totalorder %s502, 15
          %s504 = scalar_select %p503, %s502, 15
          %s505 = scalar_lea.vmem %s1, %s504
          %s506 = smul.u32 8, %s27
        $region80: #{tpu_custom_call.1} parent=71 // pred_fallthru
          _
      $region72: #{tpu_custom_call.1} parent=5 // pred_fallthru
        _
      %p507 = scmp.le.s32.totalorder 1, %s27
      %p508 = scmp.lt.s32.totalorder %s27, 3
      %p509 = pnand %p507, %p508
      %p510 = pneg %p509
      // Predicated region
      $region81: #{tpu_custom_call.1} parent=5 // pred_check
        _
      $region82: #{tpu_custom_call.1} parent=5 // pred_check_branch
        %512 = sbr.rel (%p509) target = $region84
      $region83: #{tpu_custom_call.1} parent=5 // pred_region
        %s513 = ssub.s32 %s27, 1
        // Predicated region
        $region85: #{tpu_custom_call.1} parent=83 // pred_check
          %p514 = pneg %p142
        $region86: #{tpu_custom_call.1} parent=83 // pred_check_branch
          %516 = sbr.rel (%p514) target = $region88
        $region87: #{tpu_custom_call.1} parent=83 // pred_region
          %517 = dma.done [#allocation3], 256
        $region88: #{tpu_custom_call.1} parent=83 // pred_fallthru
          _
        // Predicated region
        $region89: #{tpu_custom_call.1} parent=83 // pred_check
          %p518 = pneg %p163
        $region90: #{tpu_custom_call.1} parent=83 // pred_check_branch
          %520 = sbr.rel (%p518) target = $region92
        $region91: #{tpu_custom_call.1} parent=83 // pred_region
          %521 = dma.done [#allocation6], 256
        $region92: #{tpu_custom_call.1} parent=83 // pred_fallthru
          _
        // Predicated region
        $region93: #{tpu_custom_call.1} parent=83 // pred_check
          %p522 = pneg %p184
        $region94: #{tpu_custom_call.1} parent=83 // pred_check_branch
          %524 = sbr.rel (%p522) target = $region96
        $region95: #{tpu_custom_call.1} parent=83 // pred_region
          %525 = dma.done [#allocation6], 256
        $region96: #{tpu_custom_call.1} parent=83 // pred_fallthru
          _
        %s526 = smul.u32 8, %s32
        %p527 = scmp.lt.s32.totalorder %s526, 15
        %s528 = scalar_select %p527, %s526, 15
        %s529 = smul.addr %s528, 4
        %s530 = scalar_lea.vmem %s0, %s529
        %p531 = pneg %p53
        %p532 = pneg %p50
        %s533 = smul.u32 8, %s32
        %p534 = scmp.lt.s32.totalorder %s533, 15
        %s535 = scalar_select %p534, %s533, 15
        %s536 = scalar_lea.vmem %s1, %s535
        %p537 = pneg %p79
        %p538 = pneg %p76
        %p539 = pneg %p100
        %p540 = pneg %p97
        %p541 = pneg %p121
        %p542 = pneg %p118
        %p543 = pneg %p142
        %p544 = pneg %p139
        %p545 = pneg %p163
        %p546 = pneg %p160
        %p547 = pneg %p184
        %p548 = pneg %p181
        %p549 = pneg %p205
        %p550 = pneg %p202
        %p551 = pneg %p226
        %p552 = pneg %p223
        %p553 = pneg %p247
        %p554 = pneg %p244
        %p555 = pneg %p268
        %p556 = pneg %p265
        %p557 = pneg %p289
        %p558 = pneg %p286
        %p559 = pneg %p310
        %p560 = pneg %p307
        %p561 = pneg %p331
        %p562 = pneg %p328
        %p563 = pneg %p352
        %p564 = pneg %p349
        %p565 = pneg %p373
        %p566 = pneg %p370
        %p567 = pneg %p399
        %p568 = pneg %p396
        %s569 = sand.u32 %s386, 1
        %s570 = scalar_lea.sflag [#allocation4], %s569
        %s571 = sand.u32 %s386, 1
        %s572 = smul.addr %s571, 8
        %s573 = scalar_lea.vmem [#allocation8], %s572
        %s574 = smul.u32 8, %s32
        %p575 = scmp.lt.s32.totalorder %s574, 15
        %s576 = scalar_select %p575, %s574, 15
        %s577 = smul.addr %s576, 4
        %s578 = scalar_lea.vmem %s0, %s577
        %s579 = smul.u32 8, %s32
        %s580 = smul.u32 8, %s32
        %p581 = scmp.lt.s32.totalorder %s580, 15
        %s582 = scalar_select %p581, %s580, 15
        %s583 = scalar_lea.vmem %s1, %s582
        %s584 = smul.u32 8, %s32
        %v586 = vld [vmem:[%s578] sm:$0xf]
        %v587 = vld [vmem:[%s578 + $0x4] sm:$0xf]
        %v588 = vld [vmem:[%s578 + $0x8] sm:$0xf]
        %v589 = vld [vmem:[%s578 + $0xc] sm:$0xf]
        %v590 = vld [vmem:[%s578 + $0x10] sm:$0xf]
        %v591 = vld [vmem:[%s578 + $0x14] sm:$0xf]
        %v592 = vld [vmem:[%s578 + $0x18] sm:$0xf]
        %v593 = vld [vmem:[%s578 + $0x1c] sm:$0xf]
        %v594 = vunpack.c.l.bf16 %v586
        %v595 = vunpack.c.l.bf16 %v587
        %v596 = vunpack.c.l.bf16 %v588
        %v597 = vunpack.c.l.bf16 %v589
        %v598 = vunpack.c.l.bf16 %v590
        %v599 = vunpack.c.l.bf16 %v591
        %v600 = vunpack.c.l.bf16 %v592
        %v601 = vunpack.c.l.bf16 %v593
        %v602 = vld [vmem:[%s583] sm:$0x1]
        %v603 = vld [vmem:[%s583 + $0x1] sm:$0x1]
        %v604 = vld [vmem:[%s583 + $0x2] sm:$0x1]
        %v605 = vld [vmem:[%s583 + $0x3] sm:$0x1]
        %v606 = vld [vmem:[%s583 + $0x4] sm:$0x1]
        %v607 = vld [vmem:[%s583 + $0x5] sm:$0x1]
        %v608 = vld [vmem:[%s583 + $0x6] sm:$0x1]
        %v609 = vld [vmem:[%s583 + $0x7] sm:$0x1]
        %v610 = vld [vmem:[%s8] sm:$0x1]
        %v611 = vld [vmem:[%s9] sm:$0x1]
        %vm612 = vcmask 261120
        %v613 = vsel %vm612, %v594, 0.0
        %614 = vadd.xlane.f32.xlu0 %v613
        %v615 = vpop.xlane.xlu0 %614
        %v616 = vsel %vm612, %v595, 0.0
        %617 = vadd.xlane.f32.xlu0 %v616
        %v618 = vpop.xlane.xlu0 %617
        %v619 = vsel %vm612, %v596, 0.0
        %620 = vadd.xlane.f32.xlu0 %v619
        %v621 = vpop.xlane.xlu0 %620
        %v622 = vsel %vm612, %v597, 0.0
        %623 = vadd.xlane.f32.xlu0 %v622
        %v624 = vpop.xlane.xlu0 %623
        %v625 = vsel %vm612, %v598, 0.0
        %626 = vadd.xlane.f32.xlu0 %v625
        %v627 = vpop.xlane.xlu0 %626
        %v628 = vsel %vm612, %v599, 0.0
        %629 = vadd.xlane.f32.xlu0 %v628
        %v630 = vpop.xlane.xlu0 %629
        %v631 = vsel %vm612, %v600, 0.0
        %632 = vadd.xlane.f32.xlu0 %v631
        %v633 = vpop.xlane.xlu0 %632
        %v634 = vsel %vm612, %v601, 0.0
        %635 = vadd.xlane.f32.xlu0 %v634
        %v636 = vpop.xlane.xlu0 %635
        %v637 = vrcp.pop 32.0
        %v638 = vmul.f32 %v615, %v637
        %v639 = vmul.f32 %v618, %v637
        %v640 = vmul.f32 %v621, %v637
        %v641 = vmul.f32 %v624, %v637
        %v642 = vmul.f32 %v627, %v637
        %v643 = vmul.f32 %v630, %v637
        %v644 = vmul.f32 %v633, %v637
        %v645 = vmul.f32 %v636, %v637
        %v646 = vsub.f32 %v594, %v638
        %v647 = vsub.f32 %v595, %v639
        %v648 = vsub.f32 %v596, %v640
        %v649 = vsub.f32 %v597, %v641
        %v650 = vsub.f32 %v598, %v642
        %v651 = vsub.f32 %v599, %v643
        %v652 = vsub.f32 %v600, %v644
        %v653 = vsub.f32 %v601, %v645
        %v654 = vmul.f32 %v646, %v646
        %v655 = vmul.f32 %v647, %v647
        %v656 = vmul.f32 %v648, %v648
        %v657 = vmul.f32 %v649, %v649
        %v658 = vmul.f32 %v650, %v650
        %v659 = vmul.f32 %v651, %v651
        %v660 = vmul.f32 %v652, %v652
        %v661 = vmul.f32 %v653, %v653
        %v662 = vsel %vm612, %v654, 0.0
        %663 = vadd.xlane.f32.xlu0 %v662
        %v664 = vpop.xlane.xlu0 %663
        %v665 = vsel %vm612, %v655, 0.0
        %666 = vadd.xlane.f32.xlu0 %v665
        %v667 = vpop.xlane.xlu0 %666
        %v668 = vsel %vm612, %v656, 0.0
        %669 = vadd.xlane.f32.xlu0 %v668
        %v670 = vpop.xlane.xlu0 %669
        %v671 = vsel %vm612, %v657, 0.0
        %672 = vadd.xlane.f32.xlu0 %v671
        %v673 = vpop.xlane.xlu0 %672
        %v674 = vsel %vm612, %v658, 0.0
        %675 = vadd.xlane.f32.xlu0 %v674
        %v676 = vpop.xlane.xlu0 %675
        %v677 = vsel %vm612, %v659, 0.0
        %678 = vadd.xlane.f32.xlu0 %v677
        %v679 = vpop.xlane.xlu0 %678
        %v680 = vsel %vm612, %v660, 0.0
        %681 = vadd.xlane.f32.xlu0 %v680
        %v682 = vpop.xlane.xlu0 %681
        %v683 = vsel %vm612, %v661, 0.0
        %684 = vadd.xlane.f32.xlu0 %v683
        %v685 = vpop.xlane.xlu0 %684
        %v686 = vmul.f32 %v664, %v637
        %v687 = vmul.f32 %v667, %v637
        %v688 = vmul.f32 %v670, %v637
        %v689 = vmul.f32 %v673, %v637
        %v690 = vmul.f32 %v676, %v637
        %v691 = vmul.f32 %v679, %v637
        %v692 = vmul.f32 %v682, %v637
        %v693 = vmul.f32 %v685, %v637
        %v694 = vadd.f32 %v686, 1e-12
        %v695 = vadd.f32 %v687, 1e-12
        %v696 = vadd.f32 %v688, 1e-12
        %v697 = vadd.f32 %v689, 1e-12
        %v698 = vadd.f32 %v690, 1e-12
        %v699 = vadd.f32 %v691, 1e-12
        %v700 = vadd.f32 %v692, 1e-12
        %v701 = vadd.f32 %v693, 1e-12
        %v702 = vrsqrt.pop %v694
        %v703 = vrsqrt.pop %v695
        %v704 = vrsqrt.pop %v696
        %v705 = vrsqrt.pop %v697
        %v706 = vrsqrt.pop %v698
        %v707 = vrsqrt.pop %v699
        %v708 = vrsqrt.pop %v700
        %v709 = vrsqrt.pop %v701
        %v710 = vmul.f32 %v646, %v702
        %v711 = vmul.f32 %v647, %v703
        %v712 = vmul.f32 %v648, %v704
        %v713 = vmul.f32 %v649, %v705
        %v714 = vmul.f32 %v650, %v706
        %v715 = vmul.f32 %v651, %v707
        %v716 = vmul.f32 %v652, %v708
        %v717 = vmul.f32 %v653, %v709
        %v719 = vlaneseq
        %v720 = vshrl.u32 %v719, 7
        %v721 = vsub.s32 0, %v720
        %v722 = vrot.slane %v610, %v721
        %v724 = vmul.f32 %v710, %v722
        %v725 = vmul.f32 %v711, %v722
        %v726 = vmul.f32 %v712, %v722
        %v727 = vmul.f32 %v713, %v722
        %v728 = vmul.f32 %v714, %v722
        %v729 = vmul.f32 %v715, %v722
        %v730 = vmul.f32 %v716, %v722
        %v731 = vmul.f32 %v717, %v722
        %v733 = vlaneseq
        %v734 = vshrl.u32 %v733, 7
        %v735 = vsub.s32 0, %v734
        %v736 = vrot.slane %v611, %v735
        %v738 = vadd.f32 %v724, %v736
        %v739 = vadd.f32 %v725, %v736
        %v740 = vadd.f32 %v726, %v736
        %v741 = vadd.f32 %v727, %v736
        %v742 = vadd.f32 %v728, %v736
        %v743 = vadd.f32 %v729, %v736
        %v744 = vadd.f32 %v730, %v736
        %v745 = vadd.f32 %v731, %v736
        %v746 = vpack.c.bf16 %v739, %v738
        %v747 = vpack.c.bf16 %v741, %v740
        %v748 = vpack.c.bf16 %v743, %v742
        %v749 = vpack.c.bf16 %v745, %v744
        %v750 = vld [vmem:[%s2] sm:$0xf]
        %v751 = vld [vmem:[%s2 + $0x4] sm:$0xf]
        %v752 = vld [vmem:[%s2 + $0x8] sm:$0xf]
        %v753 = vld [vmem:[%s2 + $0xc] sm:$0xf]
        %v758 = vunpack.c.l.b16 %v750
        %v759 = vunpack.c.l.b16 %v751
        %v760 = vunpack.c.l.b16 %v752
        %v761 = vunpack.c.l.b16 %v753
        %v762 = vpack.c.b16 %v759, %v758
        %v763 = vpack.c.b16 %v761, %v760
        %v767 = vsel %vm612, %v746, 0
        %v770 = vsel %vm612, %v747, 0
        %v773 = vsel %vm612, %v748, 0
        %v776 = vsel %vm612, %v749, 0
        %778 = vmatprep.subr.bf16.mxu0 0
        %779 = vmatpush1.bf16.msra.mxu0 %v762
        %780 = vmatprep.subr.bf16.mxu0 0
        %781 = vmatpush1.bf16.msra.mxu0 %v763
        %782 = vmatprep.subr.bf16.mxu0 0
        %783 = vmatpush1.bf16.msra.mxu0 0
        %784 = vmatprep.subr.bf16.mxu0 0
        %785 = vmatpush1.bf16.msra.mxu0 0
        %786 = vmatprep.subr.bf16.mxu0 0
        %787 = vmatpush1.bf16.msra.mxu0 0
        %788 = vmatprep.subr.bf16.mxu0 0
        %789 = vmatpush1.bf16.msra.mxu0 0
        %790 = vmatprep.subr.bf16.mxu0 0
        %791 = vmatpush1.bf16.msra.mxu0 0
        %792 = vmatprep.subr.bf16.mxu0 0
        %793 = vmatpush1.bf16.msra.mxu0 0
        %794 = vmatprep.subr.bf16.mxu0 0
        %795 = vmatpush1.bf16.msra.mxu0 0
        %796 = vmatprep.subr.bf16.mxu0 0
        %797 = vmatpush1.bf16.msra.mxu0 0
        %798 = vmatprep.subr.bf16.mxu0 0
        %799 = vmatpush1.bf16.msra.mxu0 0
        %800 = vmatprep.subr.bf16.mxu0 0
        %801 = vmatpush1.bf16.msra.mxu0 0
        %802 = vmatprep.subr.bf16.mxu0 0
        %803 = vmatpush1.bf16.msra.mxu0 0
        %804 = vmatprep.subr.bf16.mxu0 0
        %805 = vmatpush1.bf16.msra.mxu0 0
        %806 = vmatprep.subr.bf16.mxu0 0
        %807 = vmatpush1.bf16.msra.mxu0 0
        %808 = vmatprep.subr.bf16.mxu0 0
        %809 = vmatpush1.bf16.msra.mxu0 0
        %810 = vmatprep.mubr.bf16.mxu0 0
        %811 = vmatmul.mubr.bf16.gmra.mrb[0].mxu0 %v767
        %v812 = vpop.f32.mrb[0].mxu0
        %v813 = vadd.f32 0.0, %v812
        %v814 = vpop.f32.mrb[0].mxu0
        %v815 = vpop.f32.mrb[0].mxu0
        %v816 = vadd.f32 0.0, %v815
        %v817 = vpop.f32.mrb[0].mxu0
        %818 = vmatprep.mubr.bf16.mxu0 0
        %819 = vmatmul.mubr.bf16.gmra.mrb[0].mxu0 %v770
        %v820 = vpop.f32.mrb[0].mxu0
        %v821 = vadd.f32 0.0, %v820
        %v822 = vpop.f32.mrb[0].mxu0
        %v823 = vpop.f32.mrb[0].mxu0
        %v824 = vadd.f32 0.0, %v823
        %v825 = vpop.f32.mrb[0].mxu0
        %826 = vmatprep.mubr.bf16.mxu0 0
        %827 = vmatmul.mubr.bf16.gmra.mrb[0].mxu0 %v773
        %v828 = vpop.f32.mrb[0].mxu0
        %v829 = vadd.f32 0.0, %v828
        %v830 = vpop.f32.mrb[0].mxu0
        %v831 = vpop.f32.mrb[0].mxu0
        %v832 = vadd.f32 0.0, %v831
        %v833 = vpop.f32.mrb[0].mxu0
        %834 = vmatprep.mubr.bf16.mxu0 0
        %835 = vmatmul.mubr.bf16.gmra.mrb[0].mxu0 %v776
        %v836 = vpop.f32.mrb[0].mxu0
        %v837 = vadd.f32 0.0, %v836
        %v838 = vpop.f32.mrb[0].mxu0
        %v839 = vpop.f32.mrb[0].mxu0
        %v840 = vadd.f32 0.0, %v839
        %v841 = vpop.f32.mrb[0].mxu0
        %842 = vdwg.mxu0
        %v843 = vpack.c.bf16 %v816, %v813
        %v844 = vpack.c.bf16 %v824, %v821
        %v845 = vpack.c.bf16 %v832, %v829
        %v846 = vpack.c.bf16 %v840, %v837
        %v851 = vunpack.c.l.b16 %v843
        %v852 = vunpack.c.h.b16 %v843
        %v853 = vunpack.c.l.b16 %v844
        %v854 = vunpack.c.h.b16 %v844
        %v855 = vunpack.c.l.b16 %v845
        %v856 = vunpack.c.h.b16 %v845
        %v857 = vunpack.c.l.b16 %v846
        %v858 = vunpack.c.h.b16 %v846
        %v859 = vpack.c.b16 %v851, %v851
        %v860 = vpack.c.b16 %v852, %v852
        %v861 = vpack.c.b16 %v853, %v853
        %v862 = vpack.c.b16 %v854, %v854
        %v863 = vpack.c.b16 %v855, %v855
        %v864 = vpack.c.b16 %v856, %v856
        %v865 = vpack.c.b16 %v857, %v857
        %v866 = vpack.c.b16 %v858, %v858
        %v867 = vld [vmem:[%s3] sm:$0xf]
        %v868 = vld [vmem:[%s3 + $0x4] sm:$0xf]
        %v869 = vld [vmem:[%s3 + $0x8] sm:$0xf]
        %v870 = vld [vmem:[%s3 + $0xc] sm:$0xf]
        %v875 = vunpack.c.l.b16 %v867
        %v876 = vunpack.c.l.b16 %v868
        %v877 = vunpack.c.l.b16 %v869
        %v878 = vunpack.c.l.b16 %v870
        %v879 = vpack.c.b16 %v876, %v875
        %v880 = vpack.c.b16 %v878, %v877
        %883 = vmatprep.subr.bf16.mxu0 0
        %884 = vmatpush1.bf16.msra.mxu0 %v879
        %885 = vmatprep.subr.bf16.mxu0 0
        %886 = vmatpush1.bf16.msra.mxu0 %v880
        %887 = vmatprep.subr.bf16.mxu0 0
        %888 = vmatpush1.bf16.msra.mxu0 0
        %889 = vmatprep.subr.bf16.mxu0 0
        %890 = vmatpush1.bf16.msra.mxu0 0
        %891 = vmatprep.subr.bf16.mxu0 0
        %892 = vmatpush1.bf16.msra.mxu0 0
        %893 = vmatprep.subr.bf16.mxu0 0
        %894 = vmatpush1.bf16.msra.mxu0 0
        %895 = vmatprep.subr.bf16.mxu0 0
        %896 = vmatpush1.bf16.msra.mxu0 0
        %897 = vmatprep.subr.bf16.mxu0 0
        %898 = vmatpush1.bf16.msra.mxu0 0
        %899 = vmatprep.subr.bf16.mxu0 0
        %900 = vmatpush1.bf16.msra.mxu0 0
        %901 = vmatprep.subr.bf16.mxu0 0
        %902 = vmatpush1.bf16.msra.mxu0 0
        %903 = vmatprep.subr.bf16.mxu0 0
        %904 = vmatpush1.bf16.msra.mxu0 0
        %905 = vmatprep.subr.bf16.mxu0 0
        %906 = vmatpush1.bf16.msra.mxu0 0
        %907 = vmatprep.subr.bf16.mxu0 0
        %908 = vmatpush1.bf16.msra.mxu0 0
        %909 = vmatprep.subr.bf16.mxu0 0
        %910 = vmatpush1.bf16.msra.mxu0 0
        %911 = vmatprep.subr.bf16.mxu0 0
        %912 = vmatpush1.bf16.msra.mxu0 0
        %913 = vmatprep.subr.bf16.mxu0 0
        %914 = vmatpush1.bf16.msra.mxu0 0
        %915 = vmatprep.mubr.bf16.mxu0 0
        %916 = vmatmul.mubr.bf16.gmra.mrb[0].mxu0 %v767
        %v917 = vpop.f32.mrb[0].mxu0
        %v918 = vadd.f32 0.0, %v917
        %v919 = vpop.f32.mrb[0].mxu0
        %v920 = vpop.f32.mrb[0].mxu0
        %v921 = vadd.f32 0.0, %v920
        %v922 = vpop.f32.mrb[0].mxu0
        %923 = vmatprep.mubr.bf16.mxu0 0
        %924 = vmatmul.mubr.bf16.gmra.mrb[0].mxu0 %v770
        %v925 = vpop.f32.mrb[0].mxu0
        %v926 = vadd.f32 0.0, %v925
        %v927 = vpop.f32.mrb[0].mxu0
        %v928 = vpop.f32.mrb[0].mxu0
        %v929 = vadd.f32 0.0, %v928
        %v930 = vpop.f32.mrb[0].mxu0
        %931 = vmatprep.mubr.bf16.mxu0 0
        %932 = vmatmul.mubr.bf16.gmra.mrb[0].mxu0 %v773
        %v933 = vpop.f32.mrb[0].mxu0
        %v934 = vadd.f32 0.0, %v933
        %v935 = vpop.f32.mrb[0].mxu0
        %v936 = vpop.f32.mrb[0].mxu0
        %v937 = vadd.f32 0.0, %v936
        %v938 = vpop.f32.mrb[0].mxu0
        %939 = vmatprep.mubr.bf16.mxu0 0
        %940 = vmatmul.mubr.bf16.gmra.mrb[0].mxu0 %v776
        %v941 = vpop.f32.mrb[0].mxu0
        %v942 = vadd.f32 0.0, %v941
        %v943 = vpop.f32.mrb[0].mxu0
        %v944 = vpop.f32.mrb[0].mxu0
        %v945 = vadd.f32 0.0, %v944
        %v946 = vpop.f32.mrb[0].mxu0
        %947 = vdwg.mxu0
        %v948 = vpack.c.bf16 %v921, %v918
        %v949 = vpack.c.bf16 %v929, %v926
        %v950 = vpack.c.bf16 %v937, %v934
        %v951 = vpack.c.bf16 %v945, %v942
        %v956 = vunpack.c.l.b16 %v948
        %v957 = vunpack.c.h.b16 %v948
        %v958 = vunpack.c.l.b16 %v949
        %v959 = vunpack.c.h.b16 %v949
        %v960 = vunpack.c.l.b16 %v950
        %v961 = vunpack.c.h.b16 %v950
        %v962 = vunpack.c.l.b16 %v951
        %v963 = vunpack.c.h.b16 %v951
        %v964 = vpack.c.b16 %v956, %v956
        %v965 = vpack.c.b16 %v957, %v957
        %v966 = vpack.c.b16 %v958, %v958
        %v967 = vpack.c.b16 %v959, %v959
        %v968 = vpack.c.b16 %v960, %v960
        %v969 = vpack.c.b16 %v961, %v961
        %v970 = vpack.c.b16 %v962, %v962
        %v971 = vpack.c.b16 %v963, %v963
        %v972 = vld [vmem:[#allocation2] sm:$0xf]
        %v973 = vld [vmem:[#allocation2 + $0x4] sm:$0xf]
        %v974 = vld [vmem:[#allocation2 + $0x8] sm:$0xf]
        %v975 = vld [vmem:[#allocation2 + $0xc] sm:$0xf]
        %v980 = vunpack.c.l.b16 %v972
        %v981 = vunpack.c.l.b16 %v973
        %v982 = vunpack.c.l.b16 %v974
        %v983 = vunpack.c.l.b16 %v975
        %v984 = vpack.c.b16 %v981, %v980
        %v985 = vpack.c.b16 %v983, %v982
        %988 = vmatprep.subr.bf16.mxu0 0
        %989 = vmatpush1.bf16.msra.mxu0 %v984
        %990 = vmatprep.subr.bf16.mxu0 0
        %991 = vmatpush1.bf16.msra.mxu0 %v985
        %992 = vmatprep.subr.bf16.mxu0 0
        %993 = vmatpush1.bf16.msra.mxu0 0
        %994 = vmatprep.subr.bf16.mxu0 0
        %995 = vmatpush1.bf16.msra.mxu0 0
        %996 = vmatprep.subr.bf16.mxu0 0
        %997 = vmatpush1.bf16.msra.mxu0 0
        %998 = vmatprep.subr.bf16.mxu0 0
        %999 = vmatpush1.bf16.msra.mxu0 0
        %1000 = vmatprep.subr.bf16.mxu0 0
        %1001 = vmatpush1.bf16.msra.mxu0 0
        %1002 = vmatprep.subr.bf16.mxu0 0
        %1003 = vmatpush1.bf16.msra.mxu0 0
        %1004 = vmatprep.subr.bf16.mxu0 0
        %1005 = vmatpush1.bf16.msra.mxu0 0
        %1006 = vmatprep.subr.bf16.mxu0 0
        %1007 = vmatpush1.bf16.msra.mxu0 0
        %1008 = vmatprep.subr.bf16.mxu0 0
        %1009 = vmatpush1.bf16.msra.mxu0 0
        %1010 = vmatprep.subr.bf16.mxu0 0
        %1011 = vmatpush1.bf16.msra.mxu0 0
        %1012 = vmatprep.subr.bf16.mxu0 0
        %1013 = vmatpush1.bf16.msra.mxu0 0
        %1014 = vmatprep.subr.bf16.mxu0 0
        %1015 = vmatpush1.bf16.msra.mxu0 0
        %1016 = vmatprep.subr.bf16.mxu0 0
        %1017 = vmatpush1.bf16.msra.mxu0 0
        %1018 = vmatprep.subr.bf16.mxu0 0
        %1019 = vmatpush1.bf16.msra.mxu0 0
        %1020 = vmatprep.mubr.bf16.mxu0 0
        %1021 = vmatmul.mubr.bf16.gmra.mrb[0].mxu0 %v767
        %v1022 = vpop.f32.mrb[0].mxu0
        %v1023 = vadd.f32 0.0, %v1022
        %v1024 = vpop.f32.mrb[0].mxu0
        %v1025 = vpop.f32.mrb[0].mxu0
        %v1026 = vadd.f32 0.0, %v1025
        %v1027 = vpop.f32.mrb[0].mxu0
        %1028 = vmatprep.mubr.bf16.mxu0 0
        %1029 = vmatmul.mubr.bf16.gmra.mrb[0].mxu0 %v770
        %v1030 = vpop.f32.mrb[0].mxu0
        %v1031 = vadd.f32 0.0, %v1030
        %v1032 = vpop.f32.mrb[0].mxu0
        %v1033 = vpop.f32.mrb[0].mxu0
        %v1034 = vadd.f32 0.0, %v1033
        %v1035 = vpop.f32.mrb[0].mxu0
        %1036 = vmatprep.mubr.bf16.mxu0 0
        %1037 = vmatmul.mubr.bf16.gmra.mrb[0].mxu0 %v773
        %v1038 = vpop.f32.mrb[0].mxu0
        %v1039 = vadd.f32 0.0, %v1038
        %v1040 = vpop.f32.mrb[0].mxu0
        %v1041 = vpop.f32.mrb[0].mxu0
        %v1042 = vadd.f32 0.0, %v1041
        %v1043 = vpop.f32.mrb[0].mxu0
        %1044 = vmatprep.mubr.bf16.mxu0 0
        %1045 = vmatmul.mubr.bf16.gmra.mrb[0].mxu0 %v776
        %v1046 = vpop.f32.mrb[0].mxu0
        %v1047 = vadd.f32 0.0, %v1046
        %v1048 = vpop.f32.mrb[0].mxu0
        %v1049 = vpop.f32.mrb[0].mxu0
        %v1050 = vadd.f32 0.0, %v1049
        %v1051 = vpop.f32.mrb[0].mxu0
        %1052 = vdwg.mxu0
        %v1053 = vpack.c.bf16 %v1026, %v1023
        %v1054 = vpack.c.bf16 %v1034, %v1031
        %v1055 = vpack.c.bf16 %v1042, %v1039
        %v1056 = vpack.c.bf16 %v1050, %v1047
        %v1061 = vunpack.c.l.b16 %v1053
        %v1062 = vunpack.c.h.b16 %v1053
        %v1063 = vunpack.c.l.b16 %v1054
        %v1064 = vunpack.c.h.b16 %v1054
        %v1065 = vunpack.c.l.b16 %v1055
        %v1066 = vunpack.c.h.b16 %v1055
        %v1067 = vunpack.c.l.b16 %v1056
        %v1068 = vunpack.c.h.b16 %v1056
        %v1069 = vpack.c.b16 %v1061, %v1061
        %v1070 = vpack.c.b16 %v1062, %v1062
        %v1071 = vpack.c.b16 %v1063, %v1063
        %v1072 = vpack.c.b16 %v1064, %v1064
        %v1073 = vpack.c.b16 %v1065, %v1065
        %v1074 = vpack.c.b16 %v1066, %v1066
        %v1075 = vpack.c.b16 %v1067, %v1067
        %v1076 = vpack.c.b16 %v1068, %v1068
        %v1085 = vlaneseq
        %v1086 = vshrl.u32 %v1085, 7
        %v1087 = vsub.s32 0, %v1086
        %v1088 = vrot.slane %v602, %v1087
        %v1089 = vlaneseq
        %v1090 = vshrl.u32 %v1089, 7
        %v1091 = vsub.s32 0, %v1090
        %v1092 = vrot.slane %v603, %v1091
        %v1093 = vlaneseq
        %v1094 = vshrl.u32 %v1093, 7
        %v1095 = vsub.s32 0, %v1094
        %v1096 = vrot.slane %v604, %v1095
        %v1097 = vlaneseq
        %v1098 = vshrl.u32 %v1097, 7
        %v1099 = vsub.s32 0, %v1098
        %v1100 = vrot.slane %v605, %v1099
        %v1101 = vlaneseq
        %v1102 = vshrl.u32 %v1101, 7
        %v1103 = vsub.s32 0, %v1102
        %v1104 = vrot.slane %v606, %v1103
        %v1105 = vlaneseq
        %v1106 = vshrl.u32 %v1105, 7
        %v1107 = vsub.s32 0, %v1106
        %v1108 = vrot.slane %v607, %v1107
        %v1109 = vlaneseq
        %v1110 = vshrl.u32 %v1109, 7
        %v1111 = vsub.s32 0, %v1110
        %v1112 = vrot.slane %v608, %v1111
        %v1113 = vlaneseq
        %v1114 = vshrl.u32 %v1113, 7
        %v1115 = vsub.s32 0, %v1114
        %v1116 = vrot.slane %v609, %v1115
        %v1126 = vsel %vm612, %v859, 0
        %v1129 = vsel %vm612, %v964, 0
        %1131 = vmatprep.subr.bf16.mxu0 0
        %1132 = vmatpush1.bf16.xpose.msra.mxu0 %v1129
        %1133 = vmatprep.subr.bf16.mxu0 0
        %1134 = vmatpush1.bf16.xpose.msra.mxu0 0
        %1135 = vmatprep.subr.bf16.mxu0 0
        %1136 = vmatpush1.bf16.xpose.msra.mxu0 0
        %1137 = vmatprep.subr.bf16.mxu0 0
        %1138 = vmatpush1.bf16.xpose.msra.mxu0 0
        %1139 = vmatprep.subr.bf16.mxu0 0
        %1140 = vmatpush1.bf16.xpose.msra.mxu0 0
        %1141 = vmatprep.subr.bf16.mxu0 0
        %1142 = vmatpush1.bf16.xpose.msra.mxu0 0
        %1143 = vmatprep.subr.bf16.mxu0 0
        %1144 = vmatpush1.bf16.xpose.msra.mxu0 0
        %1145 = vmatprep.subr.bf16.mxu0 0
        %1146 = vmatpush1.bf16.xpose.msra.mxu0 0
        %1147 = vmatprep.subr.bf16.mxu0 0
        %1148 = vmatpush1.bf16.xpose.msra.mxu0 0
        %1149 = vmatprep.subr.bf16.mxu0 0
        %1150 = vmatpush1.bf16.xpose.msra.mxu0 0
        %1151 = vmatprep.subr.bf16.mxu0 0
        %1152 = vmatpush1.bf16.xpose.msra.mxu0 0
        %1153 = vmatprep.subr.bf16.mxu0 0
        %1154 = vmatpush1.bf16.xpose.msra.mxu0 0
        %1155 = vmatprep.subr.bf16.mxu0 0
        %1156 = vmatpush1.bf16.xpose.msra.mxu0 0
        %1157 = vmatprep.subr.bf16.mxu0 0
        %1158 = vmatpush1.bf16.xpose.msra.mxu0 0
        %1159 = vmatprep.subr.bf16.mxu0 0
        %1160 = vmatpush1.bf16.xpose.msra.mxu0 0
        %1161 = vmatprep.subr.bf16.mxu0 0
        %1162 = vmatpush1.bf16.xpose.msra.mxu0 0
        %1163 = vmatprep.mubr.bf16.mxu0 0
        %1164 = vmatmul.mubr.bf16.gmra.mrb[0].mxu0 %v1126
        %v1165 = vpop.f32.mrb[0].mxu0
        %v1166 = vadd.f32 %v1088, %v1165
        %v1167 = vpop.f32.mrb[0].mxu0
        %v1168 = vpop.f32.mrb[0].mxu0
        %v1169 = vpop.f32.mrb[0].mxu0
        %1170 = vdwg.mxu0
        %v1172 = vsel %vm612, %v860, 0
        %v1175 = vsel %vm612, %v965, 0
        %1177 = vmatprep.subr.bf16.mxu0 0
        %1178 = vmatpush1.bf16.xpose.msra.mxu0 %v1175
        %1179 = vmatprep.subr.bf16.mxu0 0
        %1180 = vmatpush1.bf16.xpose.msra.mxu0 0
        %1181 = vmatprep.subr.bf16.mxu0 0
        %1182 = vmatpush1.bf16.xpose.msra.mxu0 0
        %1183 = vmatprep.subr.bf16.mxu0 0
        %1184 = vmatpush1.bf16.xpose.msra.mxu0 0
        %1185 = vmatprep.subr.bf16.mxu0 0
        %1186 = vmatpush1.bf16.xpose.msra.mxu0 0
        %1187 = vmatprep.subr.bf16.mxu0 0
        %1188 = vmatpush1.bf16.xpose.msra.mxu0 0
        %1189 = vmatprep.subr.bf16.mxu0 0
        %1190 = vmatpush1.bf16.xpose.msra.mxu0 0
        %1191 = vmatprep.subr.bf16.mxu0 0
        %1192 = vmatpush1.bf16.xpose.msra.mxu0 0
        %1193 = vmatprep.subr.bf16.mxu0 0
        %1194 = vmatpush1.bf16.xpose.msra.mxu0 0
        %1195 = vmatprep.subr.bf16.mxu0 0
        %1196 = vmatpush1.bf16.xpose.msra.mxu0 0
        %1197 = vmatprep.subr.bf16.mxu0 0
        %1198 = vmatpush1.bf16.xpose.msra.mxu0 0
        %1199 = vmatprep.subr.bf16.mxu0 0
        %1200 = vmatpush1.bf16.xpose.msra.mxu0 0
        %1201 = vmatprep.subr.bf16.mxu0 0
        %1202 = vmatpush1.bf16.xpose.msra.mxu0 0
        %1203 = vmatprep.subr.bf16.mxu0 0
        %1204 = vmatpush1.bf16.xpose.msra.mxu0 0
        %1205 = vmatprep.subr.bf16.mxu0 0
        %1206 = vmatpush1.bf16.xpose.msra.mxu0 0
        %1207 = vmatprep.subr.bf16.mxu0 0
        %1208 = vmatpush1.bf16.xpose.msra.mxu0 0
        %1209 = vmatprep.mubr.bf16.mxu0 0
        %1210 = vmatmul.mubr.bf16.gmra.mrb[0].mxu0 %v1172
        %v1211 = vpop.f32.mrb[0].mxu0
        %v1212 = vadd.f32 %v1092, %v1211
        %v1213 = vpop.f32.mrb[0].mxu0
        %v1214 = vpop.f32.mrb[0].mxu0
        %v1215 = vpop.f32.mrb[0].mxu0
        %1216 = vdwg.mxu0
        %v1218 = vsel %vm612, %v861, 0
        %v1221 = vsel %vm612, %v966, 0
        %1223 = vmatprep.subr.bf16.mxu0 0
        %1224 = vmatpush1.bf16.xpose.msra.mxu0 %v1221
        %1225 = vmatprep.subr.bf16.mxu0 0
        %1226 = vmatpush1.bf16.xpose.msra.mxu0 0
        %1227 = vmatprep.subr.bf16.mxu0 0
        %1228 = vmatpush1.bf16.xpose.msra.mxu0 0
        %1229 = vmatprep.subr.bf16.mxu0 0
        %1230 = vmatpush1.bf16.xpose.msra.mxu0 0
        %1231 = vmatprep.subr.bf16.mxu0 0
        %1232 = vmatpush1.bf16.xpose.msra.mxu0 0
        %1233 = vmatprep.subr.bf16.mxu0 0
        %1234 = vmatpush1.bf16.xpose.msra.mxu0 0
        %1235 = vmatprep.subr.bf16.mxu0 0
        %1236 = vmatpush1.bf16.xpose.msra.mxu0 0
        %1237 = vmatprep.subr.bf16.mxu0 0
        %1238 = vmatpush1.bf16.xpose.msra.mxu0 0
        %1239 = vmatprep.subr.bf16.mxu0 0
        %1240 = vmatpush1.bf16.xpose.msra.mxu0 0
        %1241 = vmatprep.subr.bf16.mxu0 0
        %1242 = vmatpush1.bf16.xpose.msra.mxu0 0
        %1243 = vmatprep.subr.bf16.mxu0 0
        %1244 = vmatpush1.bf16.xpose.msra.mxu0 0
        %1245 = vmatprep.subr.bf16.mxu0 0
        %1246 = vmatpush1.bf16.xpose.msra.mxu0 0
        %1247 = vmatprep.subr.bf16.mxu0 0
        %1248 = vmatpush1.bf16.xpose.msra.mxu0 0
        %1249 = vmatprep.subr.bf16.mxu0 0
        %1250 = vmatpush1.bf16.xpose.msra.mxu0 0
        %1251 = vmatprep.subr.bf16.mxu0 0
        %1252 = vmatpush1.bf16.xpose.msra.mxu0 0
        %1253 = vmatprep.subr.bf16.mxu0 0
        %1254 = vmatpush1.bf16.xpose.msra.mxu0 0
        %1255 = vmatprep.mubr.bf16.mxu0 0
        %1256 = vmatmul.mubr.bf16.gmra.mrb[0].mxu0 %v1218
        %v1257 = vpop.f32.mrb[0].mxu0
        %v1258 = vadd.f32 %v1096, %v1257
        %v1259 = vpop.f32.mrb[0].mxu0
        %v1260 = vpop.f32.mrb[0].mxu0
        %v1261 = vpop.f32.mrb[0].mxu0
        %1262 = vdwg.mxu0
        %v1264 = vsel %vm612, %v862, 0
        %v1267 = vsel %vm612, %v967, 0
        %1269 = vmatprep.subr.bf16.mxu0 0
        %1270 = vmatpush1.bf16.xpose.msra.mxu0 %v1267
        %1271 = vmatprep.subr.bf16.mxu0 0
        %1272 = vmatpush1.bf16.xpose.msra.mxu0 0
        %1273 = vmatprep.subr.bf16.mxu0 0
        %1274 = vmatpush1.bf16.xpose.msra.mxu0 0
        %1275 = vmatprep.subr.bf16.mxu0 0
        %1276 = vmatpush1.bf16.xpose.msra.mxu0 0
        %1277 = vmatprep.subr.bf16.mxu0 0
        %1278 = vmatpush1.bf16.xpose.msra.mxu0 0
        %1279 = vmatprep.subr.bf16.mxu0 0
        %1280 = vmatpush1.bf16.xpose.msra.mxu0 0
        %1281 = vmatprep.subr.bf16.mxu0 0
        %1282 = vmatpush1.bf16.xpose.msra.mxu0 0
        %1283 = vmatprep.subr.bf16.mxu0 0
        %1284 = vmatpush1.bf16.xpose.msra.mxu0 0
        %1285 = vmatprep.subr.bf16.mxu0 0
        %1286 = vmatpush1.bf16.xpose.msra.mxu0 0
        %1287 = vmatprep.subr.bf16.mxu0 0
        %1288 = vmatpush1.bf16.xpose.msra.mxu0 0
        %1289 = vmatprep.subr.bf16.mxu0 0
        %1290 = vmatpush1.bf16.xpose.msra.mxu0 0
        %1291 = vmatprep.subr.bf16.mxu0 0
        %1292 = vmatpush1.bf16.xpose.msra.mxu0 0
        %1293 = vmatprep.subr.bf16.mxu0 0
        %1294 = vmatpush1.bf16.xpose.msra.mxu0 0
        %1295 = vmatprep.subr.bf16.mxu0 0
        %1296 = vmatpush1.bf16.xpose.msra.mxu0 0
        %1297 = vmatprep.subr.bf16.mxu0 0
        %1298 = vmatpush1.bf16.xpose.msra.mxu0 0
        %1299 = vmatprep.subr.bf16.mxu0 0
        %1300 = vmatpush1.bf16.xpose.msra.mxu0 0
        %1301 = vmatprep.mubr.bf16.mxu0 0
        %1302 = vmatmul.mubr.bf16.gmra.mrb[0].mxu0 %v1264
        %v1303 = vpop.f32.mrb[0].mxu0
        %v1304 = vadd.f32 %v1100, %v1303
        %v1305 = vpop.f32.mrb[0].mxu0
        %v1306 = vpop.f32.mrb[0].mxu0
        %v1307 = vpop.f32.mrb[0].mxu0
        %1308 = vdwg.mxu0
        %v1310 = vsel %vm612, %v863, 0
        %v1313 = vsel %vm612, %v968, 0
        %1315 = vmatprep.subr.bf16.mxu0 0
        %1316 = vmatpush1.bf16.xpose.msra.mxu0 %v1313
        %1317 = vmatprep.subr.bf16.mxu0 0
        %1318 = vmatpush1.bf16.xpose.msra.mxu0 0
        %1319 = vmatprep.subr.bf16.mxu0 0
        %1320 = vmatpush1.bf16.xpose.msra.mxu0 0
        %1321 = vmatprep.subr.bf16.mxu0 0
        %1322 = vmatpush1.bf16.xpose.msra.mxu0 0
        %1323 = vmatprep.subr.bf16.mxu0 0
        %1324 = vmatpush1.bf16.xpose.msra.mxu0 0
        %1325 = vmatprep.subr.bf16.mxu0 0
        %1326 = vmatpush1.bf16.xpose.msra.mxu0 0
        %1327 = vmatprep.subr.bf16.mxu0 0
        %1328 = vmatpush1.bf16.xpose.msra.mxu0 0
        %1329 = vmatprep.subr.bf16.mxu0 0
        %1330 = vmatpush1.bf16.xpose.msra.mxu0 0
        %1331 = vmatprep.subr.bf16.mxu0 0
        %1332 = vmatpush1.bf16.xpose.msra.mxu0 0
        %1333 = vmatprep.subr.bf16.mxu0 0
        %1334 = vmatpush1.bf16.xpose.msra.mxu0 0
        %1335 = vmatprep.subr.bf16.mxu0 0
        %1336 = vmatpush1.bf16.xpose.msra.mxu0 0
        %1337 = vmatprep.subr.bf16.mxu0 0
        %1338 = vmatpush1.bf16.xpose.msra.mxu0 0
        %1339 = vmatprep.subr.bf16.mxu0 0
        %1340 = vmatpush1.bf16.xpose.msra.mxu0 0
        %1341 = vmatprep.subr.bf16.mxu0 0
        %1342 = vmatpush1.bf16.xpose.msra.mxu0 0
        %1343 = vmatprep.subr.bf16.mxu0 0
        %1344 = vmatpush1.bf16.xpose.msra.mxu0 0
        %1345 = vmatprep.subr.bf16.mxu0 0
        %1346 = vmatpush1.bf16.xpose.msra.mxu0 0
        %1347 = vmatprep.mubr.bf16.mxu0 0
        %1348 = vmatmul.mubr.bf16.gmra.mrb[0].mxu0 %v1310
        %v1349 = vpop.f32.mrb[0].mxu0
        %v1350 = vadd.f32 %v1104, %v1349
        %v1351 = vpop.f32.mrb[0].mxu0
        %v1352 = vpop.f32.mrb[0].mxu0
        %v1353 = vpop.f32.mrb[0].mxu0
        %1354 = vdwg.mxu0
        %v1356 = vsel %vm612, %v864, 0
        %v1359 = vsel %vm612, %v969, 0
        %1361 = vmatprep.subr.bf16.mxu0 0
        %1362 = vmatpush1.bf16.xpose.msra.mxu0 %v1359
        %1363 = vmatprep.subr.bf16.mxu0 0
        %1364 = vmatpush1.bf16.xpose.msra.mxu0 0
        %1365 = vmatprep.subr.bf16.mxu0 0
        %1366 = vmatpush1.bf16.xpose.msra.mxu0 0
        %1367 = vmatprep.subr.bf16.mxu0 0
        %1368 = vmatpush1.bf16.xpose.msra.mxu0 0
        %1369 = vmatprep.subr.bf16.mxu0 0
        %1370 = vmatpush1.bf16.xpose.msra.mxu0 0
        %1371 = vmatprep.subr.bf16.mxu0 0
        %1372 = vmatpush1.bf16.xpose.msra.mxu0 0
        %1373 = vmatprep.subr.bf16.mxu0 0
        %1374 = vmatpush1.bf16.xpose.msra.mxu0 0
        %1375 = vmatprep.subr.bf16.mxu0 0
        %1376 = vmatpush1.bf16.xpose.msra.mxu0 0
        %1377 = vmatprep.subr.bf16.mxu0 0
        %1378 = vmatpush1.bf16.xpose.msra.mxu0 0
        %1379 = vmatprep.subr.bf16.mxu0 0
        %1380 = vmatpush1.bf16.xpose.msra.mxu0 0
        %1381 = vmatprep.subr.bf16.mxu0 0
        %1382 = vmatpush1.bf16.xpose.msra.mxu0 0
        %1383 = vmatprep.subr.bf16.mxu0 0
        %1384 = vmatpush1.bf16.xpose.msra.mxu0 0
        %1385 = vmatprep.subr.bf16.mxu0 0
        %1386 = vmatpush1.bf16.xpose.msra.mxu0 0
        %1387 = vmatprep.subr.bf16.mxu0 0
        %1388 = vmatpush1.bf16.xpose.msra.mxu0 0
        %1389 = vmatprep.subr.bf16.mxu0 0
        %1390 = vmatpush1.bf16.xpose.msra.mxu0 0
        %1391 = vmatprep.subr.bf16.mxu0 0
        %1392 = vmatpush1.bf16.xpose.msra.mxu0 0
        %1393 = vmatprep.mubr.bf16.mxu0 0
        %1394 = vmatmul.mubr.bf16.gmra.mrb[0].mxu0 %v1356
        %v1395 = vpop.f32.mrb[0].mxu0
        %v1396 = vadd.f32 %v1108, %v1395
        %v1397 = vpop.f32.mrb[0].mxu0
        %v1398 = vpop.f32.mrb[0].mxu0
        %v1399 = vpop.f32.mrb[0].mxu0
        %1400 = vdwg.mxu0
        %v1402 = vsel %vm612, %v865, 0
        %v1405 = vsel %vm612, %v970, 0
        %1407 = vmatprep.subr.bf16.mxu0 0
        %1408 = vmatpush1.bf16.xpose.msra.mxu0 %v1405
        %1409 = vmatprep.subr.bf16.mxu0 0
        %1410 = vmatpush1.bf16.xpose.msra.mxu0 0
        %1411 = vmatprep.subr.bf16.mxu0 0
        %1412 = vmatpush1.bf16.xpose.msra.mxu0 0
        %1413 = vmatprep.subr.bf16.mxu0 0
        %1414 = vmatpush1.bf16.xpose.msra.mxu0 0
        %1415 = vmatprep.subr.bf16.mxu0 0
        %1416 = vmatpush1.bf16.xpose.msra.mxu0 0
        %1417 = vmatprep.subr.bf16.mxu0 0
        %1418 = vmatpush1.bf16.xpose.msra.mxu0 0
        %1419 = vmatprep.subr.bf16.mxu0 0
        %1420 = vmatpush1.bf16.xpose.msra.mxu0 0
        %1421 = vmatprep.subr.bf16.mxu0 0
        %1422 = vmatpush1.bf16.xpose.msra.mxu0 0
        %1423 = vmatprep.subr.bf16.mxu0 0
        %1424 = vmatpush1.bf16.xpose.msra.mxu0 0
        %1425 = vmatprep.subr.bf16.mxu0 0
        %1426 = vmatpush1.bf16.xpose.msra.mxu0 0
        %1427 = vmatprep.subr.bf16.mxu0 0
        %1428 = vmatpush1.bf16.xpose.msra.mxu0 0
        %1429 = vmatprep.subr.bf16.mxu0 0
        %1430 = vmatpush1.bf16.xpose.msra.mxu0 0
        %1431 = vmatprep.subr.bf16.mxu0 0
        %1432 = vmatpush1.bf16.xpose.msra.mxu0 0
        %1433 = vmatprep.subr.bf16.mxu0 0
        %1434 = vmatpush1.bf16.xpose.msra.mxu0 0
        %1435 = vmatprep.subr.bf16.mxu0 0
        %1436 = vmatpush1.bf16.xpose.msra.mxu0 0
        %1437 = vmatprep.subr.bf16.mxu0 0
        %1438 = vmatpush1.bf16.xpose.msra.mxu0 0
        %1439 = vmatprep.mubr.bf16.mxu0 0
        %1440 = vmatmul.mubr.bf16.gmra.mrb[0].mxu0 %v1402
        %v1441 = vpop.f32.mrb[0].mxu0
        %v1442 = vadd.f32 %v1112, %v1441
        %v1443 = vpop.f32.mrb[0].mxu0
        %v1444 = vpop.f32.mrb[0].mxu0
        %v1445 = vpop.f32.mrb[0].mxu0
        %1446 = vdwg.mxu0
        %v1448 = vsel %vm612, %v866, 0
        %v1451 = vsel %vm612, %v971, 0
        %1453 = vmatprep.subr.bf16.mxu0 0
        %1454 = vmatpush1.bf16.xpose.msra.mxu0 %v1451
        %1455 = vmatprep.subr.bf16.mxu0 0
        %1456 = vmatpush1.bf16.xpose.msra.mxu0 0
        %1457 = vmatprep.subr.bf16.mxu0 0
        %1458 = vmatpush1.bf16.xpose.msra.mxu0 0
        %1459 = vmatprep.subr.bf16.mxu0 0
        %1460 = vmatpush1.bf16.xpose.msra.mxu0 0
        %1461 = vmatprep.subr.bf16.mxu0 0
        %1462 = vmatpush1.bf16.xpose.msra.mxu0 0
        %1463 = vmatprep.subr.bf16.mxu0 0
        %1464 = vmatpush1.bf16.xpose.msra.mxu0 0
        %1465 = vmatprep.subr.bf16.mxu0 0
        %1466 = vmatpush1.bf16.xpose.msra.mxu0 0
        %1467 = vmatprep.subr.bf16.mxu0 0
        %1468 = vmatpush1.bf16.xpose.msra.mxu0 0
        %1469 = vmatprep.subr.bf16.mxu0 0
        %1470 = vmatpush1.bf16.xpose.msra.mxu0 0
        %1471 = vmatprep.subr.bf16.mxu0 0
        %1472 = vmatpush1.bf16.xpose.msra.mxu0 0
        %1473 = vmatprep.subr.bf16.mxu0 0
        %1474 = vmatpush1.bf16.xpose.msra.mxu0 0
        %1475 = vmatprep.subr.bf16.mxu0 0
        %1476 = vmatpush1.bf16.xpose.msra.mxu0 0
        %1477 = vmatprep.subr.bf16.mxu0 0
        %1478 = vmatpush1.bf16.xpose.msra.mxu0 0
        %1479 = vmatprep.subr.bf16.mxu0 0
        %1480 = vmatpush1.bf16.xpose.msra.mxu0 0
        %1481 = vmatprep.subr.bf16.mxu0 0
        %1482 = vmatpush1.bf16.xpose.msra.mxu0 0
        %1483 = vmatprep.subr.bf16.mxu0 0
        %1484 = vmatpush1.bf16.xpose.msra.mxu0 0
        %1485 = vmatprep.mubr.bf16.mxu0 0
        %1486 = vmatmul.mubr.bf16.gmra.mrb[0].mxu0 %v1448
        %v1487 = vpop.f32.mrb[0].mxu0
        %v1488 = vadd.f32 %v1116, %v1487
        %v1489 = vpop.f32.mrb[0].mxu0
        %v1490 = vpop.f32.mrb[0].mxu0
        %v1491 = vpop.f32.mrb[0].mxu0
        %1492 = vdwg.mxu0
        %vm1493 = vcmask 64512
        %v1494 = vsel %vm1493, %v1166, -inf
        %1495 = vmax.xlane.f32.xlu0 %v1494
        %v1496 = vpop.xlane.xlu0 %1495
        %v1497 = vsel %vm1493, %v1212, -inf
        %1498 = vmax.xlane.f32.xlu0 %v1497
        %v1499 = vpop.xlane.xlu0 %1498
        %v1500 = vsel %vm1493, %v1258, -inf
        %1501 = vmax.xlane.f32.xlu0 %v1500
        %v1502 = vpop.xlane.xlu0 %1501
        %v1503 = vsel %vm1493, %v1304, -inf
        %1504 = vmax.xlane.f32.xlu0 %v1503
        %v1505 = vpop.xlane.xlu0 %1504
        %v1506 = vsel %vm1493, %v1350, -inf
        %1507 = vmax.xlane.f32.xlu0 %v1506
        %v1508 = vpop.xlane.xlu0 %1507
        %v1509 = vsel %vm1493, %v1396, -inf
        %1510 = vmax.xlane.f32.xlu0 %v1509
        %v1511 = vpop.xlane.xlu0 %1510
        %v1512 = vsel %vm1493, %v1442, -inf
        %1513 = vmax.xlane.f32.xlu0 %v1512
        %v1514 = vpop.xlane.xlu0 %1513
        %v1515 = vsel %vm1493, %v1488, -inf
        %1516 = vmax.xlane.f32.xlu0 %v1515
        %v1517 = vpop.xlane.xlu0 %1516
        %v1518 = vsub.f32 %v1166, %v1496
        %v1519 = vsub.f32 %v1212, %v1499
        %v1520 = vsub.f32 %v1258, %v1502
        %v1521 = vsub.f32 %v1304, %v1505
        %v1522 = vsub.f32 %v1350, %v1508
        %v1523 = vsub.f32 %v1396, %v1511
        %v1524 = vsub.f32 %v1442, %v1514
        %v1525 = vsub.f32 %v1488, %v1517
        %v1526 = vmul.f32 %v1518, 1.442695
        %v1527 = vpow.pop %v1526
        %v1528 = vmul.f32 %v1519, 1.442695
        %v1529 = vpow.pop %v1528
        %v1530 = vmul.f32 %v1520, 1.442695
        %v1531 = vpow.pop %v1530
        %v1532 = vmul.f32 %v1521, 1.442695
        %v1533 = vpow.pop %v1532
        %v1534 = vmul.f32 %v1522, 1.442695
        %v1535 = vpow.pop %v1534
        %v1536 = vmul.f32 %v1523, 1.442695
        %v1537 = vpow.pop %v1536
        %v1538 = vmul.f32 %v1524, 1.442695
        %v1539 = vpow.pop %v1538
        %v1540 = vmul.f32 %v1525, 1.442695
        %v1541 = vpow.pop %v1540
        %v1542 = vsel %vm1493, %v1527, 0.0
        %1543 = vadd.xlane.f32.xlu0 %v1542
        %v1544 = vpop.xlane.xlu0 %1543
        %v1545 = vsel %vm1493, %v1529, 0.0
        %1546 = vadd.xlane.f32.xlu0 %v1545
        %v1547 = vpop.xlane.xlu0 %1546
        %v1548 = vsel %vm1493, %v1531, 0.0
        %1549 = vadd.xlane.f32.xlu0 %v1548
        %v1550 = vpop.xlane.xlu0 %1549
        %v1551 = vsel %vm1493, %v1533, 0.0
        %1552 = vadd.xlane.f32.xlu0 %v1551
        %v1553 = vpop.xlane.xlu0 %1552
        %v1554 = vsel %vm1493, %v1535, 0.0
        %1555 = vadd.xlane.f32.xlu0 %v1554
        %v1556 = vpop.xlane.xlu0 %1555
        %v1557 = vsel %vm1493, %v1537, 0.0
        %1558 = vadd.xlane.f32.xlu0 %v1557
        %v1559 = vpop.xlane.xlu0 %1558
        %v1560 = vsel %vm1493, %v1539, 0.0
        %1561 = vadd.xlane.f32.xlu0 %v1560
        %v1562 = vpop.xlane.xlu0 %1561
        %v1563 = vsel %vm1493, %v1541, 0.0
        %1564 = vadd.xlane.f32.xlu0 %v1563
        %v1565 = vpop.xlane.xlu0 %1564
        %v1566 = vrcp.pop %v1544
        %v1567 = vrcp.pop %v1547
        %v1568 = vrcp.pop %v1550
        %v1569 = vrcp.pop %v1553
        %v1570 = vrcp.pop %v1556
        %v1571 = vrcp.pop %v1559
        %v1572 = vrcp.pop %v1562
        %v1573 = vrcp.pop %v1565
        %v1574 = vmul.f32 %v1527, %v1566
        %v1575 = vmul.f32 %v1529, %v1567
        %v1576 = vmul.f32 %v1531, %v1568
        %v1577 = vmul.f32 %v1533, %v1569
        %v1578 = vmul.f32 %v1535, %v1570
        %v1579 = vmul.f32 %v1537, %v1571
        %v1580 = vmul.f32 %v1539, %v1572
        %v1581 = vmul.f32 %v1541, %v1573
        %v1582 = vpack.c.bf16 %v1574, %v1574
        %v1583 = vpack.c.bf16 %v1575, %v1575
        %v1584 = vpack.c.bf16 %v1576, %v1576
        %v1585 = vpack.c.bf16 %v1577, %v1577
        %v1586 = vpack.c.bf16 %v1578, %v1578
        %v1587 = vpack.c.bf16 %v1579, %v1579
        %v1588 = vpack.c.bf16 %v1580, %v1580
        %v1589 = vpack.c.bf16 %v1581, %v1581
        %v1591 = vsel %vm1493, %v1582, 0
        %vm1593 = vcmask 1043456
        %v1595 = vsel %vm1593, %v1069, 0
        %1597 = vmatprep.subr.bf16.mxu0 0
        %1598 = vmatpush1.bf16.msra.mxu0 %v1595
        %1599 = vmatprep.subr.bf16.mxu0 0
        %1600 = vmatpush1.bf16.msra.mxu0 0
        %1601 = vmatprep.subr.bf16.mxu0 0
        %1602 = vmatpush1.bf16.msra.mxu0 0
        %1603 = vmatprep.subr.bf16.mxu0 0
        %1604 = vmatpush1.bf16.msra.mxu0 0
        %1605 = vmatprep.subr.bf16.mxu0 0
        %1606 = vmatpush1.bf16.msra.mxu0 0
        %1607 = vmatprep.subr.bf16.mxu0 0
        %1608 = vmatpush1.bf16.msra.mxu0 0
        %1609 = vmatprep.subr.bf16.mxu0 0
        %1610 = vmatpush1.bf16.msra.mxu0 0
        %1611 = vmatprep.subr.bf16.mxu0 0
        %1612 = vmatpush1.bf16.msra.mxu0 0
        %1613 = vmatprep.subr.bf16.mxu0 0
        %1614 = vmatpush1.bf16.msra.mxu0 0
        %1615 = vmatprep.subr.bf16.mxu0 0
        %1616 = vmatpush1.bf16.msra.mxu0 0
        %1617 = vmatprep.subr.bf16.mxu0 0
        %1618 = vmatpush1.bf16.msra.mxu0 0
        %1619 = vmatprep.subr.bf16.mxu0 0
        %1620 = vmatpush1.bf16.msra.mxu0 0
        %1621 = vmatprep.subr.bf16.mxu0 0
        %1622 = vmatpush1.bf16.msra.mxu0 0
        %1623 = vmatprep.subr.bf16.mxu0 0
        %1624 = vmatpush1.bf16.msra.mxu0 0
        %1625 = vmatprep.subr.bf16.mxu0 0
        %1626 = vmatpush1.bf16.msra.mxu0 0
        %1627 = vmatprep.subr.bf16.mxu0 0
        %1628 = vmatpush1.bf16.msra.mxu0 0
        %1629 = vmatprep.mubr.bf16.mxu0 0
        %1630 = vmatmul.mubr.bf16.gmra.mrb[0].mxu0 %v1591
        %v1631 = vpop.f32.mrb[0].mxu0
        %v1632 = vadd.f32 0.0, %v1631
        %v1633 = vpop.f32.mrb[0].mxu0
        %v1634 = vpop.f32.mrb[0].mxu0
        %v1635 = vpop.f32.mrb[0].mxu0
        %1636 = vdwg.mxu0
        %v1638 = vsel %vm1493, %v1583, 0
        %v1641 = vsel %vm1593, %v1070, 0
        %1643 = vmatprep.subr.bf16.mxu0 0
        %1644 = vmatpush1.bf16.msra.mxu0 %v1641
        %1645 = vmatprep.subr.bf16.mxu0 0
        %1646 = vmatpush1.bf16.msra.mxu0 0
        %1647 = vmatprep.subr.bf16.mxu0 0
        %1648 = vmatpush1.bf16.msra.mxu0 0
        %1649 = vmatprep.subr.bf16.mxu0 0
        %1650 = vmatpush1.bf16.msra.mxu0 0
        %1651 = vmatprep.subr.bf16.mxu0 0
        %1652 = vmatpush1.bf16.msra.mxu0 0
        %1653 = vmatprep.subr.bf16.mxu0 0
        %1654 = vmatpush1.bf16.msra.mxu0 0
        %1655 = vmatprep.subr.bf16.mxu0 0
        %1656 = vmatpush1.bf16.msra.mxu0 0
        %1657 = vmatprep.subr.bf16.mxu0 0
        %1658 = vmatpush1.bf16.msra.mxu0 0
        %1659 = vmatprep.subr.bf16.mxu0 0
        %1660 = vmatpush1.bf16.msra.mxu0 0
        %1661 = vmatprep.subr.bf16.mxu0 0
        %1662 = vmatpush1.bf16.msra.mxu0 0
        %1663 = vmatprep.subr.bf16.mxu0 0
        %1664 = vmatpush1.bf16.msra.mxu0 0
        %1665 = vmatprep.subr.bf16.mxu0 0
        %1666 = vmatpush1.bf16.msra.mxu0 0
        %1667 = vmatprep.subr.bf16.mxu0 0
        %1668 = vmatpush1.bf16.msra.mxu0 0
        %1669 = vmatprep.subr.bf16.mxu0 0
        %1670 = vmatpush1.bf16.msra.mxu0 0
        %1671 = vmatprep.subr.bf16.mxu0 0
        %1672 = vmatpush1.bf16.msra.mxu0 0
        %1673 = vmatprep.subr.bf16.mxu0 0
        %1674 = vmatpush1.bf16.msra.mxu0 0
        %1675 = vmatprep.mubr.bf16.mxu0 0
        %1676 = vmatmul.mubr.bf16.gmra.mrb[0].mxu0 %v1638
        %v1677 = vpop.f32.mrb[0].mxu0
        %v1678 = vadd.f32 0.0, %v1677
        %v1679 = vpop.f32.mrb[0].mxu0
        %v1680 = vpop.f32.mrb[0].mxu0
        %v1681 = vpop.f32.mrb[0].mxu0
        %1682 = vdwg.mxu0
        %v1684 = vsel %vm1493, %v1584, 0
        %v1687 = vsel %vm1593, %v1071, 0
        %1689 = vmatprep.subr.bf16.mxu0 0
        %1690 = vmatpush1.bf16.msra.mxu0 %v1687
        %1691 = vmatprep.subr.bf16.mxu0 0
        %1692 = vmatpush1.bf16.msra.mxu0 0
        %1693 = vmatprep.subr.bf16.mxu0 0
        %1694 = vmatpush1.bf16.msra.mxu0 0
        %1695 = vmatprep.subr.bf16.mxu0 0
        %1696 = vmatpush1.bf16.msra.mxu0 0
        %1697 = vmatprep.subr.bf16.mxu0 0
        %1698 = vmatpush1.bf16.msra.mxu0 0
        %1699 = vmatprep.subr.bf16.mxu0 0
        %1700 = vmatpush1.bf16.msra.mxu0 0
        %1701 = vmatprep.subr.bf16.mxu0 0
        %1702 = vmatpush1.bf16.msra.mxu0 0
        %1703 = vmatprep.subr.bf16.mxu0 0
        %1704 = vmatpush1.bf16.msra.mxu0 0
        %1705 = vmatprep.subr.bf16.mxu0 0
        %1706 = vmatpush1.bf16.msra.mxu0 0
        %1707 = vmatprep.subr.bf16.mxu0 0
        %1708 = vmatpush1.bf16.msra.mxu0 0
        %1709 = vmatprep.subr.bf16.mxu0 0
        %1710 = vmatpush1.bf16.msra.mxu0 0
        %1711 = vmatprep.subr.bf16.mxu0 0
        %1712 = vmatpush1.bf16.msra.mxu0 0
        %1713 = vmatprep.subr.bf16.mxu0 0
        %1714 = vmatpush1.bf16.msra.mxu0 0
        %1715 = vmatprep.subr.bf16.mxu0 0
        %1716 = vmatpush1.bf16.msra.mxu0 0
        %1717 = vmatprep.subr.bf16.mxu0 0
        %1718 = vmatpush1.bf16.msra.mxu0 0
        %1719 = vmatprep.subr.bf16.mxu0 0
        %1720 = vmatpush1.bf16.msra.mxu0 0
        %1721 = vmatprep.mubr.bf16.mxu0 0
        %1722 = vmatmul.mubr.bf16.gmra.mrb[0].mxu0 %v1684
        %v1723 = vpop.f32.mrb[0].mxu0
        %v1724 = vadd.f32 0.0, %v1723
        %v1725 = vpop.f32.mrb[0].mxu0
        %v1726 = vpop.f32.mrb[0].mxu0
        %v1727 = vpop.f32.mrb[0].mxu0
        %1728 = vdwg.mxu0
        %v1730 = vsel %vm1493, %v1585, 0
        %v1733 = vsel %vm1593, %v1072, 0
        %1735 = vmatprep.subr.bf16.mxu0 0
        %1736 = vmatpush1.bf16.msra.mxu0 %v1733
        %1737 = vmatprep.subr.bf16.mxu0 0
        %1738 = vmatpush1.bf16.msra.mxu0 0
        %1739 = vmatprep.subr.bf16.mxu0 0
        %1740 = vmatpush1.bf16.msra.mxu0 0
        %1741 = vmatprep.subr.bf16.mxu0 0
        %1742 = vmatpush1.bf16.msra.mxu0 0
        %1743 = vmatprep.subr.bf16.mxu0 0
        %1744 = vmatpush1.bf16.msra.mxu0 0
        %1745 = vmatprep.subr.bf16.mxu0 0
        %1746 = vmatpush1.bf16.msra.mxu0 0
        %1747 = vmatprep.subr.bf16.mxu0 0
        %1748 = vmatpush1.bf16.msra.mxu0 0
        %1749 = vmatprep.subr.bf16.mxu0 0
        %1750 = vmatpush1.bf16.msra.mxu0 0
        %1751 = vmatprep.subr.bf16.mxu0 0
        %1752 = vmatpush1.bf16.msra.mxu0 0
        %1753 = vmatprep.subr.bf16.mxu0 0
        %1754 = vmatpush1.bf16.msra.mxu0 0
        %1755 = vmatprep.subr.bf16.mxu0 0
        %1756 = vmatpush1.bf16.msra.mxu0 0
        %1757 = vmatprep.subr.bf16.mxu0 0
        %1758 = vmatpush1.bf16.msra.mxu0 0
        %1759 = vmatprep.subr.bf16.mxu0 0
        %1760 = vmatpush1.bf16.msra.mxu0 0
        %1761 = vmatprep.subr.bf16.mxu0 0
        %1762 = vmatpush1.bf16.msra.mxu0 0
        %1763 = vmatprep.subr.bf16.mxu0 0
        %1764 = vmatpush1.bf16.msra.mxu0 0
        %1765 = vmatprep.subr.bf16.mxu0 0
        %1766 = vmatpush1.bf16.msra.mxu0 0
        %1767 = vmatprep.mubr.bf16.mxu0 0
        %1768 = vmatmul.mubr.bf16.gmra.mrb[0].mxu0 %v1730
        %v1769 = vpop.f32.mrb[0].mxu0
        %v1770 = vadd.f32 0.0, %v1769
        %v1771 = vpop.f32.mrb[0].mxu0
        %v1772 = vpop.f32.mrb[0].mxu0
        %v1773 = vpop.f32.mrb[0].mxu0
        %1774 = vdwg.mxu0
        %v1776 = vsel %vm1493, %v1586, 0
        %v1779 = vsel %vm1593, %v1073, 0
        %1781 = vmatprep.subr.bf16.mxu0 0
        %1782 = vmatpush1.bf16.msra.mxu0 %v1779
        %1783 = vmatprep.subr.bf16.mxu0 0
        %1784 = vmatpush1.bf16.msra.mxu0 0
        %1785 = vmatprep.subr.bf16.mxu0 0
        %1786 = vmatpush1.bf16.msra.mxu0 0
        %1787 = vmatprep.subr.bf16.mxu0 0
        %1788 = vmatpush1.bf16.msra.mxu0 0
        %1789 = vmatprep.subr.bf16.mxu0 0
        %1790 = vmatpush1.bf16.msra.mxu0 0
        %1791 = vmatprep.subr.bf16.mxu0 0
        %1792 = vmatpush1.bf16.msra.mxu0 0
        %1793 = vmatprep.subr.bf16.mxu0 0
        %1794 = vmatpush1.bf16.msra.mxu0 0
        %1795 = vmatprep.subr.bf16.mxu0 0
        %1796 = vmatpush1.bf16.msra.mxu0 0
        %1797 = vmatprep.subr.bf16.mxu0 0
        %1798 = vmatpush1.bf16.msra.mxu0 0
        %1799 = vmatprep.subr.bf16.mxu0 0
        %1800 = vmatpush1.bf16.msra.mxu0 0
        %1801 = vmatprep.subr.bf16.mxu0 0
        %1802 = vmatpush1.bf16.msra.mxu0 0
        %1803 = vmatprep.subr.bf16.mxu0 0
        %1804 = vmatpush1.bf16.msra.mxu0 0
        %1805 = vmatprep.subr.bf16.mxu0 0
        %1806 = vmatpush1.bf16.msra.mxu0 0
        %1807 = vmatprep.subr.bf16.mxu0 0
        %1808 = vmatpush1.bf16.msra.mxu0 0
        %1809 = vmatprep.subr.bf16.mxu0 0
        %1810 = vmatpush1.bf16.msra.mxu0 0
        %1811 = vmatprep.subr.bf16.mxu0 0
        %1812 = vmatpush1.bf16.msra.mxu0 0
        %1813 = vmatprep.mubr.bf16.mxu0 0
        %1814 = vmatmul.mubr.bf16.gmra.mrb[0].mxu0 %v1776
        %v1815 = vpop.f32.mrb[0].mxu0
        %v1816 = vadd.f32 0.0, %v1815
        %v1817 = vpop.f32.mrb[0].mxu0
        %v1818 = vpop.f32.mrb[0].mxu0
        %v1819 = vpop.f32.mrb[0].mxu0
        %1820 = vdwg.mxu0
        %v1822 = vsel %vm1493, %v1587, 0
        %v1825 = vsel %vm1593, %v1074, 0
        %1827 = vmatprep.subr.bf16.mxu0 0
        %1828 = vmatpush1.bf16.msra.mxu0 %v1825
        %1829 = vmatprep.subr.bf16.mxu0 0
        %1830 = vmatpush1.bf16.msra.mxu0 0
        %1831 = vmatprep.subr.bf16.mxu0 0
        %1832 = vmatpush1.bf16.msra.mxu0 0
        %1833 = vmatprep.subr.bf16.mxu0 0
        %1834 = vmatpush1.bf16.msra.mxu0 0
        %1835 = vmatprep.subr.bf16.mxu0 0
        %1836 = vmatpush1.bf16.msra.mxu0 0
        %1837 = vmatprep.subr.bf16.mxu0 0
        %1838 = vmatpush1.bf16.msra.mxu0 0
        %1839 = vmatprep.subr.bf16.mxu0 0
        %1840 = vmatpush1.bf16.msra.mxu0 0
        %1841 = vmatprep.subr.bf16.mxu0 0
        %1842 = vmatpush1.bf16.msra.mxu0 0
        %1843 = vmatprep.subr.bf16.mxu0 0
        %1844 = vmatpush1.bf16.msra.mxu0 0
        %1845 = vmatprep.subr.bf16.mxu0 0
        %1846 = vmatpush1.bf16.msra.mxu0 0
        %1847 = vmatprep.subr.bf16.mxu0 0
        %1848 = vmatpush1.bf16.msra.mxu0 0
        %1849 = vmatprep.subr.bf16.mxu0 0
        %1850 = vmatpush1.bf16.msra.mxu0 0
        %1851 = vmatprep.subr.bf16.mxu0 0
        %1852 = vmatpush1.bf16.msra.mxu0 0
        %1853 = vmatprep.subr.bf16.mxu0 0
        %1854 = vmatpush1.bf16.msra.mxu0 0
        %1855 = vmatprep.subr.bf16.mxu0 0
        %1856 = vmatpush1.bf16.msra.mxu0 0
        %1857 = vmatprep.subr.bf16.mxu0 0
        %1858 = vmatpush1.bf16.msra.mxu0 0
        %1859 = vmatprep.mubr.bf16.mxu0 0
        %1860 = vmatmul.mubr.bf16.gmra.mrb[0].mxu0 %v1822
        %v1861 = vpop.f32.mrb[0].mxu0
        %v1862 = vadd.f32 0.0, %v1861
        %v1863 = vpop.f32.mrb[0].mxu0
        %v1864 = vpop.f32.mrb[0].mxu0
        %v1865 = vpop.f32.mrb[0].mxu0
        %1866 = vdwg.mxu0
        %v1868 = vsel %vm1493, %v1588, 0
        %v1871 = vsel %vm1593, %v1075, 0
        %1873 = vmatprep.subr.bf16.mxu0 0
        %1874 = vmatpush1.bf16.msra.mxu0 %v1871
        %1875 = vmatprep.subr.bf16.mxu0 0
        %1876 = vmatpush1.bf16.msra.mxu0 0
        %1877 = vmatprep.subr.bf16.mxu0 0
        %1878 = vmatpush1.bf16.msra.mxu0 0
        %1879 = vmatprep.subr.bf16.mxu0 0
        %1880 = vmatpush1.bf16.msra.mxu0 0
        %1881 = vmatprep.subr.bf16.mxu0 0
        %1882 = vmatpush1.bf16.msra.mxu0 0
        %1883 = vmatprep.subr.bf16.mxu0 0
        %1884 = vmatpush1.bf16.msra.mxu0 0
        %1885 = vmatprep.subr.bf16.mxu0 0
        %1886 = vmatpush1.bf16.msra.mxu0 0
        %1887 = vmatprep.subr.bf16.mxu0 0
        %1888 = vmatpush1.bf16.msra.mxu0 0
        %1889 = vmatprep.subr.bf16.mxu0 0
        %1890 = vmatpush1.bf16.msra.mxu0 0
        %1891 = vmatprep.subr.bf16.mxu0 0
        %1892 = vmatpush1.bf16.msra.mxu0 0
        %1893 = vmatprep.subr.bf16.mxu0 0
        %1894 = vmatpush1.bf16.msra.mxu0 0
        %1895 = vmatprep.subr.bf16.mxu0 0
        %1896 = vmatpush1.bf16.msra.mxu0 0
        %1897 = vmatprep.subr.bf16.mxu0 0
        %1898 = vmatpush1.bf16.msra.mxu0 0
        %1899 = vmatprep.subr.bf16.mxu0 0
        %1900 = vmatpush1.bf16.msra.mxu0 0
        %1901 = vmatprep.subr.bf16.mxu0 0
        %1902 = vmatpush1.bf16.msra.mxu0 0
        %1903 = vmatprep.subr.bf16.mxu0 0
        %1904 = vmatpush1.bf16.msra.mxu0 0
        %1905 = vmatprep.mubr.bf16.mxu0 0
        %1906 = vmatmul.mubr.bf16.gmra.mrb[0].mxu0 %v1868
        %v1907 = vpop.f32.mrb[0].mxu0
        %v1908 = vadd.f32 0.0, %v1907
        %v1909 = vpop.f32.mrb[0].mxu0
        %v1910 = vpop.f32.mrb[0].mxu0
        %v1911 = vpop.f32.mrb[0].mxu0
        %1912 = vdwg.mxu0
        %v1914 = vsel %vm1493, %v1589, 0
        %v1917 = vsel %vm1593, %v1076, 0
        %1919 = vmatprep.subr.bf16.mxu0 0
        %1920 = vmatpush1.bf16.msra.mxu0 %v1917
        %1921 = vmatprep.subr.bf16.mxu0 0
        %1922 = vmatpush1.bf16.msra.mxu0 0
        %1923 = vmatprep.subr.bf16.mxu0 0
        %1924 = vmatpush1.bf16.msra.mxu0 0
        %1925 = vmatprep.subr.bf16.mxu0 0
        %1926 = vmatpush1.bf16.msra.mxu0 0
        %1927 = vmatprep.subr.bf16.mxu0 0
        %1928 = vmatpush1.bf16.msra.mxu0 0
        %1929 = vmatprep.subr.bf16.mxu0 0
        %1930 = vmatpush1.bf16.msra.mxu0 0
        %1931 = vmatprep.subr.bf16.mxu0 0
        %1932 = vmatpush1.bf16.msra.mxu0 0
        %1933 = vmatprep.subr.bf16.mxu0 0
        %1934 = vmatpush1.bf16.msra.mxu0 0
        %1935 = vmatprep.subr.bf16.mxu0 0
        %1936 = vmatpush1.bf16.msra.mxu0 0
        %1937 = vmatprep.subr.bf16.mxu0 0
        %1938 = vmatpush1.bf16.msra.mxu0 0
        %1939 = vmatprep.subr.bf16.mxu0 0
        %1940 = vmatpush1.bf16.msra.mxu0 0
        %1941 = vmatprep.subr.bf16.mxu0 0
        %1942 = vmatpush1.bf16.msra.mxu0 0
        %1943 = vmatprep.subr.bf16.mxu0 0
        %1944 = vmatpush1.bf16.msra.mxu0 0
        %1945 = vmatprep.subr.bf16.mxu0 0
        %1946 = vmatpush1.bf16.msra.mxu0 0
        %1947 = vmatprep.subr.bf16.mxu0 0
        %1948 = vmatpush1.bf16.msra.mxu0 0
        %1949 = vmatprep.subr.bf16.mxu0 0
        %1950 = vmatpush1.bf16.msra.mxu0 0
        %1951 = vmatprep.mubr.bf16.mxu0 0
        %1952 = vmatmul.mubr.bf16.gmra.mrb[0].mxu0 %v1914
        %v1953 = vpop.f32.mrb[0].mxu0
        %v1954 = vadd.f32 0.0, %v1953
        %v1955 = vpop.f32.mrb[0].mxu0
        %v1956 = vpop.f32.mrb[0].mxu0
        %v1957 = vpop.f32.mrb[0].mxu0
        %1958 = vdwg.mxu0
        %v1959 = vpack.c.bf16 %v1632, %v1632
        %v1960 = vpack.c.bf16 %v1678, %v1678
        %v1961 = vpack.c.bf16 %v1724, %v1724
        %v1962 = vpack.c.bf16 %v1770, %v1770
        %v1963 = vpack.c.bf16 %v1816, %v1816
        %v1964 = vpack.c.bf16 %v1862, %v1862
        %v1965 = vpack.c.bf16 %v1908, %v1908
        %v1966 = vpack.c.bf16 %v1954, %v1954
        %v1967 = vld [vmem:[#allocation5] sm:$0xf]
        %v1968 = vld [vmem:[#allocation5 + $0x4] sm:$0xf]
        %v1969 = vld [vmem:[#allocation5 + $0x8] sm:$0xf]
        %v1970 = vld [vmem:[#allocation5 + $0xc] sm:$0xf]
        %v1979 = vunpack.c.l.b16 %v1959
        %v1980 = vunpack.c.l.b16 %v1960
        %v1981 = vunpack.c.l.b16 %v1961
        %v1982 = vunpack.c.l.b16 %v1962
        %v1983 = vunpack.c.l.b16 %v1963
        %v1984 = vunpack.c.l.b16 %v1964
        %v1985 = vunpack.c.l.b16 %v1965
        %v1986 = vunpack.c.l.b16 %v1966
        %v1987 = vpack.c.b16 %v1980, %v1979
        %v1988 = vpack.c.b16 %v1982, %v1981
        %v1989 = vpack.c.b16 %v1984, %v1983
        %v1990 = vpack.c.b16 %v1986, %v1985
        %v1995 = vunpack.c.l.b16 %v1967
        %v1996 = vunpack.c.l.b16 %v1968
        %v1997 = vunpack.c.l.b16 %v1969
        %v1998 = vunpack.c.l.b16 %v1970
        %v1999 = vpack.c.b16 %v1996, %v1995
        %v2000 = vpack.c.b16 %v1998, %v1997
        %v2004 = vsel %vm612, %v1987, 0
        %v2007 = vsel %vm612, %v1988, 0
        %v2010 = vsel %vm612, %v1989, 0
        %v2013 = vsel %vm612, %v1990, 0
        %2015 = vmatprep.subr.bf16.mxu0 0
        %2016 = vmatpush1.bf16.msra.mxu0 %v1999
        %2017 = vmatprep.subr.bf16.mxu0 0
        %2018 = vmatpush1.bf16.msra.mxu0 %v2000
        %2019 = vmatprep.subr.bf16.mxu0 0
        %2020 = vmatpush1.bf16.msra.mxu0 0
        %2021 = vmatprep.subr.bf16.mxu0 0
        %2022 = vmatpush1.bf16.msra.mxu0 0
        %2023 = vmatprep.subr.bf16.mxu0 0
        %2024 = vmatpush1.bf16.msra.mxu0 0
        %2025 = vmatprep.subr.bf16.mxu0 0
        %2026 = vmatpush1.bf16.msra.mxu0 0
        %2027 = vmatprep.subr.bf16.mxu0 0
        %2028 = vmatpush1.bf16.msra.mxu0 0
        %2029 = vmatprep.subr.bf16.mxu0 0
        %2030 = vmatpush1.bf16.msra.mxu0 0
        %2031 = vmatprep.subr.bf16.mxu0 0
        %2032 = vmatpush1.bf16.msra.mxu0 0
        %2033 = vmatprep.subr.bf16.mxu0 0
        %2034 = vmatpush1.bf16.msra.mxu0 0
        %2035 = vmatprep.subr.bf16.mxu0 0
        %2036 = vmatpush1.bf16.msra.mxu0 0
        %2037 = vmatprep.subr.bf16.mxu0 0
        %2038 = vmatpush1.bf16.msra.mxu0 0
        %2039 = vmatprep.subr.bf16.mxu0 0
        %2040 = vmatpush1.bf16.msra.mxu0 0
        %2041 = vmatprep.subr.bf16.mxu0 0
        %2042 = vmatpush1.bf16.msra.mxu0 0
        %2043 = vmatprep.subr.bf16.mxu0 0
        %2044 = vmatpush1.bf16.msra.mxu0 0
        %2045 = vmatprep.subr.bf16.mxu0 0
        %2046 = vmatpush1.bf16.msra.mxu0 0
        %2047 = vmatprep.mubr.bf16.mxu0 0
        %2048 = vmatmul.mubr.bf16.gmra.mrb[0].mxu0 %v2004
        %v2049 = vpop.f32.mrb[0].mxu0
        %v2050 = vadd.f32 0.0, %v2049
        %v2051 = vpop.f32.mrb[0].mxu0
        %v2052 = vpop.f32.mrb[0].mxu0
        %v2053 = vadd.f32 0.0, %v2052
        %v2054 = vpop.f32.mrb[0].mxu0
        %2055 = vmatprep.mubr.bf16.mxu0 0
        %2056 = vmatmul.mubr.bf16.gmra.mrb[0].mxu0 %v2007
        %v2057 = vpop.f32.mrb[0].mxu0
        %v2058 = vadd.f32 0.0, %v2057
        %v2059 = vpop.f32.mrb[0].mxu0
        %v2060 = vpop.f32.mrb[0].mxu0
        %v2061 = vadd.f32 0.0, %v2060
        %v2062 = vpop.f32.mrb[0].mxu0
        %2063 = vmatprep.mubr.bf16.mxu0 0
        %2064 = vmatmul.mubr.bf16.gmra.mrb[0].mxu0 %v2010
        %v2065 = vpop.f32.mrb[0].mxu0
        %v2066 = vadd.f32 0.0, %v2065
        %v2067 = vpop.f32.mrb[0].mxu0
        %v2068 = vpop.f32.mrb[0].mxu0
        %v2069 = vadd.f32 0.0, %v2068
        %v2070 = vpop.f32.mrb[0].mxu0
        %2071 = vmatprep.mubr.bf16.mxu0 0
        %2072 = vmatmul.mubr.bf16.gmra.mrb[0].mxu0 %v2013
        %v2073 = vpop.f32.mrb[0].mxu0
        %v2074 = vadd.f32 0.0, %v2073
        %v2075 = vpop.f32.mrb[0].mxu0
        %v2076 = vpop.f32.mrb[0].mxu0
        %v2077 = vadd.f32 0.0, %v2076
        %v2078 = vpop.f32.mrb[0].mxu0
        %2079 = vdwg.mxu0
        %v2080 = vadd.f32 %v738, %v2050
        %v2081 = vadd.f32 %v739, %v2053
        %v2082 = vadd.f32 %v740, %v2058
        %v2083 = vadd.f32 %v741, %v2061
        %v2084 = vadd.f32 %v742, %v2066
        %v2085 = vadd.f32 %v743, %v2069
        %v2086 = vadd.f32 %v744, %v2074
        %v2087 = vadd.f32 %v745, %v2077
        %v2088 = vld [vmem:[%s10] sm:$0x1]
        %v2089 = vld [vmem:[%s11] sm:$0x1]
        %v2090 = vsel %vm612, %v2080, 0.0
        %2091 = vadd.xlane.f32.xlu0 %v2090
        %v2092 = vpop.xlane.xlu0 %2091
        %v2093 = vsel %vm612, %v2081, 0.0
        %2094 = vadd.xlane.f32.xlu0 %v2093
        %v2095 = vpop.xlane.xlu0 %2094
        %v2096 = vsel %vm612, %v2082, 0.0
        %2097 = vadd.xlane.f32.xlu0 %v2096
        %v2098 = vpop.xlane.xlu0 %2097
        %v2099 = vsel %vm612, %v2083, 0.0
        %2100 = vadd.xlane.f32.xlu0 %v2099
        %v2101 = vpop.xlane.xlu0 %2100
        %v2102 = vsel %vm612, %v2084, 0.0
        %2103 = vadd.xlane.f32.xlu0 %v2102
        %v2104 = vpop.xlane.xlu0 %2103
        %v2105 = vsel %vm612, %v2085, 0.0
        %2106 = vadd.xlane.f32.xlu0 %v2105
        %v2107 = vpop.xlane.xlu0 %2106
        %v2108 = vsel %vm612, %v2086, 0.0
        %2109 = vadd.xlane.f32.xlu0 %v2108
        %v2110 = vpop.xlane.xlu0 %2109
        %v2111 = vsel %vm612, %v2087, 0.0
        %2112 = vadd.xlane.f32.xlu0 %v2111
        %v2113 = vpop.xlane.xlu0 %2112
        %v2114 = vmul.f32 %v2092, %v637
        %v2115 = vmul.f32 %v2095, %v637
        %v2116 = vmul.f32 %v2098, %v637
        %v2117 = vmul.f32 %v2101, %v637
        %v2118 = vmul.f32 %v2104, %v637
        %v2119 = vmul.f32 %v2107, %v637
        %v2120 = vmul.f32 %v2110, %v637
        %v2121 = vmul.f32 %v2113, %v637
        %v2122 = vsub.f32 %v2080, %v2114
        %v2123 = vsub.f32 %v2081, %v2115
        %v2124 = vsub.f32 %v2082, %v2116
        %v2125 = vsub.f32 %v2083, %v2117
        %v2126 = vsub.f32 %v2084, %v2118
        %v2127 = vsub.f32 %v2085, %v2119
        %v2128 = vsub.f32 %v2086, %v2120
        %v2129 = vsub.f32 %v2087, %v2121
        %v2130 = vmul.f32 %v2122, %v2122
        %v2131 = vmul.f32 %v2123, %v2123
        %v2132 = vmul.f32 %v2124, %v2124
        %v2133 = vmul.f32 %v2125, %v2125
        %v2134 = vmul.f32 %v2126, %v2126
        %v2135 = vmul.f32 %v2127, %v2127
        %v2136 = vmul.f32 %v2128, %v2128
        %v2137 = vmul.f32 %v2129, %v2129
        %v2138 = vsel %vm612, %v2130, 0.0
        %2139 = vadd.xlane.f32.xlu0 %v2138
        %v2140 = vpop.xlane.xlu0 %2139
        %v2141 = vsel %vm612, %v2131, 0.0
        %2142 = vadd.xlane.f32.xlu0 %v2141
        %v2143 = vpop.xlane.xlu0 %2142
        %v2144 = vsel %vm612, %v2132, 0.0
        %2145 = vadd.xlane.f32.xlu0 %v2144
        %v2146 = vpop.xlane.xlu0 %2145
        %v2147 = vsel %vm612, %v2133, 0.0
        %2148 = vadd.xlane.f32.xlu0 %v2147
        %v2149 = vpop.xlane.xlu0 %2148
        %v2150 = vsel %vm612, %v2134, 0.0
        %2151 = vadd.xlane.f32.xlu0 %v2150
        %v2152 = vpop.xlane.xlu0 %2151
        %v2153 = vsel %vm612, %v2135, 0.0
        %2154 = vadd.xlane.f32.xlu0 %v2153
        %v2155 = vpop.xlane.xlu0 %2154
        %v2156 = vsel %vm612, %v2136, 0.0
        %2157 = vadd.xlane.f32.xlu0 %v2156
        %v2158 = vpop.xlane.xlu0 %2157
        %v2159 = vsel %vm612, %v2137, 0.0
        %2160 = vadd.xlane.f32.xlu0 %v2159
        %v2161 = vpop.xlane.xlu0 %2160
        %v2162 = vmul.f32 %v2140, %v637
        %v2163 = vmul.f32 %v2143, %v637
        %v2164 = vmul.f32 %v2146, %v637
        %v2165 = vmul.f32 %v2149, %v637
        %v2166 = vmul.f32 %v2152, %v637
        %v2167 = vmul.f32 %v2155, %v637
        %v2168 = vmul.f32 %v2158, %v637
        %v2169 = vmul.f32 %v2161, %v637
        %v2170 = vadd.f32 %v2162, 1e-12
        %v2171 = vadd.f32 %v2163, 1e-12
        %v2172 = vadd.f32 %v2164, 1e-12
        %v2173 = vadd.f32 %v2165, 1e-12
        %v2174 = vadd.f32 %v2166, 1e-12
        %v2175 = vadd.f32 %v2167, 1e-12
        %v2176 = vadd.f32 %v2168, 1e-12
        %v2177 = vadd.f32 %v2169, 1e-12
        %v2178 = vrsqrt.pop %v2170
        %v2179 = vrsqrt.pop %v2171
        %v2180 = vrsqrt.pop %v2172
        %v2181 = vrsqrt.pop %v2173
        %v2182 = vrsqrt.pop %v2174
        %v2183 = vrsqrt.pop %v2175
        %v2184 = vrsqrt.pop %v2176
        %v2185 = vrsqrt.pop %v2177
        %v2186 = vmul.f32 %v2122, %v2178
        %v2187 = vmul.f32 %v2123, %v2179
        %v2188 = vmul.f32 %v2124, %v2180
        %v2189 = vmul.f32 %v2125, %v2181
        %v2190 = vmul.f32 %v2126, %v2182
        %v2191 = vmul.f32 %v2127, %v2183
        %v2192 = vmul.f32 %v2128, %v2184
        %v2193 = vmul.f32 %v2129, %v2185
        %v2195 = vlaneseq
        %v2196 = vshrl.u32 %v2195, 7
        %v2197 = vsub.s32 0, %v2196
        %v2198 = vrot.slane %v2088, %v2197
        %v2200 = vmul.f32 %v2186, %v2198
        %v2201 = vmul.f32 %v2187, %v2198
        %v2202 = vmul.f32 %v2188, %v2198
        %v2203 = vmul.f32 %v2189, %v2198
        %v2204 = vmul.f32 %v2190, %v2198
        %v2205 = vmul.f32 %v2191, %v2198
        %v2206 = vmul.f32 %v2192, %v2198
        %v2207 = vmul.f32 %v2193, %v2198
        %v2209 = vlaneseq
        %v2210 = vshrl.u32 %v2209, 7
        %v2211 = vsub.s32 0, %v2210
        %v2212 = vrot.slane %v2089, %v2211
        %v2214 = vadd.f32 %v2200, %v2212
        %v2215 = vadd.f32 %v2201, %v2212
        %v2216 = vadd.f32 %v2202, %v2212
        %v2217 = vadd.f32 %v2203, %v2212
        %v2218 = vadd.f32 %v2204, %v2212
        %v2219 = vadd.f32 %v2205, %v2212
        %v2220 = vadd.f32 %v2206, %v2212
        %v2221 = vadd.f32 %v2207, %v2212
        %v2222 = vpack.c.bf16 %v2215, %v2214
        %v2223 = vpack.c.bf16 %v2217, %v2216
        %v2224 = vpack.c.bf16 %v2219, %v2218
        %v2225 = vpack.c.bf16 %v2221, %v2220
        %v2226 = vld [vmem:[#allocation7] sm:$0xf]
        %v2227 = vld [vmem:[#allocation7 + $0x4] sm:$0xf]
        %v2228 = vld [vmem:[#allocation7 + $0x8] sm:$0xf]
        %v2229 = vld [vmem:[#allocation7 + $0xc] sm:$0xf]
        %v2234 = vunpack.c.l.b16 %v2226
        %v2235 = vunpack.c.l.b16 %v2227
        %v2236 = vunpack.c.l.b16 %v2228
        %v2237 = vunpack.c.l.b16 %v2229
        %v2238 = vpack.c.b16 %v2235, %v2234
        %v2239 = vpack.c.b16 %v2237, %v2236
        %v2243 = vsel %vm612, %v2222, 0
        %v2246 = vsel %vm612, %v2223, 0
        %v2249 = vsel %vm612, %v2224, 0
        %v2252 = vsel %vm612, %v2225, 0
        %2254 = vmatprep.subr.bf16.mxu0 0
        %2255 = vmatpush1.bf16.msra.mxu0 %v2238
        %2256 = vmatprep.subr.bf16.mxu0 0
        %2257 = vmatpush1.bf16.msra.mxu0 %v2239
        %2258 = vmatprep.subr.bf16.mxu0 0
        %2259 = vmatpush1.bf16.msra.mxu0 0
        %2260 = vmatprep.subr.bf16.mxu0 0
        %2261 = vmatpush1.bf16.msra.mxu0 0
        %2262 = vmatprep.subr.bf16.mxu0 0
        %2263 = vmatpush1.bf16.msra.mxu0 0
        %2264 = vmatprep.subr.bf16.mxu0 0
        %2265 = vmatpush1.bf16.msra.mxu0 0
        %2266 = vmatprep.subr.bf16.mxu0 0
        %2267 = vmatpush1.bf16.msra.mxu0 0
        %2268 = vmatprep.subr.bf16.mxu0 0
        %2269 = vmatpush1.bf16.msra.mxu0 0
        %2270 = vmatprep.subr.bf16.mxu0 0
        %2271 = vmatpush1.bf16.msra.mxu0 0
        %2272 = vmatprep.subr.bf16.mxu0 0
        %2273 = vmatpush1.bf16.msra.mxu0 0
        %2274 = vmatprep.subr.bf16.mxu0 0
        %2275 = vmatpush1.bf16.msra.mxu0 0
        %2276 = vmatprep.subr.bf16.mxu0 0
        %2277 = vmatpush1.bf16.msra.mxu0 0
        %2278 = vmatprep.subr.bf16.mxu0 0
        %2279 = vmatpush1.bf16.msra.mxu0 0
        %2280 = vmatprep.subr.bf16.mxu0 0
        %2281 = vmatpush1.bf16.msra.mxu0 0
        %2282 = vmatprep.subr.bf16.mxu0 0
        %2283 = vmatpush1.bf16.msra.mxu0 0
        %2284 = vmatprep.subr.bf16.mxu0 0
        %2285 = vmatpush1.bf16.msra.mxu0 0
        %2286 = vmatprep.mubr.bf16.mxu0 0
        %2287 = vmatmul.mubr.bf16.gmra.mrb[0].mxu0 %v2243
        %v2288 = vpop.f32.mrb[0].mxu0
        %v2289 = vadd.f32 0.0, %v2288
        %v2290 = vpop.f32.mrb[0].mxu0
        %v2291 = vpop.f32.mrb[0].mxu0
        %v2292 = vadd.f32 0.0, %v2291
        %v2293 = vpop.f32.mrb[0].mxu0
        %2294 = vmatprep.mubr.bf16.mxu0 0
        %2295 = vmatmul.mubr.bf16.gmra.mrb[0].mxu0 %v2246
        %v2296 = vpop.f32.mrb[0].mxu0
        %v2297 = vadd.f32 0.0, %v2296
        %v2298 = vpop.f32.mrb[0].mxu0
        %v2299 = vpop.f32.mrb[0].mxu0
        %v2300 = vadd.f32 0.0, %v2299
        %v2301 = vpop.f32.mrb[0].mxu0
        %2302 = vmatprep.mubr.bf16.mxu0 0
        %2303 = vmatmul.mubr.bf16.gmra.mrb[0].mxu0 %v2249
        %v2304 = vpop.f32.mrb[0].mxu0
        %v2305 = vadd.f32 0.0, %v2304
        %v2306 = vpop.f32.mrb[0].mxu0
        %v2307 = vpop.f32.mrb[0].mxu0
        %v2308 = vadd.f32 0.0, %v2307
        %v2309 = vpop.f32.mrb[0].mxu0
        %2310 = vmatprep.mubr.bf16.mxu0 0
        %2311 = vmatmul.mubr.bf16.gmra.mrb[0].mxu0 %v2252
        %v2312 = vpop.f32.mrb[0].mxu0
        %v2313 = vadd.f32 0.0, %v2312
        %v2314 = vpop.f32.mrb[0].mxu0
        %v2315 = vpop.f32.mrb[0].mxu0
        %v2316 = vadd.f32 0.0, %v2315
        %v2317 = vpop.f32.mrb[0].mxu0
        %2318 = vdwg.mxu0
        %v2319 = vmul.f32 %v2289, %v2289
        %v2320 = vmul.f32 %v2292, %v2292
        %v2321 = vmul.f32 %v2297, %v2297
        %v2322 = vmul.f32 %v2300, %v2300
        %v2323 = vmul.f32 %v2305, %v2305
        %v2324 = vmul.f32 %v2308, %v2308
        %v2325 = vmul.f32 %v2313, %v2313
        %v2326 = vmul.f32 %v2316, %v2316
        %v2327 = vmul.f32 %v2289, %v2319
        %v2328 = vmul.f32 %v2292, %v2320
        %v2329 = vmul.f32 %v2297, %v2321
        %v2330 = vmul.f32 %v2300, %v2322
        %v2331 = vmul.f32 %v2305, %v2323
        %v2332 = vmul.f32 %v2308, %v2324
        %v2333 = vmul.f32 %v2313, %v2325
        %v2334 = vmul.f32 %v2316, %v2326
        %v2335 = vmul.f32 %v2327, 0.044715
        %v2336 = vmul.f32 %v2328, 0.044715
        %v2337 = vmul.f32 %v2329, 0.044715
        %v2338 = vmul.f32 %v2330, 0.044715
        %v2339 = vmul.f32 %v2331, 0.044715
        %v2340 = vmul.f32 %v2332, 0.044715
        %v2341 = vmul.f32 %v2333, 0.044715
        %v2342 = vmul.f32 %v2334, 0.044715
        %v2343 = vadd.f32 %v2289, %v2335
        %v2344 = vadd.f32 %v2292, %v2336
        %v2345 = vadd.f32 %v2297, %v2337
        %v2346 = vadd.f32 %v2300, %v2338
        %v2347 = vadd.f32 %v2305, %v2339
        %v2348 = vadd.f32 %v2308, %v2340
        %v2349 = vadd.f32 %v2313, %v2341
        %v2350 = vadd.f32 %v2316, %v2342
        %v2351 = vmul.f32 %v2343, 0.7978846
        %v2352 = vmul.f32 %v2344, 0.7978846
        %v2353 = vmul.f32 %v2345, 0.7978846
        %v2354 = vmul.f32 %v2346, 0.7978846
        %v2355 = vmul.f32 %v2347, 0.7978846
        %v2356 = vmul.f32 %v2348, 0.7978846
        %v2357 = vmul.f32 %v2349, 0.7978846
        %v2358 = vmul.f32 %v2350, 0.7978846
        %v2359 = vtanh.pop %v2351
        %v2360 = vtanh.pop %v2352
        %v2361 = vtanh.pop %v2353
        %v2362 = vtanh.pop %v2354
        %v2363 = vtanh.pop %v2355
        %v2364 = vtanh.pop %v2356
        %v2365 = vtanh.pop %v2357
        %v2366 = vtanh.pop %v2358
        %v2367 = vadd.f32 %v2359, 1.0
        %v2368 = vadd.f32 %v2360, 1.0
        %v2369 = vadd.f32 %v2361, 1.0
        %v2370 = vadd.f32 %v2362, 1.0
        %v2371 = vadd.f32 %v2363, 1.0
        %v2372 = vadd.f32 %v2364, 1.0
        %v2373 = vadd.f32 %v2365, 1.0
        %v2374 = vadd.f32 %v2366, 1.0
        %v2375 = vmul.f32 %v2367, 0.5
        %v2376 = vmul.f32 %v2368, 0.5
        %v2377 = vmul.f32 %v2369, 0.5
        %v2378 = vmul.f32 %v2370, 0.5
        %v2379 = vmul.f32 %v2371, 0.5
        %v2380 = vmul.f32 %v2372, 0.5
        %v2381 = vmul.f32 %v2373, 0.5
        %v2382 = vmul.f32 %v2374, 0.5
        %v2383 = vmul.f32 %v2289, %v2375
        %v2384 = vmul.f32 %v2292, %v2376
        %v2385 = vmul.f32 %v2297, %v2377
        %v2386 = vmul.f32 %v2300, %v2378
        %v2387 = vmul.f32 %v2305, %v2379
        %v2388 = vmul.f32 %v2308, %v2380
        %v2389 = vmul.f32 %v2313, %v2381
        %v2390 = vmul.f32 %v2316, %v2382
        %v2391 = vpack.c.bf16 %v2384, %v2383
        %v2392 = vpack.c.bf16 %v2386, %v2385
        %v2393 = vpack.c.bf16 %v2388, %v2387
        %v2394 = vpack.c.bf16 %v2390, %v2389
        %v2395 = vld [vmem:[%s7] sm:$0xf]
        %v2396 = vld [vmem:[%s7 + $0x4] sm:$0xf]
        %v2397 = vld [vmem:[%s7 + $0x8] sm:$0xf]
        %v2398 = vld [vmem:[%s7 + $0xc] sm:$0xf]
        %v2399 = vld [vmem:[%s7 + $0x10] sm:$0xf]
        %v2400 = vld [vmem:[%s7 + $0x14] sm:$0xf]
        %v2401 = vld [vmem:[%s7 + $0x18] sm:$0xf]
        %v2402 = vld [vmem:[%s7 + $0x1c] sm:$0xf]
        %v2403 = vld [vmem:[%s7 + $0x20] sm:$0xf]
        %v2404 = vld [vmem:[%s7 + $0x24] sm:$0xf]
        %v2405 = vld [vmem:[%s7 + $0x28] sm:$0xf]
        %v2406 = vld [vmem:[%s7 + $0x2c] sm:$0xf]
        %v2407 = vld [vmem:[%s7 + $0x30] sm:$0xf]
        %v2408 = vld [vmem:[%s7 + $0x34] sm:$0xf]
        %v2409 = vld [vmem:[%s7 + $0x38] sm:$0xf]
        %v2410 = vld [vmem:[%s7 + $0x3c] sm:$0xf]
        %v2427 = vunpack.c.l.b16 %v2395
        %v2428 = vunpack.c.l.b16 %v2396
        %v2429 = vunpack.c.l.b16 %v2397
        %v2430 = vunpack.c.l.b16 %v2398
        %v2431 = vunpack.c.l.b16 %v2399
        %v2432 = vunpack.c.l.b16 %v2400
        %v2433 = vunpack.c.l.b16 %v2401
        %v2434 = vunpack.c.l.b16 %v2402
        %v2435 = vunpack.c.l.b16 %v2403
        %v2436 = vunpack.c.l.b16 %v2404
        %v2437 = vunpack.c.l.b16 %v2405
        %v2438 = vunpack.c.l.b16 %v2406
        %v2439 = vunpack.c.l.b16 %v2407
        %v2440 = vunpack.c.l.b16 %v2408
        %v2441 = vunpack.c.l.b16 %v2409
        %v2442 = vunpack.c.l.b16 %v2410
        %v2443 = vpack.c.b16 %v2428, %v2427
        %v2444 = vpack.c.b16 %v2430, %v2429
        %v2445 = vpack.c.b16 %v2432, %v2431
        %v2446 = vpack.c.b16 %v2434, %v2433
        %v2447 = vpack.c.b16 %v2436, %v2435
        %v2448 = vpack.c.b16 %v2438, %v2437
        %v2449 = vpack.c.b16 %v2440, %v2439
        %v2450 = vpack.c.b16 %v2442, %v2441
        %2459 = vmatprep.subr.bf16.mxu0 0
        %2460 = vmatpush1.bf16.msra.mxu0 %v2443
        %2461 = vmatprep.subr.bf16.mxu0 0
        %2462 = vmatpush1.bf16.msra.mxu0 %v2444
        %2463 = vmatprep.subr.bf16.mxu0 0
        %2464 = vmatpush1.bf16.msra.mxu0 %v2445
        %2465 = vmatprep.subr.bf16.mxu0 0
        %2466 = vmatpush1.bf16.msra.mxu0 %v2446
        %2467 = vmatprep.subr.bf16.mxu0 0
        %2468 = vmatpush1.bf16.msra.mxu0 %v2447
        %2469 = vmatprep.subr.bf16.mxu0 0
        %2470 = vmatpush1.bf16.msra.mxu0 %v2448
        %2471 = vmatprep.subr.bf16.mxu0 0
        %2472 = vmatpush1.bf16.msra.mxu0 %v2449
        %2473 = vmatprep.subr.bf16.mxu0 0
        %2474 = vmatpush1.bf16.msra.mxu0 %v2450
        %2475 = vmatprep.subr.bf16.mxu0 0
        %2476 = vmatpush1.bf16.msra.mxu0 0
        %2477 = vmatprep.subr.bf16.mxu0 0
        %2478 = vmatpush1.bf16.msra.mxu0 0
        %2479 = vmatprep.subr.bf16.mxu0 0
        %2480 = vmatpush1.bf16.msra.mxu0 0
        %2481 = vmatprep.subr.bf16.mxu0 0
        %2482 = vmatpush1.bf16.msra.mxu0 0
        %2483 = vmatprep.subr.bf16.mxu0 0
        %2484 = vmatpush1.bf16.msra.mxu0 0
        %2485 = vmatprep.subr.bf16.mxu0 0
        %2486 = vmatpush1.bf16.msra.mxu0 0
        %2487 = vmatprep.subr.bf16.mxu0 0
        %2488 = vmatpush1.bf16.msra.mxu0 0
        %2489 = vmatprep.subr.bf16.mxu0 0
        %2490 = vmatpush1.bf16.msra.mxu0 0
        %2491 = vmatprep.mubr.bf16.mxu0 0
        %2492 = vmatmul.mubr.bf16.gmra.mrb[0].mxu0 %v2391
        %v2493 = vpop.f32.mrb[0].mxu0
        %v2494 = vadd.f32 0.0, %v2493
        %v2495 = vpop.f32.mrb[0].mxu0
        %v2496 = vpop.f32.mrb[0].mxu0
        %v2497 = vadd.f32 0.0, %v2496
        %v2498 = vpop.f32.mrb[0].mxu0
        %2499 = vmatprep.mubr.bf16.mxu0 0
        %2500 = vmatmul.mubr.bf16.gmra.mrb[0].mxu0 %v2392
        %v2501 = vpop.f32.mrb[0].mxu0
        %v2502 = vadd.f32 0.0, %v2501
        %v2503 = vpop.f32.mrb[0].mxu0
        %v2504 = vpop.f32.mrb[0].mxu0
        %v2505 = vadd.f32 0.0, %v2504
        %v2506 = vpop.f32.mrb[0].mxu0
        %2507 = vmatprep.mubr.bf16.mxu0 0
        %2508 = vmatmul.mubr.bf16.gmra.mrb[0].mxu0 %v2393
        %v2509 = vpop.f32.mrb[0].mxu0
        %v2510 = vadd.f32 0.0, %v2509
        %v2511 = vpop.f32.mrb[0].mxu0
        %v2512 = vpop.f32.mrb[0].mxu0
        %v2513 = vadd.f32 0.0, %v2512
        %v2514 = vpop.f32.mrb[0].mxu0
        %2515 = vmatprep.mubr.bf16.mxu0 0
        %2516 = vmatmul.mubr.bf16.gmra.mrb[0].mxu0 %v2394
        %v2517 = vpop.f32.mrb[0].mxu0
        %v2518 = vadd.f32 0.0, %v2517
        %v2519 = vpop.f32.mrb[0].mxu0
        %v2520 = vpop.f32.mrb[0].mxu0
        %v2521 = vadd.f32 0.0, %v2520
        %v2522 = vpop.f32.mrb[0].mxu0
        %2523 = vdwg.mxu0
        %v2524 = vadd.f32 %v2214, %v2494
        %v2525 = vadd.f32 %v2215, %v2497
        %v2526 = vadd.f32 %v2216, %v2502
        %v2527 = vadd.f32 %v2217, %v2505
        %v2528 = vadd.f32 %v2218, %v2510
        %v2529 = vadd.f32 %v2219, %v2513
        %v2530 = vadd.f32 %v2220, %v2518
        %v2531 = vadd.f32 %v2221, %v2521
        %v2532 = vld [vmem:[%s12] sm:$0x1]
        %v2533 = vld [vmem:[%s13] sm:$0x1]
        %v2534 = vsel %vm612, %v2524, 0.0
        %2535 = vadd.xlane.f32.xlu0 %v2534
        %v2536 = vpop.xlane.xlu0 %2535
        %v2537 = vsel %vm612, %v2525, 0.0
        %2538 = vadd.xlane.f32.xlu0 %v2537
        %v2539 = vpop.xlane.xlu0 %2538
        %v2540 = vsel %vm612, %v2526, 0.0
        %2541 = vadd.xlane.f32.xlu0 %v2540
        %v2542 = vpop.xlane.xlu0 %2541
        %v2543 = vsel %vm612, %v2527, 0.0
        %2544 = vadd.xlane.f32.xlu0 %v2543
        %v2545 = vpop.xlane.xlu0 %2544
        %v2546 = vsel %vm612, %v2528, 0.0
        %2547 = vadd.xlane.f32.xlu0 %v2546
        %v2548 = vpop.xlane.xlu0 %2547
        %v2549 = vsel %vm612, %v2529, 0.0
        %2550 = vadd.xlane.f32.xlu0 %v2549
        %v2551 = vpop.xlane.xlu0 %2550
        %v2552 = vsel %vm612, %v2530, 0.0
        %2553 = vadd.xlane.f32.xlu0 %v2552
        %v2554 = vpop.xlane.xlu0 %2553
        %v2555 = vsel %vm612, %v2531, 0.0
        %2556 = vadd.xlane.f32.xlu0 %v2555
        %v2557 = vpop.xlane.xlu0 %2556
        %v2558 = vmul.f32 %v2536, %v637
        %v2559 = vmul.f32 %v2539, %v637
        %v2560 = vmul.f32 %v2542, %v637
        %v2561 = vmul.f32 %v2545, %v637
        %v2562 = vmul.f32 %v2548, %v637
        %v2563 = vmul.f32 %v2551, %v637
        %v2564 = vmul.f32 %v2554, %v637
        %v2565 = vmul.f32 %v2557, %v637
        %v2566 = vsub.f32 %v2524, %v2558
        %v2567 = vsub.f32 %v2525, %v2559
        %v2568 = vsub.f32 %v2526, %v2560
        %v2569 = vsub.f32 %v2527, %v2561
        %v2570 = vsub.f32 %v2528, %v2562
        %v2571 = vsub.f32 %v2529, %v2563
        %v2572 = vsub.f32 %v2530, %v2564
        %v2573 = vsub.f32 %v2531, %v2565
        %v2574 = vmul.f32 %v2566, %v2566
        %v2575 = vmul.f32 %v2567, %v2567
        %v2576 = vmul.f32 %v2568, %v2568
        %v2577 = vmul.f32 %v2569, %v2569
        %v2578 = vmul.f32 %v2570, %v2570
        %v2579 = vmul.f32 %v2571, %v2571
        %v2580 = vmul.f32 %v2572, %v2572
        %v2581 = vmul.f32 %v2573, %v2573
        %v2582 = vsel %vm612, %v2574, 0.0
        %2583 = vadd.xlane.f32.xlu0 %v2582
        %v2584 = vpop.xlane.xlu0 %2583
        %v2585 = vsel %vm612, %v2575, 0.0
        %2586 = vadd.xlane.f32.xlu0 %v2585
        %v2587 = vpop.xlane.xlu0 %2586
        %v2588 = vsel %vm612, %v2576, 0.0
        %2589 = vadd.xlane.f32.xlu0 %v2588
        %v2590 = vpop.xlane.xlu0 %2589
        %v2591 = vsel %vm612, %v2577, 0.0
        %2592 = vadd.xlane.f32.xlu0 %v2591
        %v2593 = vpop.xlane.xlu0 %2592
        %v2594 = vsel %vm612, %v2578, 0.0
        %2595 = vadd.xlane.f32.xlu0 %v2594
        %v2596 = vpop.xlane.xlu0 %2595
        %v2597 = vsel %vm612, %v2579, 0.0
        %2598 = vadd.xlane.f32.xlu0 %v2597
        %v2599 = vpop.xlane.xlu0 %2598
        %v2600 = vsel %vm612, %v2580, 0.0
        %2601 = vadd.xlane.f32.xlu0 %v2600
        %v2602 = vpop.xlane.xlu0 %2601
        %v2603 = vsel %vm612, %v2581, 0.0
        %2604 = vadd.xlane.f32.xlu0 %v2603
        %v2605 = vpop.xlane.xlu0 %2604
        %v2606 = vmul.f32 %v2584, %v637
        %v2607 = vmul.f32 %v2587, %v637
        %v2608 = vmul.f32 %v2590, %v637
        %v2609 = vmul.f32 %v2593, %v637
        %v2610 = vmul.f32 %v2596, %v637
        %v2611 = vmul.f32 %v2599, %v637
        %v2612 = vmul.f32 %v2602, %v637
        %v2613 = vmul.f32 %v2605, %v637
        %v2614 = vadd.f32 %v2606, 1e-12
        %v2615 = vadd.f32 %v2607, 1e-12
        %v2616 = vadd.f32 %v2608, 1e-12
        %v2617 = vadd.f32 %v2609, 1e-12
        %v2618 = vadd.f32 %v2610, 1e-12
        %v2619 = vadd.f32 %v2611, 1e-12
        %v2620 = vadd.f32 %v2612, 1e-12
        %v2621 = vadd.f32 %v2613, 1e-12
        %v2622 = vrsqrt.pop %v2614
        %v2623 = vrsqrt.pop %v2615
        %v2624 = vrsqrt.pop %v2616
        %v2625 = vrsqrt.pop %v2617
        %v2626 = vrsqrt.pop %v2618
        %v2627 = vrsqrt.pop %v2619
        %v2628 = vrsqrt.pop %v2620
        %v2629 = vrsqrt.pop %v2621
        %v2630 = vmul.f32 %v2566, %v2622
        %v2631 = vmul.f32 %v2567, %v2623
        %v2632 = vmul.f32 %v2568, %v2624
        %v2633 = vmul.f32 %v2569, %v2625
        %v2634 = vmul.f32 %v2570, %v2626
        %v2635 = vmul.f32 %v2571, %v2627
        %v2636 = vmul.f32 %v2572, %v2628
        %v2637 = vmul.f32 %v2573, %v2629
        %v2639 = vlaneseq
        %v2640 = vshrl.u32 %v2639, 7
        %v2641 = vsub.s32 0, %v2640
        %v2642 = vrot.slane %v2532, %v2641
        %v2644 = vmul.f32 %v2630, %v2642
        %v2645 = vmul.f32 %v2631, %v2642
        %v2646 = vmul.f32 %v2632, %v2642
        %v2647 = vmul.f32 %v2633, %v2642
        %v2648 = vmul.f32 %v2634, %v2642
        %v2649 = vmul.f32 %v2635, %v2642
        %v2650 = vmul.f32 %v2636, %v2642
        %v2651 = vmul.f32 %v2637, %v2642
        %v2653 = vlaneseq
        %v2654 = vshrl.u32 %v2653, 7
        %v2655 = vsub.s32 0, %v2654
        %v2656 = vrot.slane %v2533, %v2655
        %v2658 = vadd.f32 %v2644, %v2656
        %v2659 = vadd.f32 %v2645, %v2656
        %v2660 = vadd.f32 %v2646, %v2656
        %v2661 = vadd.f32 %v2647, %v2656
        %v2662 = vadd.f32 %v2648, %v2656
        %v2663 = vadd.f32 %v2649, %v2656
        %v2664 = vadd.f32 %v2650, %v2656
        %v2665 = vadd.f32 %v2651, %v2656
        %v2666 = vpack.c.bf16 %v2658, %v2658
        %v2667 = vpack.c.bf16 %v2659, %v2659
        %v2668 = vpack.c.bf16 %v2660, %v2660
        %v2669 = vpack.c.bf16 %v2661, %v2661
        %v2670 = vpack.c.bf16 %v2662, %v2662
        %v2671 = vpack.c.bf16 %v2663, %v2663
        %v2672 = vpack.c.bf16 %v2664, %v2664
        %v2673 = vpack.c.bf16 %v2665, %v2665
        %v2674 = vld [vmem:[%s14] sm:$0xf]
        %v2675 = vld [vmem:[%s14 + $0x4] sm:$0xf]
        %v2676 = vld [vmem:[%s14 + $0x8] sm:$0xf]
        %v2677 = vld [vmem:[%s14 + $0xc] sm:$0xf]
        %v2678 = vld [vmem:[%s15] sm:$0x1]
        %v2680 = vlaneseq
        %v2681 = vshrl.u32 %v2680, 7
        %v2682 = vsub.s32 0, %v2681
        %v2683 = vrot.slane %v2678, %v2682
        %v2693 = vunpack.c.l.b16 %v2666
        %v2694 = vunpack.c.l.b16 %v2667
        %v2695 = vunpack.c.l.b16 %v2668
        %v2696 = vunpack.c.l.b16 %v2669
        %v2697 = vunpack.c.l.b16 %v2670
        %v2698 = vunpack.c.l.b16 %v2671
        %v2699 = vunpack.c.l.b16 %v2672
        %v2700 = vunpack.c.l.b16 %v2673
        %v2701 = vrot.slane %v2694, 7
        %vm2702 = vcmask 1041409
        %v2703 = vsel %vm2702, %v2701, %v2693
        %v2704 = vrot.slane %v2695, 6
        %vm2705 = vcmask 1042434
        %v2706 = vsel %vm2705, %v2704, %v2703
        %v2707 = vrot.slane %v2696, 5
        %vm2708 = vcmask 1043459
        %v2709 = vsel %vm2708, %v2707, %v2706
        %v2710 = vrot.slane %v2697, 4
        %vm2711 = vcmask 1044484
        %v2712 = vsel %vm2711, %v2710, %v2709
        %v2713 = vrot.slane %v2698, 3
        %vm2714 = vcmask 1045509
        %v2715 = vsel %vm2714, %v2713, %v2712
        %v2716 = vrot.slane %v2699, 2
        %vm2717 = vcmask 1046534
        %v2718 = vsel %vm2717, %v2716, %v2715
        %v2719 = vrot.slane %v2700, 1
        %vm2720 = vcmask 1047559
        %v2721 = vsel %vm2720, %v2719, %v2718
        %v2722 = vpack.c.b16 %v2721, %v2721
        %v2727 = vunpack.c.l.b16 %v2674
        %v2728 = vunpack.c.l.b16 %v2675
        %v2729 = vunpack.c.l.b16 %v2676
        %v2730 = vunpack.c.l.b16 %v2677
        %v2731 = vpack.c.b16 %v2728, %v2727
        %v2732 = vpack.c.b16 %v2730, %v2729
        %v2736 = vsel %vm612, %v2722, 0
        %2738 = vmatprep.subr.bf16.mxu0 0
        %2739 = vmatpush1.bf16.msra.mxu0 %v2731
        %2740 = vmatprep.subr.bf16.mxu0 0
        %2741 = vmatpush1.bf16.msra.mxu0 %v2732
        %2742 = vmatprep.subr.bf16.mxu0 0
        %2743 = vmatpush1.bf16.msra.mxu0 0
        %2744 = vmatprep.subr.bf16.mxu0 0
        %2745 = vmatpush1.bf16.msra.mxu0 0
        %2746 = vmatprep.subr.bf16.mxu0 0
        %2747 = vmatpush1.bf16.msra.mxu0 0
        %2748 = vmatprep.subr.bf16.mxu0 0
        %2749 = vmatpush1.bf16.msra.mxu0 0
        %2750 = vmatprep.subr.bf16.mxu0 0
        %2751 = vmatpush1.bf16.msra.mxu0 0
        %2752 = vmatprep.subr.bf16.mxu0 0
        %2753 = vmatpush1.bf16.msra.mxu0 0
        %2754 = vmatprep.subr.bf16.mxu0 0
        %2755 = vmatpush1.bf16.msra.mxu0 0
        %2756 = vmatprep.subr.bf16.mxu0 0
        %2757 = vmatpush1.bf16.msra.mxu0 0
        %2758 = vmatprep.subr.bf16.mxu0 0
        %2759 = vmatpush1.bf16.msra.mxu0 0
        %2760 = vmatprep.subr.bf16.mxu0 0
        %2761 = vmatpush1.bf16.msra.mxu0 0
        %2762 = vmatprep.subr.bf16.mxu0 0
        %2763 = vmatpush1.bf16.msra.mxu0 0
        %2764 = vmatprep.subr.bf16.mxu0 0
        %2765 = vmatpush1.bf16.msra.mxu0 0
        %2766 = vmatprep.subr.bf16.mxu0 0
        %2767 = vmatpush1.bf16.msra.mxu0 0
        %2768 = vmatprep.subr.bf16.mxu0 0
        %2769 = vmatpush1.bf16.msra.mxu0 0
        %2770 = vmatprep.mubr.bf16.mxu0 0
        %2771 = vmatmul.mubr.bf16.gmra.mrb[0].mxu0 %v2736
        %v2772 = vpop.f32.mrb[0].mxu0
        %v2773 = vadd.f32 %v2683, %v2772
        %v2774 = vpop.f32.mrb[0].mxu0
        %v2775 = vpop.f32.mrb[0].mxu0
        %v2776 = vpop.f32.mrb[0].mxu0
        %2777 = vdwg.mxu0
        %2778 = vst [vmem:[%s573] sm:$0xff] %v2773
        %s2779 = sand.u32 %s386, 1
        %s2780 = scalar_lea.sflag [#allocation4], %s2779
        %s2781 = sand.u32 %s386, 1
        %s2782 = smul.addr %s2781, 8
        %s2783 = scalar_lea.vmem [#allocation8], %s2782
        // Predicated region
        $region97: #{tpu_custom_call.1} parent=83 // pred_check
          %p2784 = pneg %p396
        $region98: #{tpu_custom_call.1} parent=83 // pred_check_branch
          %2786 = sbr.rel (%p2784) target = $region100
        $region99: #{tpu_custom_call.1} parent=83 // pred_region
          %s2788 = ssub.s32 128, 128
          %2789 = vsyncadd %s2780, %s2788
          %s2790 = smul.addr %s32, 128
          %s2791 = scalar_lea.hbm %s16, %s2790
          %s2793 = sshll.u32 %s2783, 4
          %s2794 = int_to_ptr.vmem [resolvable:$true] %s2793
          %2796 = dma.vmem_to_hbm [thread:$0]  %s2794, 128, %s2791, %s2780
        $region100: #{tpu_custom_call.1} parent=83 // pred_fallthru
          _
      $region84: #{tpu_custom_call.1} parent=5 // pred_fallthru
        _
      %p2797 = scmp.le.s32.totalorder 2, %s27
      // Predicated region
      $region101: #{tpu_custom_call.1} parent=5 // pred_check
        %p2798 = pneg %p2797
      $region102: #{tpu_custom_call.1} parent=5 // pred_check_branch
        %2800 = sbr.rel (%p2798) target = $region104
      $region103: #{tpu_custom_call.1} parent=5 // pred_region
        %s2801 = ssub.s32 %s27, 2
        // Predicated region
        $region105: #{tpu_custom_call.1} parent=103 // pred_check
          %p2802 = pneg %p402
        $region106: #{tpu_custom_call.1} parent=103 // pred_check_branch
          %2804 = sbr.rel (%p2802) target = $region108
        $region107: #{tpu_custom_call.1} parent=103 // pred_region
          %s2805 = sand.u32 %s387, 1
          %s2806 = scalar_lea.sflag [#allocation4], %s2805
          %s2807 = sand.u32 %s387, 1
          %s2808 = smul.addr %s2807, 8
          %s2809 = scalar_lea.vmem [#allocation8], %s2808
          %2810 = dma.done %s2806, 128
        $region108: #{tpu_custom_call.1} parent=103 // pred_fallthru
          _
      $region104: #{tpu_custom_call.1} parent=5 // pred_fallthru
        _
    $region6: #{tpu_custom_call.1} parent=1 // loop_footer
      %s31 = sadd.s32 1, %s27
    $region7: #{tpu_custom_call.1} parent=1 // loop_footer_branch
      %26 = sbr.rel target = $region3
    $region8: #{tpu_custom_call.1} parent=1 // loop_exit
      _
    %2811 = vsyncpa [#allocation3], 1
    %s2812 = scalar_lea.sflag [#allocation3], 1
    %2813 = vsyncpa %s2812, 1
    %2814 = vsyncpa [#allocation6], 1
    %2815 = vsyncpa [#allocation4], 1
    %s2816 = scalar_lea.sflag [#allocation4], 1
    %2817 = vsyncpa %s2816, 1

// kernel: tpu_custom_call.1
$region0: #{tpu_custom_call.1}
  #allocation0 [shape = 'u32[]', space=smem, size = 0x4, offset = 0x4, fixed_abs, tag = 'smem constant byte address 0x4 - core index']
  #allocation1 [shape = 'u32[144,128]{1,0:T(1,128)}', space=vmem, size = 0x12000, scoped, tag = 'internal scratch']
  %s0 = inlined_call_operand.vmem [shape: bf16[16,8,32], index: 0, kind: input, shape index: {}]
  %s1 = inlined_call_operand.vmem [shape: f32[16,1,8], index: 1, kind: input, shape index: {}]
  %s2 = inlined_call_operand.vmem [shape: bf16[32,32], index: 2, kind: input, shape index: {}]
  %s3 = inlined_call_operand.vmem [shape: bf16[32,32], index: 3, kind: input, shape index: {}]
  %s4 = inlined_call_operand.hbm [shape: bf16[32,32], index: 4, kind: input, shape index: {}]
  %s5 = inlined_call_operand.hbm [shape: bf16[32,32], index: 5, kind: input, shape index: {}]
  %s6 = inlined_call_operand.hbm [shape: bf16[32,128], index: 6, kind: input, shape index: {}]
  %s7 = inlined_call_operand.vmem [shape: bf16[128,32], index: 7, kind: input, shape index: {}]
  %s8 = inlined_call_operand.vmem [shape: f32[1,32], index: 8, kind: input, shape index: {}]
  %s9 = inlined_call_operand.vmem [shape: f32[1,32], index: 9, kind: input, shape index: {}]
  %s10 = inlined_call_operand.vmem [shape: f32[1,32], index: 10, kind: input, shape index: {}]
  %s11 = inlined_call_operand.vmem [shape: f32[1,32], index: 11, kind: input, shape index: {}]
  %s12 = inlined_call_operand.vmem [shape: f32[1,32], index: 12, kind: input, shape index: {}]
  %s13 = inlined_call_operand.vmem [shape: f32[1,32], index: 13, kind: input, shape index: {}]
  %s14 = inlined_call_operand.vmem [shape: bf16[32,128], index: 14, kind: input, shape index: {}]
  %s15 = inlined_call_operand.vmem [shape: f32[1,128], index: 15, kind: input, shape index: {}]
  %s16 = inlined_call_operand.hbm [shape: f32[16,128], index: 16, kind: output, shape index: {}]
  %s17 = sld [smem:[#allocation0]]
  $region109: #{tpu_custom_call.1} parent=0
    _
  %s19 = ssub.s32 1, %s17
  %s20 = scalar_select 0, %s19, %s17
  $region1: #{tpu_custom_call.1} parent=0
    #allocation2 [shape = 'u8[8192]{0}', space=vmem, size = 0x2000, scoped, tag = 'input window, operand 4, single buffered']
    #allocation3 [shape = 's32[2]{0}', space=sflag, size = 0x8, scoped, tag = 'scoped memory for tpu_custom_call.1']
    #allocation4 [shape = 's32[2]{0}', space=sflag, size = 0x8, scoped, tag = 'scoped memory for tpu_custom_call.1']
    #allocation5 [shape = 'u8[8192]{0}', space=vmem, size = 0x2000, scoped, tag = 'input window, operand 5, single buffered']
    #allocation6 [shape = 's32[1]{0}', space=sflag, size = 0x4, scoped, tag = 'scoped memory for tpu_custom_call.1']
    #allocation7 [shape = 'u8[8192]{0}', space=vmem, size = 0x2000, scoped, tag = 'input window, operand 6, single buffered']
    #allocation8 [shape = 'u8[8192]{0}', space=vmem, size = 0x2000, scoped, tag = 'output window, operand 0']
    %21 = vsyncpa [#allocation3], 0
    %22 = vsyncpa [#allocation6], 0
    %23 = vsyncpa [#allocation4], 0
    %s24 = scalar_lea.sflag [#allocation4], 1
    %25 = vsyncpa %s24, 0
    loop: start=0, step=1, limit=4
    $region2: #{tpu_custom_call.1} parent=1 // loop_pre_header
      _
    $region3: #{tpu_custom_call.1} parent=1 // loop_header
      %s27 = sphi 0, %s31
      %p28 = scmp.ge.s32.totalorder %s27, 4
      %s37 = sphi 0, %s39
      %s40 = sphi 0, %s37
      %s41 = sphi 0, %s40
      %s57 = sphi 0, %s41
      %s63 = sphi 0, %s65
      %s66 = sphi 0, %s63
      %s67 = sphi 0, %s66
      %s83 = sphi 0, %s67
      %s87 = sphi 0, %s87
      %s89 = sphi 0, %s87
      %s90 = sphi 0, %s89
      %s104 = sphi 0, %s90
      %s108 = sphi 0, %s108
      %s110 = sphi 0, %s108
      %s111 = sphi 0, %s110
      %s125 = sphi 0, %s111
      %s129 = sphi 0, %s129
      %s131 = sphi 0, %s129
      %s132 = sphi 0, %s131
      %s146 = sphi 0, %s132
      %s150 = sphi 0, %s150
      %s152 = sphi 0, %s150
      %s153 = sphi 0, %s152
      %s167 = sphi 0, %s153
      %s171 = sphi 0, %s171
      %s173 = sphi 0, %s171
      %s174 = sphi 0, %s173
      %s188 = sphi 0, %s174
      %s192 = sphi 0, %s192
      %s194 = sphi 0, %s192
      %s195 = sphi 0, %s194
      %s209 = sphi 0, %s195
      %s213 = sphi 0, %s213
      %s215 = sphi 0, %s213
      %s216 = sphi 0, %s215
      %s230 = sphi 0, %s216
      %s234 = sphi 0, %s234
      %s236 = sphi 0, %s234
      %s237 = sphi 0, %s236
      %s251 = sphi 0, %s237
      %s255 = sphi 0, %s255
      %s257 = sphi 0, %s255
      %s258 = sphi 0, %s257
      %s272 = sphi 0, %s258
      %s276 = sphi 0, %s276
      %s278 = sphi 0, %s276
      %s279 = sphi 0, %s278
      %s293 = sphi 0, %s279
      %s297 = sphi 0, %s297
      %s299 = sphi 0, %s297
      %s300 = sphi 0, %s299
      %s314 = sphi 0, %s300
      %s318 = sphi 0, %s318
      %s320 = sphi 0, %s318
      %s321 = sphi 0, %s320
      %s335 = sphi 0, %s321
      %s339 = sphi 0, %s339
      %s341 = sphi 0, %s339
      %s342 = sphi 0, %s341
      %s356 = sphi 0, %s342
      %s360 = sphi 0, %s360
      %s362 = sphi 0, %s360
      %s363 = sphi 0, %s362
      %s377 = sphi 0, %s363
      %s383 = sphi 0, %s385
      %s386 = sphi 0, %s383
      %s387 = sphi 0, %s386
      %s403 = sphi 0, %s387
    $region4: #{tpu_custom_call.1} parent=1 // loop_header_branch
      %30 = sbr.rel (%p28) target = $region8
    $region5: #{tpu_custom_call.1} parent=1 // loop_body
      %s32 = ssub.s32 %s27, 1
      %s33 = ssub.s32 %s27, 2
      %s34 = sadd.s32 %s27, 1
      %s35 = ssub.s32 %s27, %s34
      %p36 = scmp.eq.s32.totalorder %s35, 0
      %s38 = sadd.s32 %s37, 1
      %s39 = scalar_select %p36, %s37, %s38
      %p42 = pneg %p36
      %p43 = scmp.eq.s32.totalorder %s27, 1
      %p44 = por %p42, %p43
      %p45 = scmp.ne.s32.totalorder %s37, %s40
      %p46 = scmp.eq.s32.totalorder %s27, 0
      %p47 = por %p45, %p46
      %p48 = scmp.ne.s32.totalorder %s37, %s40
      %p49 = scmp.eq.s32.totalorder %s32, 1
      %p50 = por %p48, %p49
      %p51 = scmp.ne.s32.totalorder %s40, %s41
      %p52 = scmp.eq.s32.totalorder %s32, 0
      %p53 = por %p51, %p52
      %p54 = scmp.ne.s32.totalorder %s40, %s41
      %p55 = scmp.eq.s32.totalorder %s33, 1
      %p56 = por %p54, %p55
      %p58 = scmp.ne.s32.totalorder %s41, %s57
      %p59 = scmp.eq.s32.totalorder %s33, 0
      %p60 = por %p58, %p59
      %s61 = ssub.s32 %s27, %s34
      %p62 = scmp.eq.s32.totalorder %s61, 0
      %s64 = sadd.s32 %s63, 1
      %s65 = scalar_select %p62, %s63, %s64
      %p68 = pneg %p62
      %p69 = scmp.eq.s32.totalorder %s27, 1
      %p70 = por %p68, %p69
      %p71 = scmp.ne.s32.totalorder %s63, %s66
      %p72 = scmp.eq.s32.totalorder %s27, 0
      %p73 = por %p71, %p72
      %p74 = scmp.ne.s32.totalorder %s63, %s66
      %p75 = scmp.eq.s32.totalorder %s32, 1
      %p76 = por %p74, %p75
      %p77 = scmp.ne.s32.totalorder %s66, %s67
      %p78 = scmp.eq.s32.totalorder %s32, 0
      %p79 = por %p77, %p78
      %p80 = scmp.ne.s32.totalorder %s66, %s67
      %p81 = scmp.eq.s32.totalorder %s33, 1
      %p82 = por %p80, %p81
      %p84 = scmp.ne.s32.totalorder %s67, %s83
      %p85 = scmp.eq.s32.totalorder %s33, 0
      %p86 = por %p84, %p85
      %s88 = sadd.s32 %s87, 1
      %p91 = scmp.eq.s32.totalorder %s27, 1
      %p92 = scmp.ne.s32.totalorder %s87, %s89
      %p93 = scmp.eq.s32.totalorder %s27, 0
      %p94 = por %p92, %p93
      %p95 = scmp.ne.s32.totalorder %s87, %s89
      %p96 = scmp.eq.s32.totalorder %s32, 1
      %p97 = por %p95, %p96
      %p98 = scmp.ne.s32.totalorder %s89, %s90
      %p99 = scmp.eq.s32.totalorder %s32, 0
      %p100 = por %p98, %p99
      %p101 = scmp.ne.s32.totalorder %s89, %s90
      %p102 = scmp.eq.s32.totalorder %s33, 1
      %p103 = por %p101, %p102
      %p105 = scmp.ne.s32.totalorder %s90, %s104
      %p106 = scmp.eq.s32.totalorder %s33, 0
      %p107 = por %p105, %p106
      %s109 = sadd.s32 %s108, 1
      %p112 = scmp.eq.s32.totalorder %s27, 1
      %p113 = scmp.ne.s32.totalorder %s108, %s110
      %p114 = scmp.eq.s32.totalorder %s27, 0
      %p115 = por %p113, %p114
      %p116 = scmp.ne.s32.totalorder %s108, %s110
      %p117 = scmp.eq.s32.totalorder %s32, 1
      %p118 = por %p116, %p117
      %p119 = scmp.ne.s32.totalorder %s110, %s111
      %p120 = scmp.eq.s32.totalorder %s32, 0
      %p121 = por %p119, %p120
      %p122 = scmp.ne.s32.totalorder %s110, %s111
      %p123 = scmp.eq.s32.totalorder %s33, 1
      %p124 = por %p122, %p123
      %p126 = scmp.ne.s32.totalorder %s111, %s125
      %p127 = scmp.eq.s32.totalorder %s33, 0
      %p128 = por %p126, %p127
      %s130 = sadd.s32 %s129, 1
      %p133 = scmp.eq.s32.totalorder %s27, 1
      %p134 = scmp.ne.s32.totalorder %s129, %s131
      %p135 = scmp.eq.s32.totalorder %s27, 0
      %p136 = por %p134, %p135
      %p137 = scmp.ne.s32.totalorder %s129, %s131
      %p138 = scmp.eq.s32.totalorder %s32, 1
      %p139 = por %p137, %p138
      %p140 = scmp.ne.s32.totalorder %s131, %s132
      %p141 = scmp.eq.s32.totalorder %s32, 0
      %p142 = por %p140, %p141
      %p143 = scmp.ne.s32.totalorder %s131, %s132
      %p144 = scmp.eq.s32.totalorder %s33, 1
      %p145 = por %p143, %p144
      %p147 = scmp.ne.s32.totalorder %s132, %s146
      %p148 = scmp.eq.s32.totalorder %s33, 0
      %p149 = por %p147, %p148
      %s151 = sadd.s32 %s150, 1
      %p154 = scmp.eq.s32.totalorder %s27, 1
      %p155 = scmp.ne.s32.totalorder %s150, %s152
      %p156 = scmp.eq.s32.totalorder %s27, 0
      %p157 = por %p155, %p156
      %p158 = scmp.ne.s32.totalorder %s150, %s152
      %p159 = scmp.eq.s32.totalorder %s32, 1
      %p160 = por %p158, %p159
      %p161 = scmp.ne.s32.totalorder %s152, %s153
      %p162 = scmp.eq.s32.totalorder %s32, 0
      %p163 = por %p161, %p162
      %p164 = scmp.ne.s32.totalorder %s152, %s153
      %p165 = scmp.eq.s32.totalorder %s33, 1
      %p166 = por %p164, %p165
      %p168 = scmp.ne.s32.totalorder %s153, %s167
      %p169 = scmp.eq.s32.totalorder %s33, 0
      %p170 = por %p168, %p169
      %s172 = sadd.s32 %s171, 1
      %p175 = scmp.eq.s32.totalorder %s27, 1
      %p176 = scmp.ne.s32.totalorder %s171, %s173
      %p177 = scmp.eq.s32.totalorder %s27, 0
      %p178 = por %p176, %p177
      %p179 = scmp.ne.s32.totalorder %s171, %s173
      %p180 = scmp.eq.s32.totalorder %s32, 1
      %p181 = por %p179, %p180
      %p182 = scmp.ne.s32.totalorder %s173, %s174
      %p183 = scmp.eq.s32.totalorder %s32, 0
      %p184 = por %p182, %p183
      %p185 = scmp.ne.s32.totalorder %s173, %s174
      %p186 = scmp.eq.s32.totalorder %s33, 1
      %p187 = por %p185, %p186
      %p189 = scmp.ne.s32.totalorder %s174, %s188
      %p190 = scmp.eq.s32.totalorder %s33, 0
      %p191 = por %p189, %p190
      %s193 = sadd.s32 %s192, 1
      %p196 = scmp.eq.s32.totalorder %s27, 1
      %p197 = scmp.ne.s32.totalorder %s192, %s194
      %p198 = scmp.eq.s32.totalorder %s27, 0
      %p199 = por %p197, %p198
      %p200 = scmp.ne.s32.totalorder %s192, %s194
      %p201 = scmp.eq.s32.totalorder %s32, 1
      %p202 = por %p200, %p201
      %p203 = scmp.ne.s32.totalorder %s194, %s195
      %p204 = scmp.eq.s32.totalorder %s32, 0
      %p205 = por %p203, %p204
      %p206 = scmp.ne.s32.totalorder %s194, %s195
      %p207 = scmp.eq.s32.totalorder %s33, 1
      %p208 = por %p206, %p207
      %p210 = scmp.ne.s32.totalorder %s195, %s209
      %p211 = scmp.eq.s32.totalorder %s33, 0
      %p212 = por %p210, %p211
      %s214 = sadd.s32 %s213, 1
      %p217 = scmp.eq.s32.totalorder %s27, 1
      %p218 = scmp.ne.s32.totalorder %s213, %s215
      %p219 = scmp.eq.s32.totalorder %s27, 0
      %p220 = por %p218, %p219
      %p221 = scmp.ne.s32.totalorder %s213, %s215
      %p222 = scmp.eq.s32.totalorder %s32, 1
      %p223 = por %p221, %p222
      %p224 = scmp.ne.s32.totalorder %s215, %s216
      %p225 = scmp.eq.s32.totalorder %s32, 0
      %p226 = por %p224, %p225
      %p227 = scmp.ne.s32.totalorder %s215, %s216
      %p228 = scmp.eq.s32.totalorder %s33, 1
      %p229 = por %p227, %p228
      %p231 = scmp.ne.s32.totalorder %s216, %s230
      %p232 = scmp.eq.s32.totalorder %s33, 0
      %p233 = por %p231, %p232
      %s235 = sadd.s32 %s234, 1
      %p238 = scmp.eq.s32.totalorder %s27, 1
      %p239 = scmp.ne.s32.totalorder %s234, %s236
      %p240 = scmp.eq.s32.totalorder %s27, 0
      %p241 = por %p239, %p240
      %p242 = scmp.ne.s32.totalorder %s234, %s236
      %p243 = scmp.eq.s32.totalorder %s32, 1
      %p244 = por %p242, %p243
      %p245 = scmp.ne.s32.totalorder %s236, %s237
      %p246 = scmp.eq.s32.totalorder %s32, 0
      %p247 = por %p245, %p246
      %p248 = scmp.ne.s32.totalorder %s236, %s237
      %p249 = scmp.eq.s32.totalorder %s33, 1
      %p250 = por %p248, %p249
      %p252 = scmp.ne.s32.totalorder %s237, %s251
      %p253 = scmp.eq.s32.totalorder %s33, 0
      %p254 = por %p252, %p253
      %s256 = sadd.s32 %s255, 1
      %p259 = scmp.eq.s32.totalorder %s27, 1
      %p260 = scmp.ne.s32.totalorder %s255, %s257
      %p261 = scmp.eq.s32.totalorder %s27, 0
      %p262 = por %p260, %p261
      %p263 = scmp.ne.s32.totalorder %s255, %s257
      %p264 = scmp.eq.s32.totalorder %s32, 1
      %p265 = por %p263, %p264
      %p266 = scmp.ne.s32.totalorder %s257, %s258
      %p267 = scmp.eq.s32.totalorder %s32, 0
      %p268 = por %p266, %p267
      %p269 = scmp.ne.s32.totalorder %s257, %s258
      %p270 = scmp.eq.s32.totalorder %s33, 1
      %p271 = por %p269, %p270
      %p273 = scmp.ne.s32.totalorder %s258, %s272
      %p274 = scmp.eq.s32.totalorder %s33, 0
      %p275 = por %p273, %p274
      %s277 = sadd.s32 %s276, 1
      %p280 = scmp.eq.s32.totalorder %s27, 1
      %p281 = scmp.ne.s32.totalorder %s276, %s278
      %p282 = scmp.eq.s32.totalorder %s27, 0
      %p283 = por %p281, %p282
      %p284 = scmp.ne.s32.totalorder %s276, %s278
      %p285 = scmp.eq.s32.totalorder %s32, 1
      %p286 = por %p284, %p285
      %p287 = scmp.ne.s32.totalorder %s278, %s279
      %p288 = scmp.eq.s32.totalorder %s32, 0
      %p289 = por %p287, %p288
      %p290 = scmp.ne.s32.totalorder %s278, %s279
      %p291 = scmp.eq.s32.totalorder %s33, 1
      %p292 = por %p290, %p291
      %p294 = scmp.ne.s32.totalorder %s279, %s293
      %p295 = scmp.eq.s32.totalorder %s33, 0
      %p296 = por %p294, %p295
      %s298 = sadd.s32 %s297, 1
      %p301 = scmp.eq.s32.totalorder %s27, 1
      %p302 = scmp.ne.s32.totalorder %s297, %s299
      %p303 = scmp.eq.s32.totalorder %s27, 0
      %p304 = por %p302, %p303
      %p305 = scmp.ne.s32.totalorder %s297, %s299
      %p306 = scmp.eq.s32.totalorder %s32, 1
      %p307 = por %p305, %p306
      %p308 = scmp.ne.s32.totalorder %s299, %s300
      %p309 = scmp.eq.s32.totalorder %s32, 0
      %p310 = por %p308, %p309
      %p311 = scmp.ne.s32.totalorder %s299, %s300
      %p312 = scmp.eq.s32.totalorder %s33, 1
      %p313 = por %p311, %p312
      %p315 = scmp.ne.s32.totalorder %s300, %s314
      %p316 = scmp.eq.s32.totalorder %s33, 0
      %p317 = por %p315, %p316
      %s319 = sadd.s32 %s318, 1
      %p322 = scmp.eq.s32.totalorder %s27, 1
      %p323 = scmp.ne.s32.totalorder %s318, %s320
      %p324 = scmp.eq.s32.totalorder %s27, 0
      %p325 = por %p323, %p324
      %p326 = scmp.ne.s32.totalorder %s318, %s320
      %p327 = scmp.eq.s32.totalorder %s32, 1
      %p328 = por %p326, %p327
      %p329 = scmp.ne.s32.totalorder %s320, %s321
      %p330 = scmp.eq.s32.totalorder %s32, 0
      %p331 = por %p329, %p330
      %p332 = scmp.ne.s32.totalorder %s320, %s321
      %p333 = scmp.eq.s32.totalorder %s33, 1
      %p334 = por %p332, %p333
      %p336 = scmp.ne.s32.totalorder %s321, %s335
      %p337 = scmp.eq.s32.totalorder %s33, 0
      %p338 = por %p336, %p337
      %s340 = sadd.s32 %s339, 1
      %p343 = scmp.eq.s32.totalorder %s27, 1
      %p344 = scmp.ne.s32.totalorder %s339, %s341
      %p345 = scmp.eq.s32.totalorder %s27, 0
      %p346 = por %p344, %p345
      %p347 = scmp.ne.s32.totalorder %s339, %s341
      %p348 = scmp.eq.s32.totalorder %s32, 1
      %p349 = por %p347, %p348
      %p350 = scmp.ne.s32.totalorder %s341, %s342
      %p351 = scmp.eq.s32.totalorder %s32, 0
      %p352 = por %p350, %p351
      %p353 = scmp.ne.s32.totalorder %s341, %s342
      %p354 = scmp.eq.s32.totalorder %s33, 1
      %p355 = por %p353, %p354
      %p357 = scmp.ne.s32.totalorder %s342, %s356
      %p358 = scmp.eq.s32.totalorder %s33, 0
      %p359 = por %p357, %p358
      %s361 = sadd.s32 %s360, 1
      %p364 = scmp.eq.s32.totalorder %s27, 1
      %p365 = scmp.ne.s32.totalorder %s360, %s362
      %p366 = scmp.eq.s32.totalorder %s27, 0
      %p367 = por %p365, %p366
      %p368 = scmp.ne.s32.totalorder %s360, %s362
      %p369 = scmp.eq.s32.totalorder %s32, 1
      %p370 = por %p368, %p369
      %p371 = scmp.ne.s32.totalorder %s362, %s363
      %p372 = scmp.eq.s32.totalorder %s32, 0
      %p373 = por %p371, %p372
      %p374 = scmp.ne.s32.totalorder %s362, %s363
      %p375 = scmp.eq.s32.totalorder %s33, 1
      %p376 = por %p374, %p375
      %p378 = scmp.ne.s32.totalorder %s363, %s377
      %p379 = scmp.eq.s32.totalorder %s33, 0
      %p380 = por %p378, %p379
      %s381 = ssub.s32 %s27, %s34
      %p382 = scmp.eq.s32.totalorder %s381, 0
      %s384 = sadd.s32 %s383, 1
      %s385 = scalar_select %p382, %s383, %s384
      %p388 = pneg %p382
      %p389 = scmp.eq.s32.totalorder %s27, 1
      %p390 = por %p388, %p389
      %p391 = scmp.ne.s32.totalorder %s383, %s386
      %p392 = scmp.eq.s32.totalorder %s27, 0
      %p393 = por %p391, %p392
      %p394 = scmp.ne.s32.totalorder %s383, %s386
      %p395 = scmp.eq.s32.totalorder %s32, 1
      %p396 = por %p394, %p395
      %p397 = scmp.ne.s32.totalorder %s386, %s387
      %p398 = scmp.eq.s32.totalorder %s32, 0
      %p399 = por %p397, %p398
      %p400 = scmp.ne.s32.totalorder %s386, %s387
      %p401 = scmp.eq.s32.totalorder %s33, 1
      %p402 = por %p400, %p401
      %p404 = scmp.ne.s32.totalorder %s387, %s403
      %p405 = scmp.eq.s32.totalorder %s33, 0
      %p406 = por %p404, %p405
      %p407 = scmp.le.s32.totalorder 1, %s27
      %p408 = scmp.lt.s32.totalorder %s27, 3
      %p409 = pnand %p407, %p408
      %p410 = pneg %p409
      // Predicated region
      $region9: #{tpu_custom_call.1} parent=5 // pred_check
        _
      $region10: #{tpu_custom_call.1} parent=5 // pred_check_branch
        %412 = sbr.rel (%p409) target = $region12
      $region11: #{tpu_custom_call.1} parent=5 // pred_region
        %s413 = ssub.s32 %s27, 1
        // Predicated region
        $region13: #{tpu_custom_call.1} parent=11 // pred_check
          %p414 = pneg %p100
        $region14: #{tpu_custom_call.1} parent=11 // pred_check_branch
          %416 = sbr.rel (%p414) target = $region16
        $region15: #{tpu_custom_call.1} parent=11 // pred_region
          _
        $region16: #{tpu_custom_call.1} parent=11 // pred_fallthru
          _
        // Predicated region
        $region17: #{tpu_custom_call.1} parent=11 // pred_check
          %p417 = pneg %p121
        $region18: #{tpu_custom_call.1} parent=11 // pred_check_branch
          %419 = sbr.rel (%p417) target = $region20
        $region19: #{tpu_custom_call.1} parent=11 // pred_region
          _
        $region20: #{tpu_custom_call.1} parent=11 // pred_fallthru
          _
        // Predicated region
        $region21: #{tpu_custom_call.1} parent=11 // pred_check
          %p420 = pneg %p142
        $region22: #{tpu_custom_call.1} parent=11 // pred_check_branch
          %422 = sbr.rel (%p420) target = $region24
        $region23: #{tpu_custom_call.1} parent=11 // pred_region
          %s424 = ssub.s32 256, 256
          %425 = vsyncadd [#allocation3], %s424
          %s426 = sshll.u32 [#allocation2], 4
          %s427 = int_to_ptr.vmem [resolvable:$true] %s426
          %432 = dma.hbm_to_vmem [thread:$0]  %s4, 256, %s427, [#allocation3], 64, 64, 4
        $region24: #{tpu_custom_call.1} parent=11 // pred_fallthru
          _
        // Predicated region
        $region25: #{tpu_custom_call.1} parent=11 // pred_check
          %p433 = pneg %p163
        $region26: #{tpu_custom_call.1} parent=11 // pred_check_branch
          %435 = sbr.rel (%p433) target = $region28
        $region27: #{tpu_custom_call.1} parent=11 // pred_region
          %s437 = ssub.s32 256, 256
          %438 = vsyncadd [#allocation6], %s437
          %s439 = sshll.u32 [#allocation5], 4
          %s440 = int_to_ptr.vmem [resolvable:$true] %s439
          %445 = dma.hbm_to_vmem [thread:$0]  %s5, 256, %s440, [#allocation6], 64, 64, 4
        $region28: #{tpu_custom_call.1} parent=11 // pred_fallthru
          _
        // Predicated region
        $region29: #{tpu_custom_call.1} parent=11 // pred_check
          %p446 = pneg %p184
        $region30: #{tpu_custom_call.1} parent=11 // pred_check_branch
          %448 = sbr.rel (%p446) target = $region32
        $region31: #{tpu_custom_call.1} parent=11 // pred_region
          %s450 = ssub.s32 256, 256
          %451 = vsyncadd [#allocation6], %s450
          %s452 = sshll.u32 [#allocation7], 4
          %s453 = int_to_ptr.vmem [resolvable:$true] %s452
          %458 = dma.hbm_to_vmem [thread:$0]  %s6, 256, %s453, [#allocation6], 64, 64, 4
        $region32: #{tpu_custom_call.1} parent=11 // pred_fallthru
          _
        // Predicated region
        $region33: #{tpu_custom_call.1} parent=11 // pred_check
          %p459 = pneg %p205
        $region34: #{tpu_custom_call.1} parent=11 // pred_check_branch
          %461 = sbr.rel (%p459) target = $region36
        $region35: #{tpu_custom_call.1} parent=11 // pred_region
          _
        $region36: #{tpu_custom_call.1} parent=11 // pred_fallthru
          _
        // Predicated region
        $region37: #{tpu_custom_call.1} parent=11 // pred_check
          %p462 = pneg %p226
        $region38: #{tpu_custom_call.1} parent=11 // pred_check_branch
          %464 = sbr.rel (%p462) target = $region40
        $region39: #{tpu_custom_call.1} parent=11 // pred_region
          _
        $region40: #{tpu_custom_call.1} parent=11 // pred_fallthru
          _
        // Predicated region
        $region41: #{tpu_custom_call.1} parent=11 // pred_check
          %p465 = pneg %p247
        $region42: #{tpu_custom_call.1} parent=11 // pred_check_branch
          %467 = sbr.rel (%p465) target = $region44
        $region43: #{tpu_custom_call.1} parent=11 // pred_region
          _
        $region44: #{tpu_custom_call.1} parent=11 // pred_fallthru
          _
        // Predicated region
        $region45: #{tpu_custom_call.1} parent=11 // pred_check
          %p468 = pneg %p268
        $region46: #{tpu_custom_call.1} parent=11 // pred_check_branch
          %470 = sbr.rel (%p468) target = $region48
        $region47: #{tpu_custom_call.1} parent=11 // pred_region
          _
        $region48: #{tpu_custom_call.1} parent=11 // pred_fallthru
          _
        // Predicated region
        $region49: #{tpu_custom_call.1} parent=11 // pred_check
          %p471 = pneg %p289
        $region50: #{tpu_custom_call.1} parent=11 // pred_check_branch
          %473 = sbr.rel (%p471) target = $region52
        $region51: #{tpu_custom_call.1} parent=11 // pred_region
          _
        $region52: #{tpu_custom_call.1} parent=11 // pred_fallthru
          _
        // Predicated region
        $region53: #{tpu_custom_call.1} parent=11 // pred_check
          %p474 = pneg %p310
        $region54: #{tpu_custom_call.1} parent=11 // pred_check_branch
          %476 = sbr.rel (%p474) target = $region56
        $region55: #{tpu_custom_call.1} parent=11 // pred_region
          _
        $region56: #{tpu_custom_call.1} parent=11 // pred_fallthru
          _
        // Predicated region
        $region57: #{tpu_custom_call.1} parent=11 // pred_check
          %p477 = pneg %p331
        $region58: #{tpu_custom_call.1} parent=11 // pred_check_branch
          %479 = sbr.rel (%p477) target = $region60
        $region59: #{tpu_custom_call.1} parent=11 // pred_region
          _
        $region60: #{tpu_custom_call.1} parent=11 // pred_fallthru
          _
        // Predicated region
        $region61: #{tpu_custom_call.1} parent=11 // pred_check
          %p480 = pneg %p352
        $region62: #{tpu_custom_call.1} parent=11 // pred_check_branch
          %482 = sbr.rel (%p480) target = $region64
        $region63: #{tpu_custom_call.1} parent=11 // pred_region
          _
        $region64: #{tpu_custom_call.1} parent=11 // pred_fallthru
          _
        // Predicated region
        $region65: #{tpu_custom_call.1} parent=11 // pred_check
          %p483 = pneg %p373
        $region66: #{tpu_custom_call.1} parent=11 // pred_check_branch
          %485 = sbr.rel (%p483) target = $region68
        $region67: #{tpu_custom_call.1} parent=11 // pred_region
          _
        $region68: #{tpu_custom_call.1} parent=11 // pred_fallthru
          _
      $region12: #{tpu_custom_call.1} parent=5 // pred_fallthru
        _
      %p486 = scmp.lt.s32.totalorder %s27, 2
      // Predicated region
      $region69: #{tpu_custom_call.1} parent=5 // pred_check
        %p487 = pneg %p486
      $region70: #{tpu_custom_call.1} parent=5 // pred_check_branch
        %489 = sbr.rel (%p487) target = $region72
      $region71: #{tpu_custom_call.1} parent=5 // pred_region
        // Predicated region
        $region73: #{tpu_custom_call.1} parent=71 // pred_check
          %p490 = pneg %p47
        $region74: #{tpu_custom_call.1} parent=71 // pred_check_branch
          %492 = sbr.rel (%p490) target = $region76
        $region75: #{tpu_custom_call.1} parent=71 // pred_region
          %s493 = smul.u32 8, %s27
          %p494 = scmp.lt.s32.totalorder %s493, 15
          %s495 = scalar_select %p494, %s493, 15
          %s496 = smul.addr %s495, 4
          %s497 = scalar_lea.vmem %s0, %s496
          %s498 = smul.u32 8, %s27
        $region76: #{tpu_custom_call.1} parent=71 // pred_fallthru
          _
        // Predicated region
        $region77: #{tpu_custom_call.1} parent=71 // pred_check
          %p499 = pneg %p73
        $region78: #{tpu_custom_call.1} parent=71 // pred_check_branch
          %501 = sbr.rel (%p499) target = $region80
        $region79: #{tpu_custom_call.1} parent=71 // pred_region
          %s502 = smul.u32 8, %s27
          %p503 = scmp.lt.s32.totalorder %s502, 15
          %s504 = scalar_select %p503, %s502, 15
          %s505 = scalar_lea.vmem %s1, %s504
          %s506 = smul.u32 8, %s27
        $region80: #{tpu_custom_call.1} parent=71 // pred_fallthru
          _
      $region72: #{tpu_custom_call.1} parent=5 // pred_fallthru
        _
      %p507 = scmp.le.s32.totalorder 1, %s27
      %p508 = scmp.lt.s32.totalorder %s27, 3
      %p509 = pnand %p507, %p508
      %p510 = pneg %p509
      // Predicated region
      $region81: #{tpu_custom_call.1} parent=5 // pred_check
        _
      $region82: #{tpu_custom_call.1} parent=5 // pred_check_branch
        %512 = sbr.rel (%p509) target = $region84
      $region83: #{tpu_custom_call.1} parent=5 // pred_region
        %s513 = ssub.s32 %s27, 1
        // Predicated region
        $region85: #{tpu_custom_call.1} parent=83 // pred_check
          %p514 = pneg %p142
        $region86: #{tpu_custom_call.1} parent=83 // pred_check_branch
          %516 = sbr.rel (%p514) target = $region88
        $region87: #{tpu_custom_call.1} parent=83 // pred_region
          %517 = dma.done [#allocation3], 256
        $region88: #{tpu_custom_call.1} parent=83 // pred_fallthru
          _
        // Predicated region
        $region89: #{tpu_custom_call.1} parent=83 // pred_check
          %p518 = pneg %p163
        $region90: #{tpu_custom_call.1} parent=83 // pred_check_branch
          %520 = sbr.rel (%p518) target = $region92
        $region91: #{tpu_custom_call.1} parent=83 // pred_region
          %521 = dma.done [#allocation6], 256
        $region92: #{tpu_custom_call.1} parent=83 // pred_fallthru
          _
        // Predicated region
        $region93: #{tpu_custom_call.1} parent=83 // pred_check
          %p522 = pneg %p184
        $region94: #{tpu_custom_call.1} parent=83 // pred_check_branch
          %524 = sbr.rel (%p522) target = $region96
        $region95: #{tpu_custom_call.1} parent=83 // pred_region
          %525 = dma.done [#allocation6], 256
        $region96: #{tpu_custom_call.1} parent=83 // pred_fallthru
          _
        %s526 = smul.u32 8, %s32
        %p527 = scmp.lt.s32.totalorder %s526, 15
        %s528 = scalar_select %p527, %s526, 15
        %s529 = smul.addr %s528, 4
        %s530 = scalar_lea.vmem %s0, %s529
        %p531 = pneg %p53
        %p532 = pneg %p50
        %s533 = smul.u32 8, %s32
        %p534 = scmp.lt.s32.totalorder %s533, 15
        %s535 = scalar_select %p534, %s533, 15
        %s536 = scalar_lea.vmem %s1, %s535
        %p537 = pneg %p79
        %p538 = pneg %p76
        %p539 = pneg %p100
        %p540 = pneg %p97
        %p541 = pneg %p121
        %p542 = pneg %p118
        %p543 = pneg %p142
        %p544 = pneg %p139
        %p545 = pneg %p163
        %p546 = pneg %p160
        %p547 = pneg %p184
        %p548 = pneg %p181
        %p549 = pneg %p205
        %p550 = pneg %p202
        %p551 = pneg %p226
        %p552 = pneg %p223
        %p553 = pneg %p247
        %p554 = pneg %p244
        %p555 = pneg %p268
        %p556 = pneg %p265
        %p557 = pneg %p289
        %p558 = pneg %p286
        %p559 = pneg %p310
        %p560 = pneg %p307
        %p561 = pneg %p331
        %p562 = pneg %p328
        %p563 = pneg %p352
        %p564 = pneg %p349
        %p565 = pneg %p373
        %p566 = pneg %p370
        %p567 = pneg %p399
        %p568 = pneg %p396
        %s569 = sand.u32 %s386, 1
        %s570 = scalar_lea.sflag [#allocation4], %s569
        %s571 = sand.u32 %s386, 1
        %s572 = smul.addr %s571, 8
        %s573 = scalar_lea.vmem [#allocation8], %s572
        %s574 = smul.u32 8, %s32
        %p575 = scmp.lt.s32.totalorder %s574, 15
        %s576 = scalar_select %p575, %s574, 15
        %s577 = smul.addr %s576, 4
        %s578 = scalar_lea.vmem %s0, %s577
        %s579 = smul.u32 8, %s32
        %s580 = smul.u32 8, %s32
        %p581 = scmp.lt.s32.totalorder %s580, 15
        %s582 = scalar_select %p581, %s580, 15
        %s583 = scalar_lea.vmem %s1, %s582
        %s584 = smul.u32 8, %s32
        %v586 = vld [vmem:[%s578] sm:$0xf]
        %v587 = vld [vmem:[%s578 + $0x4] sm:$0xf]
        %v588 = vld [vmem:[%s578 + $0x8] sm:$0xf]
        %v589 = vld [vmem:[%s578 + $0xc] sm:$0xf]
        %v590 = vld [vmem:[%s578 + $0x10] sm:$0xf]
        %v591 = vld [vmem:[%s578 + $0x14] sm:$0xf]
        %v592 = vld [vmem:[%s578 + $0x18] sm:$0xf]
        %v593 = vld [vmem:[%s578 + $0x1c] sm:$0xf]
        %v594 = vunpack.c.l.bf16 %v586
        %v595 = vunpack.c.l.bf16 %v587
        %v596 = vunpack.c.l.bf16 %v588
        %v597 = vunpack.c.l.bf16 %v589
        %v598 = vunpack.c.l.bf16 %v590
        %v599 = vunpack.c.l.bf16 %v591
        %v600 = vunpack.c.l.bf16 %v592
        %v601 = vunpack.c.l.bf16 %v593
        %v602 = vld [vmem:[%s583] sm:$0x1]
        %v603 = vld [vmem:[%s583 + $0x1] sm:$0x1]
        %v604 = vld [vmem:[%s583 + $0x2] sm:$0x1]
        %v605 = vld [vmem:[%s583 + $0x3] sm:$0x1]
        %v606 = vld [vmem:[%s583 + $0x4] sm:$0x1]
        %v607 = vld [vmem:[%s583 + $0x5] sm:$0x1]
        %v608 = vld [vmem:[%s583 + $0x6] sm:$0x1]
        %v609 = vld [vmem:[%s583 + $0x7] sm:$0x1]
        %v610 = vld [vmem:[%s8] sm:$0x1]
        %v611 = vld [vmem:[%s9] sm:$0x1]
        %vm612 = vcmask 261120
        %v613 = vsel %vm612, %v594, 0.0
        %614 = vadd.xlane.f32.xlu0 %v613
        %v615 = vpop.xlane.xlu0 %614
        %v616 = vsel %vm612, %v595, 0.0
        %617 = vadd.xlane.f32.xlu0 %v616
        %v618 = vpop.xlane.xlu0 %617
        %v619 = vsel %vm612, %v596, 0.0
        %620 = vadd.xlane.f32.xlu0 %v619
        %v621 = vpop.xlane.xlu0 %620
        %v622 = vsel %vm612, %v597, 0.0
        %623 = vadd.xlane.f32.xlu0 %v622
        %v624 = vpop.xlane.xlu0 %623
        %v625 = vsel %vm612, %v598, 0.0
        %626 = vadd.xlane.f32.xlu0 %v625
        %v627 = vpop.xlane.xlu0 %626
        %v628 = vsel %vm612, %v599, 0.0
        %629 = vadd.xlane.f32.xlu0 %v628
        %v630 = vpop.xlane.xlu0 %629
        %v631 = vsel %vm612, %v600, 0.0
        %632 = vadd.xlane.f32.xlu0 %v631
        %v633 = vpop.xlane.xlu0 %632
        %v634 = vsel %vm612, %v601, 0.0
        %635 = vadd.xlane.f32.xlu0 %v634
        %v636 = vpop.xlane.xlu0 %635
        %v637 = vrcp.pop 32.0
        %v638 = vmul.f32 %v615, %v637
        %v639 = vmul.f32 %v618, %v637
        %v640 = vmul.f32 %v621, %v637
        %v641 = vmul.f32 %v624, %v637
        %v642 = vmul.f32 %v627, %v637
        %v643 = vmul.f32 %v630, %v637
        %v644 = vmul.f32 %v633, %v637
        %v645 = vmul.f32 %v636, %v637
        %v646 = vsub.f32 %v594, %v638
        %v647 = vsub.f32 %v595, %v639
        %v648 = vsub.f32 %v596, %v640
        %v649 = vsub.f32 %v597, %v641
        %v650 = vsub.f32 %v598, %v642
        %v651 = vsub.f32 %v599, %v643
        %v652 = vsub.f32 %v600, %v644
        %v653 = vsub.f32 %v601, %v645
        %v654 = vmul.f32 %v646, %v646
        %v655 = vmul.f32 %v647, %v647
        %v656 = vmul.f32 %v648, %v648
        %v657 = vmul.f32 %v649, %v649
        %v658 = vmul.f32 %v650, %v650
        %v659 = vmul.f32 %v651, %v651
        %v660 = vmul.f32 %v652, %v652
        %v661 = vmul.f32 %v653, %v653
        %v662 = vsel %vm612, %v654, 0.0
        %663 = vadd.xlane.f32.xlu0 %v662
        %v664 = vpop.xlane.xlu0 %663
        %v665 = vsel %vm612, %v655, 0.0
        %666 = vadd.xlane.f32.xlu0 %v665
        %v667 = vpop.xlane.xlu0 %666
        %v668 = vsel %vm612, %v656, 0.0
        %669 = vadd.xlane.f32.xlu0 %v668
        %v670 = vpop.xlane.xlu0 %669
        %v671 = vsel %vm612, %v657, 0.0
        %672 = vadd.xlane.f32.xlu0 %v671
        %v673 = vpop.xlane.xlu0 %672
        %v674 = vsel %vm612, %v658, 0.0
        %675 = vadd.xlane.f32.xlu0 %v674
        %v676 = vpop.xlane.xlu0 %675
        %v677 = vsel %vm612, %v659, 0.0
        %678 = vadd.xlane.f32.xlu0 %v677
        %v679 = vpop.xlane.xlu0 %678
        %v680 = vsel %vm612, %v660, 0.0
        %681 = vadd.xlane.f32.xlu0 %v680
        %v682 = vpop.xlane.xlu0 %681
        %v683 = vsel %vm612, %v661, 0.0
        %684 = vadd.xlane.f32.xlu0 %v683
        %v685 = vpop.xlane.xlu0 %684
        %v686 = vmul.f32 %v664, %v637
        %v687 = vmul.f32 %v667, %v637
        %v688 = vmul.f32 %v670, %v637
        %v689 = vmul.f32 %v673, %v637
        %v690 = vmul.f32 %v676, %v637
        %v691 = vmul.f32 %v679, %v637
        %v692 = vmul.f32 %v682, %v637
        %v693 = vmul.f32 %v685, %v637
        %v694 = vadd.f32 %v686, 1e-12
        %v695 = vadd.f32 %v687, 1e-12
        %v696 = vadd.f32 %v688, 1e-12
        %v697 = vadd.f32 %v689, 1e-12
        %v698 = vadd.f32 %v690, 1e-12
        %v699 = vadd.f32 %v691, 1e-12
        %v700 = vadd.f32 %v692, 1e-12
        %v701 = vadd.f32 %v693, 1e-12
        %v702 = vrsqrt.pop %v694
        %v703 = vrsqrt.pop %v695
        %v704 = vrsqrt.pop %v696
        %v705 = vrsqrt.pop %v697
        %v706 = vrsqrt.pop %v698
        %v707 = vrsqrt.pop %v699
        %v708 = vrsqrt.pop %v700
        %v709 = vrsqrt.pop %v701
        %v710 = vmul.f32 %v646, %v702
        %v711 = vmul.f32 %v647, %v703
        %v712 = vmul.f32 %v648, %v704
        %v713 = vmul.f32 %v649, %v705
        %v714 = vmul.f32 %v650, %v706
        %v715 = vmul.f32 %v651, %v707
        %v716 = vmul.f32 %v652, %v708
        %v717 = vmul.f32 %v653, %v709
        %v719 = vlaneseq
        %v720 = vshrl.u32 %v719, 7
        %v721 = vsub.s32 0, %v720
        %v722 = vrot.slane %v610, %v721
        %v724 = vmul.f32 %v710, %v722
        %v725 = vmul.f32 %v711, %v722
        %v726 = vmul.f32 %v712, %v722
        %v727 = vmul.f32 %v713, %v722
        %v728 = vmul.f32 %v714, %v722
        %v729 = vmul.f32 %v715, %v722
        %v730 = vmul.f32 %v716, %v722
        %v731 = vmul.f32 %v717, %v722
        %v733 = vlaneseq
        %v734 = vshrl.u32 %v733, 7
        %v735 = vsub.s32 0, %v734
        %v736 = vrot.slane %v611, %v735
        %v738 = vadd.f32 %v724, %v736
        %v739 = vadd.f32 %v725, %v736
        %v740 = vadd.f32 %v726, %v736
        %v741 = vadd.f32 %v727, %v736
        %v742 = vadd.f32 %v728, %v736
        %v743 = vadd.f32 %v729, %v736
        %v744 = vadd.f32 %v730, %v736
        %v745 = vadd.f32 %v731, %v736
        %v746 = vpack.c.bf16 %v739, %v738
        %v747 = vpack.c.bf16 %v741, %v740
        %v748 = vpack.c.bf16 %v743, %v742
        %v749 = vpack.c.bf16 %v745, %v744
        %v750 = vld [vmem:[%s2] sm:$0xf]
        %v751 = vld [vmem:[%s2 + $0x4] sm:$0xf]
        %v752 = vld [vmem:[%s2 + $0x8] sm:$0xf]
        %v753 = vld [vmem:[%s2 + $0xc] sm:$0xf]
        %v758 = vunpack.c.l.b16 %v750
        %v759 = vunpack.c.l.b16 %v751
        %v760 = vunpack.c.l.b16 %v752
        %v761 = vunpack.c.l.b16 %v753
        %v762 = vpack.c.b16 %v759, %v758
        %v763 = vpack.c.b16 %v761, %v760
        %v767 = vsel %vm612, %v746, 0
        %v770 = vsel %vm612, %v747, 0
        %v773 = vsel %vm612, %v748, 0
        %v776 = vsel %vm612, %v749, 0
        %778 = vmatprep.subr.bf16.mxu0 0
        %779 = vmatpush1.bf16.msra.mxu0 %v762
        %780 = vmatprep.subr.bf16.mxu0 0
        %781 = vmatpush1.bf16.msra.mxu0 %v763
        %782 = vmatprep.subr.bf16.mxu0 0
        %783 = vmatpush1.bf16.msra.mxu0 0
        %784 = vmatprep.subr.bf16.mxu0 0
        %785 = vmatpush1.bf16.msra.mxu0 0
        %786 = vmatprep.subr.bf16.mxu0 0
        %787 = vmatpush1.bf16.msra.mxu0 0
        %788 = vmatprep.subr.bf16.mxu0 0
        %789 = vmatpush1.bf16.msra.mxu0 0
        %790 = vmatprep.subr.bf16.mxu0 0
        %791 = vmatpush1.bf16.msra.mxu0 0
        %792 = vmatprep.subr.bf16.mxu0 0
        %793 = vmatpush1.bf16.msra.mxu0 0
        %794 = vmatprep.subr.bf16.mxu0 0
        %795 = vmatpush1.bf16.msra.mxu0 0
        %796 = vmatprep.subr.bf16.mxu0 0
        %797 = vmatpush1.bf16.msra.mxu0 0
        %798 = vmatprep.subr.bf16.mxu0 0
        %799 = vmatpush1.bf16.msra.mxu0 0
        %800 = vmatprep.subr.bf16.mxu0 0
        %801 = vmatpush1.bf16.msra.mxu0 0
        %802 = vmatprep.subr.bf16.mxu0 0
        %803 = vmatpush1.bf16.msra.mxu0 0
        %804 = vmatprep.subr.bf16.mxu0 0
        %805 = vmatpush1.bf16.msra.mxu0 0
        %806 = vmatprep.subr.bf16.mxu0 0
        %807 = vmatpush1.bf16.msra.mxu0 0
        %808 = vmatprep.subr.bf16.mxu0 0
        %809 = vmatpush1.bf16.msra.mxu0 0
        %810 = vmatprep.mubr.bf16.mxu0 0
        %811 = vmatmul.mubr.bf16.gmra.mrb[0].mxu0 %v767
        %v812 = vpop.f32.mrb[0].mxu0
        %v813 = vadd.f32 0.0, %v812
        %v814 = vpop.f32.mrb[0].mxu0
        %v815 = vpop.f32.mrb[0].mxu0
        %v816 = vadd.f32 0.0, %v815
        %v817 = vpop.f32.mrb[0].mxu0
        %818 = vmatprep.mubr.bf16.mxu0 0
        %819 = vmatmul.mubr.bf16.gmra.mrb[0].mxu0 %v770
        %v820 = vpop.f32.mrb[0].mxu0
        %v821 = vadd.f32 0.0, %v820
        %v822 = vpop.f32.mrb[0].mxu0
        %v823 = vpop.f32.mrb[0].mxu0
        %v824 = vadd.f32 0.0, %v823
        %v825 = vpop.f32.mrb[0].mxu0
        %826 = vmatprep.mubr.bf16.mxu0 0
        %827 = vmatmul.mubr.bf16.gmra.mrb[0].mxu0 %v773
        %v828 = vpop.f32.mrb[0].mxu0
        %v829 = vadd.f32 0.0, %v828
        %v830 = vpop.f32.mrb[0].mxu0
        %v831 = vpop.f32.mrb[0].mxu0
        %v832 = vadd.f32 0.0, %v831
        %v833 = vpop.f32.mrb[0].mxu0
        %834 = vmatprep.mubr.bf16.mxu0 0
        %835 = vmatmul.mubr.bf16.gmra.mrb[0].mxu0 %v776
        %v836 = vpop.f32.mrb[0].mxu0
        %v837 = vadd.f32 0.0, %v836
        %v838 = vpop.f32.mrb[0].mxu0
        %v839 = vpop.f32.mrb[0].mxu0
        %v840 = vadd.f32 0.0, %v839
        %v841 = vpop.f32.mrb[0].mxu0
        %842 = vdwg.mxu0
        %v843 = vpack.c.bf16 %v816, %v813
        %v844 = vpack.c.bf16 %v824, %v821
        %v845 = vpack.c.bf16 %v832, %v829
        %v846 = vpack.c.bf16 %v840, %v837
        %v851 = vunpack.c.l.b16 %v843
        %v852 = vunpack.c.h.b16 %v843
        %v853 = vunpack.c.l.b16 %v844
        %v854 = vunpack.c.h.b16 %v844
        %v855 = vunpack.c.l.b16 %v845
        %v856 = vunpack.c.h.b16 %v845
        %v857 = vunpack.c.l.b16 %v846
        %v858 = vunpack.c.h.b16 %v846
        %v859 = vpack.c.b16 %v851, %v851
        %v860 = vpack.c.b16 %v852, %v852
        %v861 = vpack.c.b16 %v853, %v853
        %v862 = vpack.c.b16 %v854, %v854
        %v863 = vpack.c.b16 %v855, %v855
        %v864 = vpack.c.b16 %v856, %v856
        %v865 = vpack.c.b16 %v857, %v857
        %v866 = vpack.c.b16 %v858, %v858
        %v867 = vld [vmem:[%s3] sm:$0xf]
        %v868 = vld [vmem:[%s3 + $0x4] sm:$0xf]
        %v869 = vld [vmem:[%s3 + $0x8] sm:$0xf]
        %v870 = vld [vmem:[%s3 + $0xc] sm:$0xf]
        %v875 = vunpack.c.l.b16 %v867
        %v876 = vunpack.c.l.b16 %v868
        %v877 = vunpack.c.l.b16 %v869
        %v878 = vunpack.c.l.b16 %v870
        %v879 = vpack.c.b16 %v876, %v875
        %v880 = vpack.c.b16 %v878, %v877
        %883 = vmatprep.subr.bf16.mxu0 0
        %884 = vmatpush1.bf16.msra.mxu0 %v879
        %885 = vmatprep.subr.bf16.mxu0 0
        %886 = vmatpush1.bf16.msra.mxu0 %v880
        %887 = vmatprep.subr.bf16.mxu0 0
        %888 = vmatpush1.bf16.msra.mxu0 0
        %889 = vmatprep.subr.bf16.mxu0 0
        %890 = vmatpush1.bf16.msra.mxu0 0
        %891 = vmatprep.subr.bf16.mxu0 0
        %892 = vmatpush1.bf16.msra.mxu0 0
        %893 = vmatprep.subr.bf16.mxu0 0
        %894 = vmatpush1.bf16.msra.mxu0 0
        %895 = vmatprep.subr.bf16.mxu0 0
        %896 = vmatpush1.bf16.msra.mxu0 0
        %897 = vmatprep.subr.bf16.mxu0 0
        %898 = vmatpush1.bf16.msra.mxu0 0
        %899 = vmatprep.subr.bf16.mxu0 0
        %900 = vmatpush1.bf16.msra.mxu0 0
        %901 = vmatprep.subr.bf16.mxu0 0
        %902 = vmatpush1.bf16.msra.mxu0 0
        %903 = vmatprep.subr.bf16.mxu0 0
        %904 = vmatpush1.bf16.msra.mxu0 0
        %905 = vmatprep.subr.bf16.mxu0 0
        %906 = vmatpush1.bf16.msra.mxu0 0
        %907 = vmatprep.subr.bf16.mxu0 0
        %908 = vmatpush1.bf16.msra.mxu0 0
        %909 = vmatprep.subr.bf16.mxu0 0
        %910 = vmatpush1.bf16.msra.mxu0 0
        %911 = vmatprep.subr.bf16.mxu0 0
        %912 = vmatpush1.bf16.msra.mxu0 0
        %913 = vmatprep.subr.bf16.mxu0 0
        %914 = vmatpush1.bf16.msra.mxu0 0
        %915 = vmatprep.mubr.bf16.mxu0 0
        %916 = vmatmul.mubr.bf16.gmra.mrb[0].mxu0 %v767
        %v917 = vpop.f32.mrb[0].mxu0
        %v918 = vadd.f32 0.0, %v917
        %v919 = vpop.f32.mrb[0].mxu0
        %v920 = vpop.f32.mrb[0].mxu0
        %v921 = vadd.f32 0.0, %v920
        %v922 = vpop.f32.mrb[0].mxu0
        %923 = vmatprep.mubr.bf16.mxu0 0
        %924 = vmatmul.mubr.bf16.gmra.mrb[0].mxu0 %v770
        %v925 = vpop.f32.mrb[0].mxu0
        %v926 = vadd.f32 0.0, %v925
        %v927 = vpop.f32.mrb[0].mxu0
        %v928 = vpop.f32.mrb[0].mxu0
        %v929 = vadd.f32 0.0, %v928
        %v930 = vpop.f32.mrb[0].mxu0
        %931 = vmatprep.mubr.bf16.mxu0 0
        %932 = vmatmul.mubr.bf16.gmra.mrb[0].mxu0 %v773
        %v933 = vpop.f32.mrb[0].mxu0
        %v934 = vadd.f32 0.0, %v933
        %v935 = vpop.f32.mrb[0].mxu0
        %v936 = vpop.f32.mrb[0].mxu0
        %v937 = vadd.f32 0.0, %v936
        %v938 = vpop.f32.mrb[0].mxu0
        %939 = vmatprep.mubr.bf16.mxu0 0
        %940 = vmatmul.mubr.bf16.gmra.mrb[0].mxu0 %v776
        %v941 = vpop.f32.mrb[0].mxu0
        %v942 = vadd.f32 0.0, %v941
        %v943 = vpop.f32.mrb[0].mxu0
        %v944 = vpop.f32.mrb[0].mxu0
        %v945 = vadd.f32 0.0, %v944
        %v946 = vpop.f32.mrb[0].mxu0
        %947 = vdwg.mxu0
        %v948 = vpack.c.bf16 %v921, %v918
        %v949 = vpack.c.bf16 %v929, %v926
        %v950 = vpack.c.bf16 %v937, %v934
        %v951 = vpack.c.bf16 %v945, %v942
        %v956 = vunpack.c.l.b16 %v948
        %v957 = vunpack.c.h.b16 %v948
        %v958 = vunpack.c.l.b16 %v949
        %v959 = vunpack.c.h.b16 %v949
        %v960 = vunpack.c.l.b16 %v950
        %v961 = vunpack.c.h.b16 %v950
        %v962 = vunpack.c.l.b16 %v951
        %v963 = vunpack.c.h.b16 %v951
        %v964 = vpack.c.b16 %v956, %v956
        %v965 = vpack.c.b16 %v957, %v957
        %v966 = vpack.c.b16 %v958, %v958
        %v967 = vpack.c.b16 %v959, %v959
        %v968 = vpack.c.b16 %v960, %v960
        %v969 = vpack.c.b16 %v961, %v961
        %v970 = vpack.c.b16 %v962, %v962
        %v971 = vpack.c.b16 %v963, %v963
        %v972 = vld [vmem:[#allocation2] sm:$0xf]
        %v973 = vld [vmem:[#allocation2 + $0x4] sm:$0xf]
        %v974 = vld [vmem:[#allocation2 + $0x8] sm:$0xf]
        %v975 = vld [vmem:[#allocation2 + $0xc] sm:$0xf]
        %v980 = vunpack.c.l.b16 %v972
        %v981 = vunpack.c.l.b16 %v973
        %v982 = vunpack.c.l.b16 %v974
        %v983 = vunpack.c.l.b16 %v975
        %v984 = vpack.c.b16 %v981, %v980
        %v985 = vpack.c.b16 %v983, %v982
        %988 = vmatprep.subr.bf16.mxu0 0
        %989 = vmatpush1.bf16.msra.mxu0 %v984
        %990 = vmatprep.subr.bf16.mxu0 0
        %991 = vmatpush1.bf16.msra.mxu0 %v985
        %992 = vmatprep.subr.bf16.mxu0 0
        %993 = vmatpush1.bf16.msra.mxu0 0
        %994 = vmatprep.subr.bf16.mxu0 0
        %995 = vmatpush1.bf16.msra.mxu0 0
        %996 = vmatprep.subr.bf16.mxu0 0
        %997 = vmatpush1.bf16.msra.mxu0 0
        %998 = vmatprep.subr.bf16.mxu0 0
        %999 = vmatpush1.bf16.msra.mxu0 0
        %1000 = vmatprep.subr.bf16.mxu0 0
        %1001 = vmatpush1.bf16.msra.mxu0 0
        %1002 = vmatprep.subr.bf16.mxu0 0
        %1003 = vmatpush1.bf16.msra.mxu0 0
        %1004 = vmatprep.subr.bf16.mxu0 0
        %1005 = vmatpush1.bf16.msra.mxu0 0
        %1006 = vmatprep.subr.bf16.mxu0 0
        %1007 = vmatpush1.bf16.msra.mxu0 0
        %1008 = vmatprep.subr.bf16.mxu0 0
        %1009 = vmatpush1.bf16.msra.mxu0 0
        %1010 = vmatprep.subr.bf16.mxu0 0
        %1011 = vmatpush1.bf16.msra.mxu0 0
        %1012 = vmatprep.subr.bf16.mxu0 0
        %1013 = vmatpush1.bf16.msra.mxu0 0
        %1014 = vmatprep.subr.bf16.mxu0 0
        %1015 = vmatpush1.bf16.msra.mxu0 0
        %1016 = vmatprep.subr.bf16.mxu0 0
        %1017 = vmatpush1.bf16.msra.mxu0 0
        %1018 = vmatprep.subr.bf16.mxu0 0
        %1019 = vmatpush1.bf16.msra.mxu0 0
        %1020 = vmatprep.mubr.bf16.mxu0 0
        %1021 = vmatmul.mubr.bf16.gmra.mrb[0].mxu0 %v767
        %v1022 = vpop.f32.mrb[0].mxu0
        %v1023 = vadd.f32 0.0, %v1022
        %v1024 = vpop.f32.mrb[0].mxu0
        %v1025 = vpop.f32.mrb[0].mxu0
        %v1026 = vadd.f32 0.0, %v1025
        %v1027 = vpop.f32.mrb[0].mxu0
        %1028 = vmatprep.mubr.bf16.mxu0 0
        %1029 = vmatmul.mubr.bf16.gmra.mrb[0].mxu0 %v770
        %v1030 = vpop.f32.mrb[0].mxu0
        %v1031 = vadd.f32 0.0, %v1030
        %v1032 = vpop.f32.mrb[0].mxu0
        %v1033 = vpop.f32.mrb[0].mxu0
        %v1034 = vadd.f32 0.0, %v1033
        %v1035 = vpop.f32.mrb[0].mxu0
        %1036 = vmatprep.mubr.bf16.mxu0 0
        %1037 = vmatmul.mubr.bf16.gmra.mrb[0].mxu0 %v773
        %v1038 = vpop.f32.mrb[0].mxu0
        %v1039 = vadd.f32 0.0, %v1038
        %v1040 = vpop.f32.mrb[0].mxu0
        %v1041 = vpop.f32.mrb[0].mxu0
        %v1042 = vadd.f32 0.0, %v1041
        %v1043 = vpop.f32.mrb[0].mxu0
        %1044 = vmatprep.mubr.bf16.mxu0 0
        %1045 = vmatmul.mubr.bf16.gmra.mrb[0].mxu0 %v776
        %v1046 = vpop.f32.mrb[0].mxu0
        %v1047 = vadd.f32 0.0, %v1046
        %v1048 = vpop.f32.mrb[0].mxu0
        %v1049 = vpop.f32.mrb[0].mxu0
        %v1050 = vadd.f32 0.0, %v1049
        %v1051 = vpop.f32.mrb[0].mxu0
        %1052 = vdwg.mxu0
        %v1053 = vpack.c.bf16 %v1026, %v1023
        %v1054 = vpack.c.bf16 %v1034, %v1031
        %v1055 = vpack.c.bf16 %v1042, %v1039
        %v1056 = vpack.c.bf16 %v1050, %v1047
        %v1061 = vunpack.c.l.b16 %v1053
        %v1062 = vunpack.c.h.b16 %v1053
        %v1063 = vunpack.c.l.b16 %v1054
        %v1064 = vunpack.c.h.b16 %v1054
        %v1065 = vunpack.c.l.b16 %v1055
        %v1066 = vunpack.c.h.b16 %v1055
        %v1067 = vunpack.c.l.b16 %v1056
        %v1068 = vunpack.c.h.b16 %v1056
        %v1069 = vpack.c.b16 %v1061, %v1061
        %v1070 = vpack.c.b16 %v1062, %v1062
        %v1071 = vpack.c.b16 %v1063, %v1063
        %v1072 = vpack.c.b16 %v1064, %v1064
        %v1073 = vpack.c.b16 %v1065, %v1065
        %v1074 = vpack.c.b16 %v1066, %v1066
        %v1075 = vpack.c.b16 %v1067, %v1067
        %v1076 = vpack.c.b16 %v1068, %v1068
        %v1085 = vlaneseq
        %v1086 = vshrl.u32 %v1085, 7
        %v1087 = vsub.s32 0, %v1086
        %v1088 = vrot.slane %v602, %v1087
        %v1089 = vlaneseq
        %v1090 = vshrl.u32 %v1089, 7
        %v1091 = vsub.s32 0, %v1090
        %v1092 = vrot.slane %v603, %v1091
        %v1093 = vlaneseq
        %v1094 = vshrl.u32 %v1093, 7
        %v1095 = vsub.s32 0, %v1094
        %v1096 = vrot.slane %v604, %v1095
        %v1097 = vlaneseq
        %v1098 = vshrl.u32 %v1097, 7
        %v1099 = vsub.s32 0, %v1098
        %v1100 = vrot.slane %v605, %v1099
        %v1101 = vlaneseq
        %v1102 = vshrl.u32 %v1101, 7
        %v1103 = vsub.s32 0, %v1102
        %v1104 = vrot.slane %v606, %v1103
        %v1105 = vlaneseq
        %v1106 = vshrl.u32 %v1105, 7
        %v1107 = vsub.s32 0, %v1106
        %v1108 = vrot.slane %v607, %v1107
        %v1109 = vlaneseq
        %v1110 = vshrl.u32 %v1109, 7
        %v1111 = vsub.s32 0, %v1110
        %v1112 = vrot.slane %v608, %v1111
        %v1113 = vlaneseq
        %v1114 = vshrl.u32 %v1113, 7
        %v1115 = vsub.s32 0, %v1114
        %v1116 = vrot.slane %v609, %v1115
        %v1126 = vsel %vm612, %v859, 0
        %v1129 = vsel %vm612, %v964, 0
        %1131 = vmatprep.subr.bf16.mxu0 0
        %1132 = vmatpush1.bf16.xpose.msra.mxu0 %v1129
        %1133 = vmatprep.subr.bf16.mxu0 0
        %1134 = vmatpush1.bf16.xpose.msra.mxu0 0
        %1135 = vmatprep.subr.bf16.mxu0 0
        %1136 = vmatpush1.bf16.xpose.msra.mxu0 0
        %1137 = vmatprep.subr.bf16.mxu0 0
        %1138 = vmatpush1.bf16.xpose.msra.mxu0 0
        %1139 = vmatprep.subr.bf16.mxu0 0
        %1140 = vmatpush1.bf16.xpose.msra.mxu0 0
        %1141 = vmatprep.subr.bf16.mxu0 0
        %1142 = vmatpush1.bf16.xpose.msra.mxu0 0
        %1143 = vmatprep.subr.bf16.mxu0 0
        %1144 = vmatpush1.bf16.xpose.msra.mxu0 0
        %1145 = vmatprep.subr.bf16.mxu0 0
        %1146 = vmatpush1.bf16.xpose.msra.mxu0 0
        %1147 = vmatprep.subr.bf16.mxu0 0
        %1148 = vmatpush1.bf16.xpose.msra.mxu0 0
        %1149 = vmatprep.subr.bf16.mxu0 0
        %1150 = vmatpush1.bf16.xpose.msra.mxu0 0
        %1151 = vmatprep.subr.bf16.mxu0 0
        %1152 = vmatpush1.bf16.xpose.msra.mxu0 0
        %1153 = vmatprep.subr.bf16.mxu0 0
        %1154 = vmatpush1.bf16.xpose.msra.mxu0 0
        %1155 = vmatprep.subr.bf16.mxu0 0
        %1156 = vmatpush1.bf16.xpose.msra.mxu0 0
        %1157 = vmatprep.subr.bf16.mxu0 0
        %1158 = vmatpush1.bf16.xpose.msra.mxu0 0
        %1159 = vmatprep.subr.bf16.mxu0 0
        %1160 = vmatpush1.bf16.xpose.msra.mxu0 0
        %1161 = vmatprep.subr.bf16.mxu0 0
        %1162 = vmatpush1.bf16.xpose.msra.mxu0 0
        %1163 = vmatprep.mubr.bf16.mxu0 0
        %1164 = vmatmul.mubr.bf16.gmra.mrb[0].mxu0 %v1126
        %v1165 = vpop.f32.mrb[0].mxu0
        %v1166 = vadd.f32 %v1088, %v1165
        %v1167 = vpop.f32.mrb[0].mxu0
        %v1168 = vpop.f32.mrb[0].mxu0
        %v1169 = vpop.f32.mrb[0].mxu0
        %1170 = vdwg.mxu0
        %v1172 = vsel %vm612, %v860, 0
        %v1175 = vsel %vm612, %v965, 0
        %1177 = vmatprep.subr.bf16.mxu0 0
        %1178 = vmatpush1.bf16.xpose.msra.mxu0 %v1175
        %1179 = vmatprep.subr.bf16.mxu0 0
        %1180 = vmatpush1.bf16.xpose.msra.mxu0 0
        %1181 = vmatprep.subr.bf16.mxu0 0
        %1182 = vmatpush1.bf16.xpose.msra.mxu0 0
        %1183 = vmatprep.subr.bf16.mxu0 0
        %1184 = vmatpush1.bf16.xpose.msra.mxu0 0
        %1185 = vmatprep.subr.bf16.mxu0 0
        %1186 = vmatpush1.bf16.xpose.msra.mxu0 0
        %1187 = vmatprep.subr.bf16.mxu0 0
        %1188 = vmatpush1.bf16.xpose.msra.mxu0 0
        %1189 = vmatprep.subr.bf16.mxu0 0
        %1190 = vmatpush1.bf16.xpose.msra.mxu0 0
        %1191 = vmatprep.subr.bf16.mxu0 0
        %1192 = vmatpush1.bf16.xpose.msra.mxu0 0
        %1193 = vmatprep.subr.bf16.mxu0 0
        %1194 = vmatpush1.bf16.xpose.msra.mxu0 0
        %1195 = vmatprep.subr.bf16.mxu0 0
        %1196 = vmatpush1.bf16.xpose.msra.mxu0 0
        %1197 = vmatprep.subr.bf16.mxu0 0
        %1198 = vmatpush1.bf16.xpose.msra.mxu0 0
        %1199 = vmatprep.subr.bf16.mxu0 0
        %1200 = vmatpush1.bf16.xpose.msra.mxu0 0
        %1201 = vmatprep.subr.bf16.mxu0 0
        %1202 = vmatpush1.bf16.xpose.msra.mxu0 0
        %1203 = vmatprep.subr.bf16.mxu0 0
        %1204 = vmatpush1.bf16.xpose.msra.mxu0 0
        %1205 = vmatprep.subr.bf16.mxu0 0
        %1206 = vmatpush1.bf16.xpose.msra.mxu0 0
        %1207 = vmatprep.subr.bf16.mxu0 0
        %1208 = vmatpush1.bf16.xpose.msra.mxu0 0
        %1209 = vmatprep.mubr.bf16.mxu0 0
        %1210 = vmatmul.mubr.bf16.gmra.mrb[0].mxu0 %v1172
        %v1211 = vpop.f32.mrb[0].mxu0
        %v1212 = vadd.f32 %v1092, %v1211
        %v1213 = vpop.f32.mrb[0].mxu0
        %v1214 = vpop.f32.mrb[0].mxu0
        %v1215 = vpop.f32.mrb[0].mxu0
        %1216 = vdwg.mxu0
        %v1218 = vsel %vm612, %v861, 0
        %v1221 = vsel %vm612, %v966, 0
        %1223 = vmatprep.subr.bf16.mxu0 0
        %1224 = vmatpush1.bf16.xpose.msra.mxu0 %v1221
        %1225 = vmatprep.subr.bf16.mxu0 0
        %1226 = vmatpush1.bf16.xpose.msra.mxu0 0
        %1227 = vmatprep.subr.bf16.mxu0 0
        %1228 = vmatpush1.bf16.xpose.msra.mxu0 0
        %1229 = vmatprep.subr.bf16.mxu0 0
        %1230 = vmatpush1.bf16.xpose.msra.mxu0 0
        %1231 = vmatprep.subr.bf16.mxu0 0
        %1232 = vmatpush1.bf16.xpose.msra.mxu0 0
        %1233 = vmatprep.subr.bf16.mxu0 0
        %1234 = vmatpush1.bf16.xpose.msra.mxu0 0
        %1235 = vmatprep.subr.bf16.mxu0 0
        %1236 = vmatpush1.bf16.xpose.msra.mxu0 0
        %1237 = vmatprep.subr.bf16.mxu0 0
        %1238 = vmatpush1.bf16.xpose.msra.mxu0 0
        %1239 = vmatprep.subr.bf16.mxu0 0
        %1240 = vmatpush1.bf16.xpose.msra.mxu0 0
        %1241 = vmatprep.subr.bf16.mxu0 0
        %1242 = vmatpush1.bf16.xpose.msra.mxu0 0
        %1243 = vmatprep.subr.bf16.mxu0 0
        %1244 = vmatpush1.bf16.xpose.msra.mxu0 0
        %1245 = vmatprep.subr.bf16.mxu0 0
        %1246 = vmatpush1.bf16.xpose.msra.mxu0 0
        %1247 = vmatprep.subr.bf16.mxu0 0
        %1248 = vmatpush1.bf16.xpose.msra.mxu0 0
        %1249 = vmatprep.subr.bf16.mxu0 0
        %1250 = vmatpush1.bf16.xpose.msra.mxu0 0
        %1251 = vmatprep.subr.bf16.mxu0 0
        %1252 = vmatpush1.bf16.xpose.msra.mxu0 0
        %1253 = vmatprep.subr.bf16.mxu0 0
        %1254 = vmatpush1.bf16.xpose.msra.mxu0 0
        %1255 = vmatprep.mubr.bf16.mxu0 0
        %1256 = vmatmul.mubr.bf16.gmra.mrb[0].mxu0 %v1218
        %v1257 = vpop.f32.mrb[0].mxu0
        %v1258 = vadd.f32 %v1096, %v1257
        %v1259 = vpop.f32.mrb[0].mxu0
        %v1260 = vpop.f32.mrb[0].mxu0
        %v1261 = vpop.f32.mrb[0].mxu0
        %1262 = vdwg.mxu0
        %v1264 = vsel %vm612, %v862, 0
        %v1267 = vsel %vm612, %v967, 0
        %1269 = vmatprep.subr.bf16.mxu0 0
        %1270 = vmatpush1.bf16.xpose.msra.mxu0 %v1267
        %1271 = vmatprep.subr.bf16.mxu0 0
        %1272 = vmatpush1.bf16.xpose.msra.mxu0 0
        %1273 = vmatprep.subr.bf16.mxu0 0
        %1274 = vmatpush1.bf16.xpose.msra.mxu0 0
        %1275 = vmatprep.subr.bf16.mxu0 0
        %1276 = vmatpush1.bf16.xpose.msra.mxu0 0
        %1277 = vmatprep.subr.bf16.mxu0 0
        %1278 = vmatpush1.bf16.xpose.msra.mxu0 0
        %1279 = vmatprep.subr.bf16.mxu0 0
        %1280 = vmatpush1.bf16.xpose.msra.mxu0 0
        %1281 = vmatprep.subr.bf16.mxu0 0
        %1282 = vmatpush1.bf16.xpose.msra.mxu0 0
        %1283 = vmatprep.subr.bf16.mxu0 0
        %1284 = vmatpush1.bf16.xpose.msra.mxu0 0
        %1285 = vmatprep.subr.bf16.mxu0 0
        %1286 = vmatpush1.bf16.xpose.msra.mxu0 0
        %1287 = vmatprep.subr.bf16.mxu0 0
        %1288 = vmatpush1.bf16.xpose.msra.mxu0 0
        %1289 = vmatprep.subr.bf16.mxu0 0
        %1290 = vmatpush1.bf16.xpose.msra.mxu0 0
        %1291 = vmatprep.subr.bf16.mxu0 0
        %1292 = vmatpush1.bf16.xpose.msra.mxu0 0
        %1293 = vmatprep.subr.bf16.mxu0 0
        %1294 = vmatpush1.bf16.xpose.msra.mxu0 0
        %1295 = vmatprep.subr.bf16.mxu0 0
        %1296 = vmatpush1.bf16.xpose.msra.mxu0 0
        %1297 = vmatprep.subr.bf16.mxu0 0
        %1298 = vmatpush1.bf16.xpose.msra.mxu0 0
        %1299 = vmatprep.subr.bf16.mxu0 0
        %1300 = vmatpush1.bf16.xpose.msra.mxu0 0
        %1301 = vmatprep.mubr.bf16.mxu0 0
        %1302 = vmatmul.mubr.bf16.gmra.mrb[0].mxu0 %v1264
        %v1303 = vpop.f32.mrb[0].mxu0
        %v1304 = vadd.f32 %v1100, %v1303
        %v1305 = vpop.f32.mrb[0].mxu0
        %v1306 = vpop.f32.mrb[0].mxu0
        %v1307 = vpop.f32.mrb[0].mxu0
        %1308 = vdwg.mxu0
        %v1310 = vsel %vm612, %v863, 0
        %v1313 = vsel %vm612, %v968, 0
        %1315 = vmatprep.subr.bf16.mxu0 0
        %1316 = vmatpush1.bf16.xpose.msra.mxu0 %v1313
        %1317 = vmatprep.subr.bf16.mxu0 0
        %1318 = vmatpush1.bf16.xpose.msra.mxu0 0
        %1319 = vmatprep.subr.bf16.mxu0 0
        %1320 = vmatpush1.bf16.xpose.msra.mxu0 0
        %1321 = vmatprep.subr.bf16.mxu0 0
        %1322 = vmatpush1.bf16.xpose.msra.mxu0 0
        %1323 = vmatprep.subr.bf16.mxu0 0
        %1324 = vmatpush1.bf16.xpose.msra.mxu0 0
        %1325 = vmatprep.subr.bf16.mxu0 0
        %1326 = vmatpush1.bf16.xpose.msra.mxu0 0
        %1327 = vmatprep.subr.bf16.mxu0 0
        %1328 = vmatpush1.bf16.xpose.msra.mxu0 0
        %1329 = vmatprep.subr.bf16.mxu0 0
        %1330 = vmatpush1.bf16.xpose.msra.mxu0 0
        %1331 = vmatprep.subr.bf16.mxu0 0
        %1332 = vmatpush1.bf16.xpose.msra.mxu0 0
        %1333 = vmatprep.subr.bf16.mxu0 0
        %1334 = vmatpush1.bf16.xpose.msra.mxu0 0
        %1335 = vmatprep.subr.bf16.mxu0 0
        %1336 = vmatpush1.bf16.xpose.msra.mxu0 0
        %1337 = vmatprep.subr.bf16.mxu0 0
        %1338 = vmatpush1.bf16.xpose.msra.mxu0 0
        %1339 = vmatprep.subr.bf16.mxu0 0
        %1340 = vmatpush1.bf16.xpose.msra.mxu0 0
        %1341 = vmatprep.subr.bf16.mxu0 0
        %1342 = vmatpush1.bf16.xpose.msra.mxu0 0
        %1343 = vmatprep.subr.bf16.mxu0 0
        %1344 = vmatpush1.bf16.xpose.msra.mxu0 0
        %1345 = vmatprep.subr.bf16.mxu0 0
        %1346 = vmatpush1.bf16.xpose.msra.mxu0 0
        %1347 = vmatprep.mubr.bf16.mxu0 0
        %1348 = vmatmul.mubr.bf16.gmra.mrb[0].mxu0 %v1310
        %v1349 = vpop.f32.mrb[0].mxu0
        %v1350 = vadd.f32 %v1104, %v1349
        %v1351 = vpop.f32.mrb[0].mxu0
        %v1352 = vpop.f32.mrb[0].mxu0
        %v1353 = vpop.f32.mrb[0].mxu0
        %1354 = vdwg.mxu0
        %v1356 = vsel %vm612, %v864, 0
        %v1359 = vsel %vm612, %v969, 0
        %1361 = vmatprep.subr.bf16.mxu0 0
        %1362 = vmatpush1.bf16.xpose.msra.mxu0 %v1359
        %1363 = vmatprep.subr.bf16.mxu0 0
        %1364 = vmatpush1.bf16.xpose.msra.mxu0 0
        %1365 = vmatprep.subr.bf16.mxu0 0
        %1366 = vmatpush1.bf16.xpose.msra.mxu0 0
        %1367 = vmatprep.subr.bf16.mxu0 0
        %1368 = vmatpush1.bf16.xpose.msra.mxu0 0
        %1369 = vmatprep.subr.bf16.mxu0 0
        %1370 = vmatpush1.bf16.xpose.msra.mxu0 0
        %1371 = vmatprep.subr.bf16.mxu0 0
        %1372 = vmatpush1.bf16.xpose.msra.mxu0 0
        %1373 = vmatprep.subr.bf16.mxu0 0
        %1374 = vmatpush1.bf16.xpose.msra.mxu0 0
        %1375 = vmatprep.subr.bf16.mxu0 0
        %1376 = vmatpush1.bf16.xpose.msra.mxu0 0
        %1377 = vmatprep.subr.bf16.mxu0 0
        %1378 = vmatpush1.bf16.xpose.msra.mxu0 0
        %1379 = vmatprep.subr.bf16.mxu0 0
        %1380 = vmatpush1.bf16.xpose.msra.mxu0 0
        %1381 = vmatprep.subr.bf16.mxu0 0
        %1382 = vmatpush1.bf16.xpose.msra.mxu0 0
        %1383 = vmatprep.subr.bf16.mxu0 0
        %1384 = vmatpush1.bf16.xpose.msra.mxu0 0
        %1385 = vmatprep.subr.bf16.mxu0 0
        %1386 = vmatpush1.bf16.xpose.msra.mxu0 0
        %1387 = vmatprep.subr.bf16.mxu0 0
        %1388 = vmatpush1.bf16.xpose.msra.mxu0 0
        %1389 = vmatprep.subr.bf16.mxu0 0
        %1390 = vmatpush1.bf16.xpose.msra.mxu0 0
        %1391 = vmatprep.subr.bf16.mxu0 0
        %1392 = vmatpush1.bf16.xpose.msra.mxu0 0
        %1393 = vmatprep.mubr.bf16.mxu0 0
        %1394 = vmatmul.mubr.bf16.gmra.mrb[0].mxu0 %v1356
        %v1395 = vpop.f32.mrb[0].mxu0
        %v1396 = vadd.f32 %v1108, %v1395
        %v1397 = vpop.f32.mrb[0].mxu0
        %v1398 = vpop.f32.mrb[0].mxu0
        %v1399 = vpop.f32.mrb[0].mxu0
        %1400 = vdwg.mxu0
        %v1402 = vsel %vm612, %v865, 0
        %v1405 = vsel %vm612, %v970, 0
        %1407 = vmatprep.subr.bf16.mxu0 0
        %1408 = vmatpush1.bf16.xpose.msra.mxu0 %v1405
        %1409 = vmatprep.subr.bf16.mxu0 0
        %1410 = vmatpush1.bf16.xpose.msra.mxu0 0
        %1411 = vmatprep.subr.bf16.mxu0 0
        %1412 = vmatpush1.bf16.xpose.msra.mxu0 0
        %1413 = vmatprep.subr.bf16.mxu0 0
        %1414 = vmatpush1.bf16.xpose.msra.mxu0 0
        %1415 = vmatprep.subr.bf16.mxu0 0
        %1416 = vmatpush1.bf16.xpose.msra.mxu0 0
        %1417 = vmatprep.subr.bf16.mxu0 0
        %1418 = vmatpush1.bf16.xpose.msra.mxu0 0
        %1419 = vmatprep.subr.bf16.mxu0 0
        %1420 = vmatpush1.bf16.xpose.msra.mxu0 0
        %1421 = vmatprep.subr.bf16.mxu0 0
        %1422 = vmatpush1.bf16.xpose.msra.mxu0 0
        %1423 = vmatprep.subr.bf16.mxu0 0
        %1424 = vmatpush1.bf16.xpose.msra.mxu0 0
        %1425 = vmatprep.subr.bf16.mxu0 0
        %1426 = vmatpush1.bf16.xpose.msra.mxu0 0
        %1427 = vmatprep.subr.bf16.mxu0 0
        %1428 = vmatpush1.bf16.xpose.msra.mxu0 0
        %1429 = vmatprep.subr.bf16.mxu0 0
        %1430 = vmatpush1.bf16.xpose.msra.mxu0 0
        %1431 = vmatprep.subr.bf16.mxu0 0
        %1432 = vmatpush1.bf16.xpose.msra.mxu0 0
        %1433 = vmatprep.subr.bf16.mxu0 0
        %1434 = vmatpush1.bf16.xpose.msra.mxu0 0
        %1435 = vmatprep.subr.bf16.mxu0 0
        %1436 = vmatpush1.bf16.xpose.msra.mxu0 0
        %1437 = vmatprep.subr.bf16.mxu0 0
        %1438 = vmatpush1.bf16.xpose.msra.mxu0 0
        %1439 = vmatprep.mubr.bf16.mxu0 0
        %1440 = vmatmul.mubr.bf16.gmra.mrb[0].mxu0 %v1402
        %v1441 = vpop.f32.mrb[0].mxu0
        %v1442 = vadd.f32 %v1112, %v1441
        %v1443 = vpop.f32.mrb[0].mxu0
        %v1444 = vpop.f32.mrb[0].mxu0
        %v1445 = vpop.f32.mrb[0].mxu0
        %1446 = vdwg.mxu0
        %v1448 = vsel %vm612, %v866, 0
        %v1451 = vsel %vm612, %v971, 0
        %1453 = vmatprep.subr.bf16.mxu0 0
        %1454 = vmatpush1.bf16.xpose.msra.mxu0 %v1451
        %1455 = vmatprep.subr.bf16.mxu0 0
        %1456 = vmatpush1.bf16.xpose.msra.mxu0 0
        %1457 = vmatprep.subr.bf16.mxu0 0
        %1458 = vmatpush1.bf16.xpose.msra.mxu0 0
        %1459 = vmatprep.subr.bf16.mxu0 0
        %1460 = vmatpush1.bf16.xpose.msra.mxu0 0
        %1461 = vmatprep.subr.bf16.mxu0 0
        %1462 = vmatpush1.bf16.xpose.msra.mxu0 0
        %1463 = vmatprep.subr.bf16.mxu0 0
        %1464 = vmatpush1.bf16.xpose.msra.mxu0 0
        %1465 = vmatprep.subr.bf16.mxu0 0
        %1466 = vmatpush1.bf16.xpose.msra.mxu0 0
        %1467 = vmatprep.subr.bf16.mxu0 0
        %1468 = vmatpush1.bf16.xpose.msra.mxu0 0
        %1469 = vmatprep.subr.bf16.mxu0 0
        %1470 = vmatpush1.bf16.xpose.msra.mxu0 0
        %1471 = vmatprep.subr.bf16.mxu0 0
        %1472 = vmatpush1.bf16.xpose.msra.mxu0 0
        %1473 = vmatprep.subr.bf16.mxu0 0
        %1474 = vmatpush1.bf16.xpose.msra.mxu0 0
        %1475 = vmatprep.subr.bf16.mxu0 0
        %1476 = vmatpush1.bf16.xpose.msra.mxu0 0
        %1477 = vmatprep.subr.bf16.mxu0 0
        %1478 = vmatpush1.bf16.xpose.msra.mxu0 0
        %1479 = vmatprep.subr.bf16.mxu0 0
        %1480 = vmatpush1.bf16.xpose.msra.mxu0 0
        %1481 = vmatprep.subr.bf16.mxu0 0
        %1482 = vmatpush1.bf16.xpose.msra.mxu0 0
        %1483 = vmatprep.subr.bf16.mxu0 0
        %1484 = vmatpush1.bf16.xpose.msra.mxu0 0
        %1485 = vmatprep.mubr.bf16.mxu0 0
        %1486 = vmatmul.mubr.bf16.gmra.mrb[0].mxu0 %v1448
        %v1487 = vpop.f32.mrb[0].mxu0
        %v1488 = vadd.f32 %v1116, %v1487
        %v1489 = vpop.f32.mrb[0].mxu0
        %v1490 = vpop.f32.mrb[0].mxu0
        %v1491 = vpop.f32.mrb[0].mxu0
        %1492 = vdwg.mxu0
        %vm1493 = vcmask 64512
        %v1494 = vsel %vm1493, %v1166, -inf
        %1495 = vmax.xlane.f32.xlu0 %v1494
        %v1496 = vpop.xlane.xlu0 %1495
        %v1497 = vsel %vm1493, %v1212, -inf
        %1498 = vmax.xlane.f32.xlu0 %v1497
        %v1499 = vpop.xlane.xlu0 %1498
        %v1500 = vsel %vm1493, %v1258, -inf
        %1501 = vmax.xlane.f32.xlu0 %v1500
        %v1502 = vpop.xlane.xlu0 %1501
        %v1503 = vsel %vm1493, %v1304, -inf
        %1504 = vmax.xlane.f32.xlu0 %v1503
        %v1505 = vpop.xlane.xlu0 %1504
        %v1506 = vsel %vm1493, %v1350, -inf
        %1507 = vmax.xlane.f32.xlu0 %v1506
        %v1508 = vpop.xlane.xlu0 %1507
        %v1509 = vsel %vm1493, %v1396, -inf
        %1510 = vmax.xlane.f32.xlu0 %v1509
        %v1511 = vpop.xlane.xlu0 %1510
        %v1512 = vsel %vm1493, %v1442, -inf
        %1513 = vmax.xlane.f32.xlu0 %v1512
        %v1514 = vpop.xlane.xlu0 %1513
        %v1515 = vsel %vm1493, %v1488, -inf
        %1516 = vmax.xlane.f32.xlu0 %v1515
        %v1517 = vpop.xlane.xlu0 %1516
        %v1518 = vsub.f32 %v1166, %v1496
        %v1519 = vsub.f32 %v1212, %v1499
        %v1520 = vsub.f32 %v1258, %v1502
        %v1521 = vsub.f32 %v1304, %v1505
        %v1522 = vsub.f32 %v1350, %v1508
        %v1523 = vsub.f32 %v1396, %v1511
        %v1524 = vsub.f32 %v1442, %v1514
        %v1525 = vsub.f32 %v1488, %v1517
        %v1526 = vmul.f32 %v1518, 1.442695
        %v1527 = vpow.pop %v1526
        %v1528 = vmul.f32 %v1519, 1.442695
        %v1529 = vpow.pop %v1528
        %v1530 = vmul.f32 %v1520, 1.442695
        %v1531 = vpow.pop %v1530
        %v1532 = vmul.f32 %v1521, 1.442695
        %v1533 = vpow.pop %v1532
        %v1534 = vmul.f32 %v1522, 1.442695
        %v1535 = vpow.pop %v1534
        %v1536 = vmul.f32 %v1523, 1.442695
        %v1537 = vpow.pop %v1536
        %v1538 = vmul.f32 %v1524, 1.442695
        %v1539 = vpow.pop %v1538
        %v1540 = vmul.f32 %v1525, 1.442695
        %v1541 = vpow.pop %v1540
        %v1542 = vsel %vm1493, %v1527, 0.0
        %1543 = vadd.xlane.f32.xlu0 %v1542
        %v1544 = vpop.xlane.xlu0 %1543
        %v1545 = vsel %vm1493, %v1529, 0.0
        %1546 = vadd.xlane.f32.xlu0 %v1545
        %v1547 = vpop.xlane.xlu0 %1546
        %v1548 = vsel %vm1493, %v1531, 0.0
        %1549 = vadd.xlane.f32.xlu0 %v1548
        %v1550 = vpop.xlane.xlu0 %1549
        %v1551 = vsel %vm1493, %v1533, 0.0
        %1552 = vadd.xlane.f32.xlu0 %v1551
        %v1553 = vpop.xlane.xlu0 %1552
        %v1554 = vsel %vm1493, %v1535, 0.0
        %1555 = vadd.xlane.f32.xlu0 %v1554
        %v1556 = vpop.xlane.xlu0 %1555
        %v1557 = vsel %vm1493, %v1537, 0.0
        %1558 = vadd.xlane.f32.xlu0 %v1557
        %v1559 = vpop.xlane.xlu0 %1558
        %v1560 = vsel %vm1493, %v1539, 0.0
        %1561 = vadd.xlane.f32.xlu0 %v1560
        %v1562 = vpop.xlane.xlu0 %1561
        %v1563 = vsel %vm1493, %v1541, 0.0
        %1564 = vadd.xlane.f32.xlu0 %v1563
        %v1565 = vpop.xlane.xlu0 %1564
        %v1566 = vrcp.pop %v1544
        %v1567 = vrcp.pop %v1547
        %v1568 = vrcp.pop %v1550
        %v1569 = vrcp.pop %v1553
        %v1570 = vrcp.pop %v1556
        %v1571 = vrcp.pop %v1559
        %v1572 = vrcp.pop %v1562
        %v1573 = vrcp.pop %v1565
        %v1574 = vmul.f32 %v1527, %v1566
        %v1575 = vmul.f32 %v1529, %v1567
        %v1576 = vmul.f32 %v1531, %v1568
        %v1577 = vmul.f32 %v1533, %v1569
        %v1578 = vmul.f32 %v1535, %v1570
        %v1579 = vmul.f32 %v1537, %v1571
        %v1580 = vmul.f32 %v1539, %v1572
        %v1581 = vmul.f32 %v1541, %v1573
        %v1582 = vpack.c.bf16 %v1574, %v1574
        %v1583 = vpack.c.bf16 %v1575, %v1575
        %v1584 = vpack.c.bf16 %v1576, %v1576
        %v1585 = vpack.c.bf16 %v1577, %v1577
        %v1586 = vpack.c.bf16 %v1578, %v1578
        %v1587 = vpack.c.bf16 %v1579, %v1579
        %v1588 = vpack.c.bf16 %v1580, %v1580
        %v1589 = vpack.c.bf16 %v1581, %v1581
        %v1591 = vsel %vm1493, %v1582, 0
        %vm1593 = vcmask 1043456
        %v1595 = vsel %vm1593, %v1069, 0
        %1597 = vmatprep.subr.bf16.mxu0 0
        %1598 = vmatpush1.bf16.msra.mxu0 %v1595
        %1599 = vmatprep.subr.bf16.mxu0 0
        %1600 = vmatpush1.bf16.msra.mxu0 0
        %1601 = vmatprep.subr.bf16.mxu0 0
        %1602 = vmatpush1.bf16.msra.mxu0 0
        %1603 = vmatprep.subr.bf16.mxu0 0
        %1604 = vmatpush1.bf16.msra.mxu0 0
        %1605 = vmatprep.subr.bf16.mxu0 0
        %1606 = vmatpush1.bf16.msra.mxu0 0
        %1607 = vmatprep.subr.bf16.mxu0 0
        %1608 = vmatpush1.bf16.msra.mxu0 0
        %1609 = vmatprep.subr.bf16.mxu0 0
        %1610 = vmatpush1.bf16.msra.mxu0 0
        %1611 = vmatprep.subr.bf16.mxu0 0
        %1612 = vmatpush1.bf16.msra.mxu0 0
        %1613 = vmatprep.subr.bf16.mxu0 0
        %1614 = vmatpush1.bf16.msra.mxu0 0
        %1615 = vmatprep.subr.bf16.mxu0 0
        %1616 = vmatpush1.bf16.msra.mxu0 0
        %1617 = vmatprep.subr.bf16.mxu0 0
        %1618 = vmatpush1.bf16.msra.mxu0 0
        %1619 = vmatprep.subr.bf16.mxu0 0
        %1620 = vmatpush1.bf16.msra.mxu0 0
        %1621 = vmatprep.subr.bf16.mxu0 0
        %1622 = vmatpush1.bf16.msra.mxu0 0
        %1623 = vmatprep.subr.bf16.mxu0 0
        %1624 = vmatpush1.bf16.msra.mxu0 0
        %1625 = vmatprep.subr.bf16.mxu0 0
        %1626 = vmatpush1.bf16.msra.mxu0 0
        %1627 = vmatprep.subr.bf16.mxu0 0
        %1628 = vmatpush1.bf16.msra.mxu0 0
        %1629 = vmatprep.mubr.bf16.mxu0 0
        %1630 = vmatmul.mubr.bf16.gmra.mrb[0].mxu0 %v1591
        %v1631 = vpop.f32.mrb[0].mxu0
        %v1632 = vadd.f32 0.0, %v1631
        %v1633 = vpop.f32.mrb[0].mxu0
        %v1634 = vpop.f32.mrb[0].mxu0
        %v1635 = vpop.f32.mrb[0].mxu0
        %1636 = vdwg.mxu0
        %v1638 = vsel %vm1493, %v1583, 0
        %v1641 = vsel %vm1593, %v1070, 0
        %1643 = vmatprep.subr.bf16.mxu0 0
        %1644 = vmatpush1.bf16.msra.mxu0 %v1641
        %1645 = vmatprep.subr.bf16.mxu0 0
        %1646 = vmatpush1.bf16.msra.mxu0 0
        %1647 = vmatprep.subr.bf16.mxu0 0
        %1648 = vmatpush1.bf16.msra.mxu0 0
        %1649 = vmatprep.subr.bf16.mxu0 0
        %1650 = vmatpush1.bf16.msra.mxu0 0
        %1651 = vmatprep.subr.bf16.mxu0 0
        %1652 = vmatpush1.bf16.msra.mxu0 0
        %1653 = vmatprep.subr.bf16.mxu0 0
        %1654 = vmatpush1.bf16.msra.mxu0 0
        %1655 = vmatprep.subr.bf16.mxu0 0
        %1656 = vmatpush1.bf16.msra.mxu0 0
        %1657 = vmatprep.subr.bf16.mxu0 0
        %1658 = vmatpush1.bf16.msra.mxu0 0
        %1659 = vmatprep.subr.bf16.mxu0 0
        %1660 = vmatpush1.bf16.msra.mxu0 0
        %1661 = vmatprep.subr.bf16.mxu0 0
        %1662 = vmatpush1.bf16.msra.mxu0 0
        %1663 = vmatprep.subr.bf16.mxu0 0
        %1664 = vmatpush1.bf16.msra.mxu0 0
        %1665 = vmatprep.subr.bf16.mxu0 0
        %1666 = vmatpush1.bf16.msra.mxu0 0
        %1667 = vmatprep.subr.bf16.mxu0 0
        %1668 = vmatpush1.bf16.msra.mxu0 0
        %1669 = vmatprep.subr.bf16.mxu0 0
        %1670 = vmatpush1.bf16.msra.mxu0 0
        %1671 = vmatprep.subr.bf16.mxu0 0
        %1672 = vmatpush1.bf16.msra.mxu0 0
        %1673 = vmatprep.subr.bf16.mxu0 0
        %1674 = vmatpush1.bf16.msra.mxu0 0
        %1675 = vmatprep.mubr.bf16.mxu0 0
        %1676 = vmatmul.mubr.bf16.gmra.mrb[0].mxu0 %v1638
        %v1677 = vpop.f32.mrb[0].mxu0
        %v1678 = vadd.f32 0.0, %v1677
        %v1679 = vpop.f32.mrb[0].mxu0
        %v1680 = vpop.f32.mrb[0].mxu0
        %v1681 = vpop.f32.mrb[0].mxu0
        %1682 = vdwg.mxu0
        %v1684 = vsel %vm1493, %v1584, 0
        %v1687 = vsel %vm1593, %v1071, 0
        %1689 = vmatprep.subr.bf16.mxu0 0
        %1690 = vmatpush1.bf16.msra.mxu0 %v1687
        %1691 = vmatprep.subr.bf16.mxu0 0
        %1692 = vmatpush1.bf16.msra.mxu0 0
        %1693 = vmatprep.subr.bf16.mxu0 0
        %1694 = vmatpush1.bf16.msra.mxu0 0
        %1695 = vmatprep.subr.bf16.mxu0 0
        %1696 = vmatpush1.bf16.msra.mxu0 0
        %1697 = vmatprep.subr.bf16.mxu0 0
        %1698 = vmatpush1.bf16.msra.mxu0 0
        %1699 = vmatprep.subr.bf16.mxu0 0
        %1700 = vmatpush1.bf16.msra.mxu0 0
        %1701 = vmatprep.subr.bf16.mxu0 0
        %1702 = vmatpush1.bf16.msra.mxu0 0
        %1703 = vmatprep.subr.bf16.mxu0 0
        %1704 = vmatpush1.bf16.msra.mxu0 0
        %1705 = vmatprep.subr.bf16.mxu0 0
        %1706 = vmatpush1.bf16.msra.mxu0 0
        %1707 = vmatprep.subr.bf16.mxu0 0
        %1708 = vmatpush1.bf16.msra.mxu0 0
        %1709 = vmatprep.subr.bf16.mxu0 0
        %1710 = vmatpush1.bf16.msra.mxu0 0
        %1711 = vmatprep.subr.bf16.mxu0 0
        %1712 = vmatpush1.bf16.msra.mxu0 0
        %1713 = vmatprep.subr.bf16.mxu0 0
        %1714 = vmatpush1.bf16.msra.mxu0 0
        %1715 = vmatprep.subr.bf16.mxu0 0
        %1716 = vmatpush1.bf16.msra.mxu0 0
        %1717 = vmatprep.subr.bf16.mxu0 0
        %1718 = vmatpush1.bf16.msra.mxu0 0
        %1719 = vmatprep.subr.bf16.mxu0 0
        %1720 = vmatpush1.bf16.msra.mxu0 0
        %1721 = vmatprep.mubr.bf16.mxu0 0
        %1722 = vmatmul.mubr.bf16.gmra.mrb[0].mxu0 %v1684
        %v1723 = vpop.f32.mrb[0].mxu0
        %v1724 = vadd.f32 0.0, %v1723
        %v1725 = vpop.f32.mrb[0].mxu0
        %v1726 = vpop.f32.mrb[0].mxu0
        %v1727 = vpop.f32.mrb[0].mxu0
        %1728 = vdwg.mxu0
        %v1730 = vsel %vm1493, %v1585, 0
        %v1733 = vsel %vm1593, %v1072, 0
        %1735 = vmatprep.subr.bf16.mxu0 0
        %1736 = vmatpush1.bf16.msra.mxu0 %v1733
        %1737 = vmatprep.subr.bf16.mxu0 0
        %1738 = vmatpush1.bf16.msra.mxu0 0
        %1739 = vmatprep.subr.bf16.mxu0 0
        %1740 = vmatpush1.bf16.msra.mxu0 0
        %1741 = vmatprep.subr.bf16.mxu0 0
        %1742 = vmatpush1.bf16.msra.mxu0 0
        %1743 = vmatprep.subr.bf16.mxu0 0
        %1744 = vmatpush1.bf16.msra.mxu0 0
        %1745 = vmatprep.subr.bf16.mxu0 0
        %1746 = vmatpush1.bf16.msra.mxu0 0
        %1747 = vmatprep.subr.bf16.mxu0 0
        %1748 = vmatpush1.bf16.msra.mxu0 0
        %1749 = vmatprep.subr.bf16.mxu0 0
        %1750 = vmatpush1.bf16.msra.mxu0 0
        %1751 = vmatprep.subr.bf16.mxu0 0
        %1752 = vmatpush1.bf16.msra.mxu0 0
        %1753 = vmatprep.subr.bf16.mxu0 0
        %1754 = vmatpush1.bf16.msra.mxu0 0
        %1755 = vmatprep.subr.bf16.mxu0 0
        %1756 = vmatpush1.bf16.msra.mxu0 0
        %1757 = vmatprep.subr.bf16.mxu0 0
        %1758 = vmatpush1.bf16.msra.mxu0 0
        %1759 = vmatprep.subr.bf16.mxu0 0
        %1760 = vmatpush1.bf16.msra.mxu0 0
        %1761 = vmatprep.subr.bf16.mxu0 0
        %1762 = vmatpush1.bf16.msra.mxu0 0
        %1763 = vmatprep.subr.bf16.mxu0 0
        %1764 = vmatpush1.bf16.msra.mxu0 0
        %1765 = vmatprep.subr.bf16.mxu0 0
        %1766 = vmatpush1.bf16.msra.mxu0 0
        %1767 = vmatprep.mubr.bf16.mxu0 0
        %1768 = vmatmul.mubr.bf16.gmra.mrb[0].mxu0 %v1730
        %v1769 = vpop.f32.mrb[0].mxu0
        %v1770 = vadd.f32 0.0, %v1769
        %v1771 = vpop.f32.mrb[0].mxu0
        %v1772 = vpop.f32.mrb[0].mxu0
        %v1773 = vpop.f32.mrb[0].mxu0
        %1774 = vdwg.mxu0
        %v1776 = vsel %vm1493, %v1586, 0
        %v1779 = vsel %vm1593, %v1073, 0
        %1781 = vmatprep.subr.bf16.mxu0 0
        %1782 = vmatpush1.bf16.msra.mxu0 %v1779
        %1783 = vmatprep.subr.bf16.mxu0 0
        %1784 = vmatpush1.bf16.msra.mxu0 0
        %1785 = vmatprep.subr.bf16.mxu0 0
        %1786 = vmatpush1.bf16.msra.mxu0 0
        %1787 = vmatprep.subr.bf16.mxu0 0
        %1788 = vmatpush1.bf16.msra.mxu0 0
        %1789 = vmatprep.subr.bf16.mxu0 0
        %1790 = vmatpush1.bf16.msra.mxu0 0
        %1791 = vmatprep.subr.bf16.mxu0 0
        %1792 = vmatpush1.bf16.msra.mxu0 0
        %1793 = vmatprep.subr.bf16.mxu0 0
        %1794 = vmatpush1.bf16.msra.mxu0 0
        %1795 = vmatprep.subr.bf16.mxu0 0
        %1796 = vmatpush1.bf16.msra.mxu0 0
        %1797 = vmatprep.subr.bf16.mxu0 0
        %1798 = vmatpush1.bf16.msra.mxu0 0
        %1799 = vmatprep.subr.bf16.mxu0 0
        %1800 = vmatpush1.bf16.msra.mxu0 0
        %1801 = vmatprep.subr.bf16.mxu0 0
        %1802 = vmatpush1.bf16.msra.mxu0 0
        %1803 = vmatprep.subr.bf16.mxu0 0
        %1804 = vmatpush1.bf16.msra.mxu0 0
        %1805 = vmatprep.subr.bf16.mxu0 0
        %1806 = vmatpush1.bf16.msra.mxu0 0
        %1807 = vmatprep.subr.bf16.mxu0 0
        %1808 = vmatpush1.bf16.msra.mxu0 0
        %1809 = vmatprep.subr.bf16.mxu0 0
        %1810 = vmatpush1.bf16.msra.mxu0 0
        %1811 = vmatprep.subr.bf16.mxu0 0
        %1812 = vmatpush1.bf16.msra.mxu0 0
        %1813 = vmatprep.mubr.bf16.mxu0 0
        %1814 = vmatmul.mubr.bf16.gmra.mrb[0].mxu0 %v1776
        %v1815 = vpop.f32.mrb[0].mxu0
        %v1816 = vadd.f32 0.0, %v1815
        %v1817 = vpop.f32.mrb[0].mxu0
        %v1818 = vpop.f32.mrb[0].mxu0
        %v1819 = vpop.f32.mrb[0].mxu0
        %1820 = vdwg.mxu0
        %v1822 = vsel %vm1493, %v1587, 0
        %v1825 = vsel %vm1593, %v1074, 0
        %1827 = vmatprep.subr.bf16.mxu0 0
        %1828 = vmatpush1.bf16.msra.mxu0 %v1825
        %1829 = vmatprep.subr.bf16.mxu0 0
        %1830 = vmatpush1.bf16.msra.mxu0 0
        %1831 = vmatprep.subr.bf16.mxu0 0
        %1832 = vmatpush1.bf16.msra.mxu0 0
        %1833 = vmatprep.subr.bf16.mxu0 0
        %1834 = vmatpush1.bf16.msra.mxu0 0
        %1835 = vmatprep.subr.bf16.mxu0 0
        %1836 = vmatpush1.bf16.msra.mxu0 0
        %1837 = vmatprep.subr.bf16.mxu0 0
        %1838 = vmatpush1.bf16.msra.mxu0 0
        %1839 = vmatprep.subr.bf16.mxu0 0
        %1840 = vmatpush1.bf16.msra.mxu0 0
        %1841 = vmatprep.subr.bf16.mxu0 0
        %1842 = vmatpush1.bf16.msra.mxu0 0
        %1843 = vmatprep.subr.bf16.mxu0 0
        %1844 = vmatpush1.bf16.msra.mxu0 0
        %1845 = vmatprep.subr.bf16.mxu0 0
        %1846 = vmatpush1.bf16.msra.mxu0 0
        %1847 = vmatprep.subr.bf16.mxu0 0
        %1848 = vmatpush1.bf16.msra.mxu0 0
        %1849 = vmatprep.subr.bf16.mxu0 0
        %1850 = vmatpush1.bf16.msra.mxu0 0
        %1851 = vmatprep.subr.bf16.mxu0 0
        %1852 = vmatpush1.bf16.msra.mxu0 0
        %1853 = vmatprep.subr.bf16.mxu0 0
        %1854 = vmatpush1.bf16.msra.mxu0 0
        %1855 = vmatprep.subr.bf16.mxu0 0
        %1856 = vmatpush1.bf16.msra.mxu0 0
        %1857 = vmatprep.subr.bf16.mxu0 0
        %1858 = vmatpush1.bf16.msra.mxu0 0
        %1859 = vmatprep.mubr.bf16.mxu0 0
        %1860 = vmatmul.mubr.bf16.gmra.mrb[0].mxu0 %v1822
        %v1861 = vpop.f32.mrb[0].mxu0
        %v1862 = vadd.f32 0.0, %v1861
        %v1863 = vpop.f32.mrb[0].mxu0
        %v1864 = vpop.f32.mrb[0].mxu0
        %v1865 = vpop.f32.mrb[0].mxu0
        %1866 = vdwg.mxu0
        %v1868 = vsel %vm1493, %v1588, 0
        %v1871 = vsel %vm1593, %v1075, 0
        %1873 = vmatprep.subr.bf16.mxu0 0
        %1874 = vmatpush1.bf16.msra.mxu0 %v1871
        %1875 = vmatprep.subr.bf16.mxu0 0
        %1876 = vmatpush1.bf16.msra.mxu0 0
        %1877 = vmatprep.subr.bf16.mxu0 0
        %1878 = vmatpush1.bf16.msra.mxu0 0
        %1879 = vmatprep.subr.bf16.mxu0 0
        %1880 = vmatpush1.bf16.msra.mxu0 0
        %1881 = vmatprep.subr.bf16.mxu0 0
        %1882 = vmatpush1.bf16.msra.mxu0 0
        %1883 = vmatprep.subr.bf16.mxu0 0
        %1884 = vmatpush1.bf16.msra.mxu0 0
        %1885 = vmatprep.subr.bf16.mxu0 0
        %1886 = vmatpush1.bf16.msra.mxu0 0
        %1887 = vmatprep.subr.bf16.mxu0 0
        %1888 = vmatpush1.bf16.msra.mxu0 0
        %1889 = vmatprep.subr.bf16.mxu0 0
        %1890 = vmatpush1.bf16.msra.mxu0 0
        %1891 = vmatprep.subr.bf16.mxu0 0
        %1892 = vmatpush1.bf16.msra.mxu0 0
        %1893 = vmatprep.subr.bf16.mxu0 0
        %1894 = vmatpush1.bf16.msra.mxu0 0
        %1895 = vmatprep.subr.bf16.mxu0 0
        %1896 = vmatpush1.bf16.msra.mxu0 0
        %1897 = vmatprep.subr.bf16.mxu0 0
        %1898 = vmatpush1.bf16.msra.mxu0 0
        %1899 = vmatprep.subr.bf16.mxu0 0
        %1900 = vmatpush1.bf16.msra.mxu0 0
        %1901 = vmatprep.subr.bf16.mxu0 0
        %1902 = vmatpush1.bf16.msra.mxu0 0
        %1903 = vmatprep.subr.bf16.mxu0 0
        %1904 = vmatpush1.bf16.msra.mxu0 0
        %1905 = vmatprep.mubr.bf16.mxu0 0
        %1906 = vmatmul.mubr.bf16.gmra.mrb[0].mxu0 %v1868
        %v1907 = vpop.f32.mrb[0].mxu0
        %v1908 = vadd.f32 0.0, %v1907
        %v1909 = vpop.f32.mrb[0].mxu0
        %v1910 = vpop.f32.mrb[0].mxu0
        %v1911 = vpop.f32.mrb[0].mxu0
        %1912 = vdwg.mxu0
        %v1914 = vsel %vm1493, %v1589, 0
        %v1917 = vsel %vm1593, %v1076, 0
        %1919 = vmatprep.subr.bf16.mxu0 0
        %1920 = vmatpush1.bf16.msra.mxu0 %v1917
        %1921 = vmatprep.subr.bf16.mxu0 0
        %1922 = vmatpush1.bf16.msra.mxu0 0
        %1923 = vmatprep.subr.bf16.mxu0 0
        %1924 = vmatpush1.bf16.msra.mxu0 0
        %1925 = vmatprep.subr.bf16.mxu0 0
        %1926 = vmatpush1.bf16.msra.mxu0 0
        %1927 = vmatprep.subr.bf16.mxu0 0
        %1928 = vmatpush1.bf16.msra.mxu0 0
        %1929 = vmatprep.subr.bf16.mxu0 0
        %1930 = vmatpush1.bf16.msra.mxu0 0
        %1931 = vmatprep.subr.bf16.mxu0 0
        %1932 = vmatpush1.bf16.msra.mxu0 0
        %1933 = vmatprep.subr.bf16.mxu0 0
        %1934 = vmatpush1.bf16.msra.mxu0 0
        %1935 = vmatprep.subr.bf16.mxu0 0
        %1936 = vmatpush1.bf16.msra.mxu0 0
        %1937 = vmatprep.subr.bf16.mxu0 0
        %1938 = vmatpush1.bf16.msra.mxu0 0
        %1939 = vmatprep.subr.bf16.mxu0 0
        %1940 = vmatpush1.bf16.msra.mxu0 0
        %1941 = vmatprep.subr.bf16.mxu0 0
        %1942 = vmatpush1.bf16.msra.mxu0 0
        %1943 = vmatprep.subr.bf16.mxu0 0
        %1944 = vmatpush1.bf16.msra.mxu0 0
        %1945 = vmatprep.subr.bf16.mxu0 0
        %1946 = vmatpush1.bf16.msra.mxu0 0
        %1947 = vmatprep.subr.bf16.mxu0 0
        %1948 = vmatpush1.bf16.msra.mxu0 0
        %1949 = vmatprep.subr.bf16.mxu0 0
        %1950 = vmatpush1.bf16.msra.mxu0 0
        %1951 = vmatprep.mubr.bf16.mxu0 0
        %1952 = vmatmul.mubr.bf16.gmra.mrb[0].mxu0 %v1914
        %v1953 = vpop.f32.mrb[0].mxu0
        %v1954 = vadd.f32 0.0, %v1953
        %v1955 = vpop.f32.mrb[0].mxu0
        %v1956 = vpop.f32.mrb[0].mxu0
        %v1957 = vpop.f32.mrb[0].mxu0
        %1958 = vdwg.mxu0
        %v1959 = vpack.c.bf16 %v1632, %v1632
        %v1960 = vpack.c.bf16 %v1678, %v1678
        %v1961 = vpack.c.bf16 %v1724, %v1724
        %v1962 = vpack.c.bf16 %v1770, %v1770
        %v1963 = vpack.c.bf16 %v1816, %v1816
        %v1964 = vpack.c.bf16 %v1862, %v1862
        %v1965 = vpack.c.bf16 %v1908, %v1908
        %v1966 = vpack.c.bf16 %v1954, %v1954
        %v1967 = vld [vmem:[#allocation5] sm:$0xf]
        %v1968 = vld [vmem:[#allocation5 + $0x4] sm:$0xf]
        %v1969 = vld [vmem:[#allocation5 + $0x8] sm:$0xf]
        %v1970 = vld [vmem:[#allocation5 + $0xc] sm:$0xf]
        %v1979 = vunpack.c.l.b16 %v1959
        %v1980 = vunpack.c.l.b16 %v1960
        %v1981 = vunpack.c.l.b16 %v1961
        %v1982 = vunpack.c.l.b16 %v1962
        %v1983 = vunpack.c.l.b16 %v1963
        %v1984 = vunpack.c.l.b16 %v1964
        %v1985 = vunpack.c.l.b16 %v1965
        %v1986 = vunpack.c.l.b16 %v1966
        %v1987 = vpack.c.b16 %v1980, %v1979
        %v1988 = vpack.c.b16 %v1982, %v1981
        %v1989 = vpack.c.b16 %v1984, %v1983
        %v1990 = vpack.c.b16 %v1986, %v1985
        %v1995 = vunpack.c.l.b16 %v1967
        %v1996 = vunpack.c.l.b16 %v1968
        %v1997 = vunpack.c.l.b16 %v1969
        %v1998 = vunpack.c.l.b16 %v1970
        %v1999 = vpack.c.b16 %v1996, %v1995
        %v2000 = vpack.c.b16 %v1998, %v1997
        %v2004 = vsel %vm612, %v1987, 0
        %v2007 = vsel %vm612, %v1988, 0
        %v2010 = vsel %vm612, %v1989, 0
        %v2013 = vsel %vm612, %v1990, 0
        %2015 = vmatprep.subr.bf16.mxu0 0
        %2016 = vmatpush1.bf16.msra.mxu0 %v1999
        %2017 = vmatprep.subr.bf16.mxu0 0
        %2018 = vmatpush1.bf16.msra.mxu0 %v2000
        %2019 = vmatprep.subr.bf16.mxu0 0
        %2020 = vmatpush1.bf16.msra.mxu0 0
        %2021 = vmatprep.subr.bf16.mxu0 0
        %2022 = vmatpush1.bf16.msra.mxu0 0
        %2023 = vmatprep.subr.bf16.mxu0 0
        %2024 = vmatpush1.bf16.msra.mxu0 0
        %2025 = vmatprep.subr.bf16.mxu0 0
        %2026 = vmatpush1.bf16.msra.mxu0 0
        %2027 = vmatprep.subr.bf16.mxu0 0
        %2028 = vmatpush1.bf16.msra.mxu0 0
        %2029 = vmatprep.subr.bf16.mxu0 0
        %2030 = vmatpush1.bf16.msra.mxu0 0
        %2031 = vmatprep.subr.bf16.mxu0 0
        %2032 = vmatpush1.bf16.msra.mxu0 0
        %2033 = vmatprep.subr.bf16.mxu0 0
        %2034 = vmatpush1.bf16.msra.mxu0 0
        %2035 = vmatprep.subr.bf16.mxu0 0
        %2036 = vmatpush1.bf16.msra.mxu0 0
        %2037 = vmatprep.subr.bf16.mxu0 0
        %2038 = vmatpush1.bf16.msra.mxu0 0
        %2039 = vmatprep.subr.bf16.mxu0 0
        %2040 = vmatpush1.bf16.msra.mxu0 0
        %2041 = vmatprep.subr.bf16.mxu0 0
        %2042 = vmatpush1.bf16.msra.mxu0 0
        %2043 = vmatprep.subr.bf16.mxu0 0
        %2044 = vmatpush1.bf16.msra.mxu0 0
        %2045 = vmatprep.subr.bf16.mxu0 0
        %2046 = vmatpush1.bf16.msra.mxu0 0
        %2047 = vmatprep.mubr.bf16.mxu0 0
        %2048 = vmatmul.mubr.bf16.gmra.mrb[0].mxu0 %v2004
        %v2049 = vpop.f32.mrb[0].mxu0
        %v2050 = vadd.f32 0.0, %v2049
        %v2051 = vpop.f32.mrb[0].mxu0
        %v2052 = vpop.f32.mrb[0].mxu0
        %v2053 = vadd.f32 0.0, %v2052
        %v2054 = vpop.f32.mrb[0].mxu0
        %2055 = vmatprep.mubr.bf16.mxu0 0
        %2056 = vmatmul.mubr.bf16.gmra.mrb[0].mxu0 %v2007
        %v2057 = vpop.f32.mrb[0].mxu0
        %v2058 = vadd.f32 0.0, %v2057
        %v2059 = vpop.f32.mrb[0].mxu0
        %v2060 = vpop.f32.mrb[0].mxu0
        %v2061 = vadd.f32 0.0, %v2060
        %v2062 = vpop.f32.mrb[0].mxu0
        %2063 = vmatprep.mubr.bf16.mxu0 0
        %2064 = vmatmul.mubr.bf16.gmra.mrb[0].mxu0 %v2010
        %v2065 = vpop.f32.mrb[0].mxu0
        %v2066 = vadd.f32 0.0, %v2065
        %v2067 = vpop.f32.mrb[0].mxu0
        %v2068 = vpop.f32.mrb[0].mxu0
        %v2069 = vadd.f32 0.0, %v2068
        %v2070 = vpop.f32.mrb[0].mxu0
        %2071 = vmatprep.mubr.bf16.mxu0 0
        %2072 = vmatmul.mubr.bf16.gmra.mrb[0].mxu0 %v2013
        %v2073 = vpop.f32.mrb[0].mxu0
        %v2074 = vadd.f32 0.0, %v2073
        %v2075 = vpop.f32.mrb[0].mxu0
        %v2076 = vpop.f32.mrb[0].mxu0
        %v2077 = vadd.f32 0.0, %v2076
        %v2078 = vpop.f32.mrb[0].mxu0
        %2079 = vdwg.mxu0
        %v2080 = vadd.f32 %v738, %v2050
        %v2081 = vadd.f32 %v739, %v2053
        %v2082 = vadd.f32 %v740, %v2058
        %v2083 = vadd.f32 %v741, %v2061
        %v2084 = vadd.f32 %v742, %v2066
        %v2085 = vadd.f32 %v743, %v2069
        %v2086 = vadd.f32 %v744, %v2074
        %v2087 = vadd.f32 %v745, %v2077
        %v2088 = vld [vmem:[%s10] sm:$0x1]
        %v2089 = vld [vmem:[%s11] sm:$0x1]
        %v2090 = vsel %vm612, %v2080, 0.0
        %2091 = vadd.xlane.f32.xlu0 %v2090
        %v2092 = vpop.xlane.xlu0 %2091
        %v2093 = vsel %vm612, %v2081, 0.0
        %2094 = vadd.xlane.f32.xlu0 %v2093
        %v2095 = vpop.xlane.xlu0 %2094
        %v2096 = vsel %vm612, %v2082, 0.0
        %2097 = vadd.xlane.f32.xlu0 %v2096
        %v2098 = vpop.xlane.xlu0 %2097
        %v2099 = vsel %vm612, %v2083, 0.0
        %2100 = vadd.xlane.f32.xlu0 %v2099
        %v2101 = vpop.xlane.xlu0 %2100
        %v2102 = vsel %vm612, %v2084, 0.0
        %2103 = vadd.xlane.f32.xlu0 %v2102
        %v2104 = vpop.xlane.xlu0 %2103
        %v2105 = vsel %vm612, %v2085, 0.0
        %2106 = vadd.xlane.f32.xlu0 %v2105
        %v2107 = vpop.xlane.xlu0 %2106
        %v2108 = vsel %vm612, %v2086, 0.0
        %2109 = vadd.xlane.f32.xlu0 %v2108
        %v2110 = vpop.xlane.xlu0 %2109
        %v2111 = vsel %vm612, %v2087, 0.0
        %2112 = vadd.xlane.f32.xlu0 %v2111
        %v2113 = vpop.xlane.xlu0 %2112
        %v2114 = vmul.f32 %v2092, %v637
        %v2115 = vmul.f32 %v2095, %v637
        %v2116 = vmul.f32 %v2098, %v637
        %v2117 = vmul.f32 %v2101, %v637
        %v2118 = vmul.f32 %v2104, %v637
        %v2119 = vmul.f32 %v2107, %v637
        %v2120 = vmul.f32 %v2110, %v637
        %v2121 = vmul.f32 %v2113, %v637
        %v2122 = vsub.f32 %v2080, %v2114
        %v2123 = vsub.f32 %v2081, %v2115
        %v2124 = vsub.f32 %v2082, %v2116
        %v2125 = vsub.f32 %v2083, %v2117
        %v2126 = vsub.f32 %v2084, %v2118
        %v2127 = vsub.f32 %v2085, %v2119
        %v2128 = vsub.f32 %v2086, %v2120
        %v2129 = vsub.f32 %v2087, %v2121
        %v2130 = vmul.f32 %v2122, %v2122
        %v2131 = vmul.f32 %v2123, %v2123
        %v2132 = vmul.f32 %v2124, %v2124
        %v2133 = vmul.f32 %v2125, %v2125
        %v2134 = vmul.f32 %v2126, %v2126
        %v2135 = vmul.f32 %v2127, %v2127
        %v2136 = vmul.f32 %v2128, %v2128
        %v2137 = vmul.f32 %v2129, %v2129
        %v2138 = vsel %vm612, %v2130, 0.0
        %2139 = vadd.xlane.f32.xlu0 %v2138
        %v2140 = vpop.xlane.xlu0 %2139
        %v2141 = vsel %vm612, %v2131, 0.0
        %2142 = vadd.xlane.f32.xlu0 %v2141
        %v2143 = vpop.xlane.xlu0 %2142
        %v2144 = vsel %vm612, %v2132, 0.0
        %2145 = vadd.xlane.f32.xlu0 %v2144
        %v2146 = vpop.xlane.xlu0 %2145
        %v2147 = vsel %vm612, %v2133, 0.0
        %2148 = vadd.xlane.f32.xlu0 %v2147
        %v2149 = vpop.xlane.xlu0 %2148
        %v2150 = vsel %vm612, %v2134, 0.0
        %2151 = vadd.xlane.f32.xlu0 %v2150
        %v2152 = vpop.xlane.xlu0 %2151
        %v2153 = vsel %vm612, %v2135, 0.0
        %2154 = vadd.xlane.f32.xlu0 %v2153
        %v2155 = vpop.xlane.xlu0 %2154
        %v2156 = vsel %vm612, %v2136, 0.0
        %2157 = vadd.xlane.f32.xlu0 %v2156
        %v2158 = vpop.xlane.xlu0 %2157
        %v2159 = vsel %vm612, %v2137, 0.0
        %2160 = vadd.xlane.f32.xlu0 %v2159
        %v2161 = vpop.xlane.xlu0 %2160
        %v2162 = vmul.f32 %v2140, %v637
        %v2163 = vmul.f32 %v2143, %v637
        %v2164 = vmul.f32 %v2146, %v637
        %v2165 = vmul.f32 %v2149, %v637
        %v2166 = vmul.f32 %v2152, %v637
        %v2167 = vmul.f32 %v2155, %v637
        %v2168 = vmul.f32 %v2158, %v637
        %v2169 = vmul.f32 %v2161, %v637
        %v2170 = vadd.f32 %v2162, 1e-12
        %v2171 = vadd.f32 %v2163, 1e-12
        %v2172 = vadd.f32 %v2164, 1e-12
        %v2173 = vadd.f32 %v2165, 1e-12
        %v2174 = vadd.f32 %v2166, 1e-12
        %v2175 = vadd.f32 %v2167, 1e-12
        %v2176 = vadd.f32 %v2168, 1e-12
        %v2177 = vadd.f32 %v2169, 1e-12
        %v2178 = vrsqrt.pop %v2170
        %v2179 = vrsqrt.pop %v2171
        %v2180 = vrsqrt.pop %v2172
        %v2181 = vrsqrt.pop %v2173
        %v2182 = vrsqrt.pop %v2174
        %v2183 = vrsqrt.pop %v2175
        %v2184 = vrsqrt.pop %v2176
        %v2185 = vrsqrt.pop %v2177
        %v2186 = vmul.f32 %v2122, %v2178
        %v2187 = vmul.f32 %v2123, %v2179
        %v2188 = vmul.f32 %v2124, %v2180
        %v2189 = vmul.f32 %v2125, %v2181
        %v2190 = vmul.f32 %v2126, %v2182
        %v2191 = vmul.f32 %v2127, %v2183
        %v2192 = vmul.f32 %v2128, %v2184
        %v2193 = vmul.f32 %v2129, %v2185
        %v2195 = vlaneseq
        %v2196 = vshrl.u32 %v2195, 7
        %v2197 = vsub.s32 0, %v2196
        %v2198 = vrot.slane %v2088, %v2197
        %v2200 = vmul.f32 %v2186, %v2198
        %v2201 = vmul.f32 %v2187, %v2198
        %v2202 = vmul.f32 %v2188, %v2198
        %v2203 = vmul.f32 %v2189, %v2198
        %v2204 = vmul.f32 %v2190, %v2198
        %v2205 = vmul.f32 %v2191, %v2198
        %v2206 = vmul.f32 %v2192, %v2198
        %v2207 = vmul.f32 %v2193, %v2198
        %v2209 = vlaneseq
        %v2210 = vshrl.u32 %v2209, 7
        %v2211 = vsub.s32 0, %v2210
        %v2212 = vrot.slane %v2089, %v2211
        %v2214 = vadd.f32 %v2200, %v2212
        %v2215 = vadd.f32 %v2201, %v2212
        %v2216 = vadd.f32 %v2202, %v2212
        %v2217 = vadd.f32 %v2203, %v2212
        %v2218 = vadd.f32 %v2204, %v2212
        %v2219 = vadd.f32 %v2205, %v2212
        %v2220 = vadd.f32 %v2206, %v2212
        %v2221 = vadd.f32 %v2207, %v2212
        %v2222 = vpack.c.bf16 %v2215, %v2214
        %v2223 = vpack.c.bf16 %v2217, %v2216
        %v2224 = vpack.c.bf16 %v2219, %v2218
        %v2225 = vpack.c.bf16 %v2221, %v2220
        %v2226 = vld [vmem:[#allocation7] sm:$0xf]
        %v2227 = vld [vmem:[#allocation7 + $0x4] sm:$0xf]
        %v2228 = vld [vmem:[#allocation7 + $0x8] sm:$0xf]
        %v2229 = vld [vmem:[#allocation7 + $0xc] sm:$0xf]
        %v2234 = vunpack.c.l.b16 %v2226
        %v2235 = vunpack.c.l.b16 %v2227
        %v2236 = vunpack.c.l.b16 %v2228
        %v2237 = vunpack.c.l.b16 %v2229
        %v2238 = vpack.c.b16 %v2235, %v2234
        %v2239 = vpack.c.b16 %v2237, %v2236
        %v2243 = vsel %vm612, %v2222, 0
        %v2246 = vsel %vm612, %v2223, 0
        %v2249 = vsel %vm612, %v2224, 0
        %v2252 = vsel %vm612, %v2225, 0
        %2254 = vmatprep.subr.bf16.mxu0 0
        %2255 = vmatpush1.bf16.msra.mxu0 %v2238
        %2256 = vmatprep.subr.bf16.mxu0 0
        %2257 = vmatpush1.bf16.msra.mxu0 %v2239
        %2258 = vmatprep.subr.bf16.mxu0 0
        %2259 = vmatpush1.bf16.msra.mxu0 0
        %2260 = vmatprep.subr.bf16.mxu0 0
        %2261 = vmatpush1.bf16.msra.mxu0 0
        %2262 = vmatprep.subr.bf16.mxu0 0
        %2263 = vmatpush1.bf16.msra.mxu0 0
        %2264 = vmatprep.subr.bf16.mxu0 0
        %2265 = vmatpush1.bf16.msra.mxu0 0
        %2266 = vmatprep.subr.bf16.mxu0 0
        %2267 = vmatpush1.bf16.msra.mxu0 0
        %2268 = vmatprep.subr.bf16.mxu0 0
        %2269 = vmatpush1.bf16.msra.mxu0 0
        %2270 = vmatprep.subr.bf16.mxu0 0
        %2271 = vmatpush1.bf16.msra.mxu0 0
        %2272 = vmatprep.subr.bf16.mxu0 0
        %2273 = vmatpush1.bf16.msra.mxu0 0
        %2274 = vmatprep.subr.bf16.mxu0 0
        %2275 = vmatpush1.bf16.msra.mxu0 0
        %2276 = vmatprep.subr.bf16.mxu0 0
        %2277 = vmatpush1.bf16.msra.mxu0 0
        %2278 = vmatprep.subr.bf16.mxu0 0
        %2279 = vmatpush1.bf16.msra.mxu0 0
        %2280 = vmatprep.subr.bf16.mxu0 0
        %2281 = vmatpush1.bf16.msra.mxu0 0
        %2282 = vmatprep.subr.bf16.mxu0 0
        %2283 = vmatpush1.bf16.msra.mxu0 0
        %2284 = vmatprep.subr.bf16.mxu0 0
        %2285 = vmatpush1.bf16.msra.mxu0 0
        %2286 = vmatprep.mubr.bf16.mxu0 0
        %2287 = vmatmul.mubr.bf16.gmra.mrb[0].mxu0 %v2243
        %v2288 = vpop.f32.mrb[0].mxu0
        %v2289 = vadd.f32 0.0, %v2288
        %v2290 = vpop.f32.mrb[0].mxu0
        %v2291 = vpop.f32.mrb[0].mxu0
        %v2292 = vadd.f32 0.0, %v2291
        %v2293 = vpop.f32.mrb[0].mxu0
        %2294 = vmatprep.mubr.bf16.mxu0 0
        %2295 = vmatmul.mubr.bf16.gmra.mrb[0].mxu0 %v2246
        %v2296 = vpop.f32.mrb[0].mxu0
        %v2297 = vadd.f32 0.0, %v2296
        %v2298 = vpop.f32.mrb[0].mxu0
        %v2299 = vpop.f32.mrb[0].mxu0
        %v2300 = vadd.f32 0.0, %v2299
        %v2301 = vpop.f32.mrb[0].mxu0
        %2302 = vmatprep.mubr.bf16.mxu0 0
        %2303 = vmatmul.mubr.bf16.gmra.mrb[0].mxu0 %v2249
        %v2304 = vpop.f32.mrb[0].mxu0
        %v2305 = vadd.f32 0.0, %v2304
        %v2306 = vpop.f32.mrb[0].mxu0
        %v2307 = vpop.f32.mrb[0].mxu0
        %v2308 = vadd.f32 0.0, %v2307
        %v2309 = vpop.f32.mrb[0].mxu0
        %2310 = vmatprep.mubr.bf16.mxu0 0
        %2311 = vmatmul.mubr.bf16.gmra.mrb[0].mxu0 %v2252
        %v2312 = vpop.f32.mrb[0].mxu0
        %v2313 = vadd.f32 0.0, %v2312
        %v2314 = vpop.f32.mrb[0].mxu0
        %v2315 = vpop.f32.mrb[0].mxu0
        %v2316 = vadd.f32 0.0, %v2315
        %v2317 = vpop.f32.mrb[0].mxu0
        %2318 = vdwg.mxu0
        %v2319 = vmul.f32 %v2289, %v2289
        %v2320 = vmul.f32 %v2292, %v2292
        %v2321 = vmul.f32 %v2297, %v2297
        %v2322 = vmul.f32 %v2300, %v2300
        %v2323 = vmul.f32 %v2305, %v2305
        %v2324 = vmul.f32 %v2308, %v2308
        %v2325 = vmul.f32 %v2313, %v2313
        %v2326 = vmul.f32 %v2316, %v2316
        %v2327 = vmul.f32 %v2289, %v2319
        %v2328 = vmul.f32 %v2292, %v2320
        %v2329 = vmul.f32 %v2297, %v2321
        %v2330 = vmul.f32 %v2300, %v2322
        %v2331 = vmul.f32 %v2305, %v2323
        %v2332 = vmul.f32 %v2308, %v2324
        %v2333 = vmul.f32 %v2313, %v2325
        %v2334 = vmul.f32 %v2316, %v2326
        %v2335 = vmul.f32 %v2327, 0.044715
        %v2336 = vmul.f32 %v2328, 0.044715
        %v2337 = vmul.f32 %v2329, 0.044715
        %v2338 = vmul.f32 %v2330, 0.044715
        %v2339 = vmul.f32 %v2331, 0.044715
        %v2340 = vmul.f32 %v2332, 0.044715
        %v2341 = vmul.f32 %v2333, 0.044715
        %v2342 = vmul.f32 %v2334, 0.044715
        %v2343 = vadd.f32 %v2289, %v2335
        %v2344 = vadd.f32 %v2292, %v2336
        %v2345 = vadd.f32 %v2297, %v2337
        %v2346 = vadd.f32 %v2300, %v2338
        %v2347 = vadd.f32 %v2305, %v2339
        %v2348 = vadd.f32 %v2308, %v2340
        %v2349 = vadd.f32 %v2313, %v2341
        %v2350 = vadd.f32 %v2316, %v2342
        %v2351 = vmul.f32 %v2343, 0.7978846
        %v2352 = vmul.f32 %v2344, 0.7978846
        %v2353 = vmul.f32 %v2345, 0.7978846
        %v2354 = vmul.f32 %v2346, 0.7978846
        %v2355 = vmul.f32 %v2347, 0.7978846
        %v2356 = vmul.f32 %v2348, 0.7978846
        %v2357 = vmul.f32 %v2349, 0.7978846
        %v2358 = vmul.f32 %v2350, 0.7978846
        %v2359 = vtanh.pop %v2351
        %v2360 = vtanh.pop %v2352
        %v2361 = vtanh.pop %v2353
        %v2362 = vtanh.pop %v2354
        %v2363 = vtanh.pop %v2355
        %v2364 = vtanh.pop %v2356
        %v2365 = vtanh.pop %v2357
        %v2366 = vtanh.pop %v2358
        %v2367 = vadd.f32 %v2359, 1.0
        %v2368 = vadd.f32 %v2360, 1.0
        %v2369 = vadd.f32 %v2361, 1.0
        %v2370 = vadd.f32 %v2362, 1.0
        %v2371 = vadd.f32 %v2363, 1.0
        %v2372 = vadd.f32 %v2364, 1.0
        %v2373 = vadd.f32 %v2365, 1.0
        %v2374 = vadd.f32 %v2366, 1.0
        %v2375 = vmul.f32 %v2367, 0.5
        %v2376 = vmul.f32 %v2368, 0.5
        %v2377 = vmul.f32 %v2369, 0.5
        %v2378 = vmul.f32 %v2370, 0.5
        %v2379 = vmul.f32 %v2371, 0.5
        %v2380 = vmul.f32 %v2372, 0.5
        %v2381 = vmul.f32 %v2373, 0.5
        %v2382 = vmul.f32 %v2374, 0.5
        %v2383 = vmul.f32 %v2289, %v2375
        %v2384 = vmul.f32 %v2292, %v2376
        %v2385 = vmul.f32 %v2297, %v2377
        %v2386 = vmul.f32 %v2300, %v2378
        %v2387 = vmul.f32 %v2305, %v2379
        %v2388 = vmul.f32 %v2308, %v2380
        %v2389 = vmul.f32 %v2313, %v2381
        %v2390 = vmul.f32 %v2316, %v2382
        %v2391 = vpack.c.bf16 %v2384, %v2383
        %v2392 = vpack.c.bf16 %v2386, %v2385
        %v2393 = vpack.c.bf16 %v2388, %v2387
        %v2394 = vpack.c.bf16 %v2390, %v2389
        %v2395 = vld [vmem:[%s7] sm:$0xf]
        %v2396 = vld [vmem:[%s7 + $0x4] sm:$0xf]
        %v2397 = vld [vmem:[%s7 + $0x8] sm:$0xf]
        %v2398 = vld [vmem:[%s7 + $0xc] sm:$0xf]
        %v2399 = vld [vmem:[%s7 + $0x10] sm:$0xf]
        %v2400 = vld [vmem:[%s7 + $0x14] sm:$0xf]
        %v2401 = vld [vmem:[%s7 + $0x18] sm:$0xf]
        %v2402 = vld [vmem:[%s7 + $0x1c] sm:$0xf]
        %v2403 = vld [vmem:[%s7 + $0x20] sm:$0xf]
        %v2404 = vld [vmem:[%s7 + $0x24] sm:$0xf]
        %v2405 = vld [vmem:[%s7 + $0x28] sm:$0xf]
        %v2406 = vld [vmem:[%s7 + $0x2c] sm:$0xf]
        %v2407 = vld [vmem:[%s7 + $0x30] sm:$0xf]
        %v2408 = vld [vmem:[%s7 + $0x34] sm:$0xf]
        %v2409 = vld [vmem:[%s7 + $0x38] sm:$0xf]
        %v2410 = vld [vmem:[%s7 + $0x3c] sm:$0xf]
        %v2427 = vunpack.c.l.b16 %v2395
        %v2428 = vunpack.c.l.b16 %v2396
        %v2429 = vunpack.c.l.b16 %v2397
        %v2430 = vunpack.c.l.b16 %v2398
        %v2431 = vunpack.c.l.b16 %v2399
        %v2432 = vunpack.c.l.b16 %v2400
        %v2433 = vunpack.c.l.b16 %v2401
        %v2434 = vunpack.c.l.b16 %v2402
        %v2435 = vunpack.c.l.b16 %v2403
        %v2436 = vunpack.c.l.b16 %v2404
        %v2437 = vunpack.c.l.b16 %v2405
        %v2438 = vunpack.c.l.b16 %v2406
        %v2439 = vunpack.c.l.b16 %v2407
        %v2440 = vunpack.c.l.b16 %v2408
        %v2441 = vunpack.c.l.b16 %v2409
        %v2442 = vunpack.c.l.b16 %v2410
        %v2443 = vpack.c.b16 %v2428, %v2427
        %v2444 = vpack.c.b16 %v2430, %v2429
        %v2445 = vpack.c.b16 %v2432, %v2431
        %v2446 = vpack.c.b16 %v2434, %v2433
        %v2447 = vpack.c.b16 %v2436, %v2435
        %v2448 = vpack.c.b16 %v2438, %v2437
        %v2449 = vpack.c.b16 %v2440, %v2439
        %v2450 = vpack.c.b16 %v2442, %v2441
        %2459 = vmatprep.subr.bf16.mxu0 0
        %2460 = vmatpush1.bf16.msra.mxu0 %v2443
        %2461 = vmatprep.subr.bf16.mxu0 0
        %2462 = vmatpush1.bf16.msra.mxu0 %v2444
        %2463 = vmatprep.subr.bf16.mxu0 0
        %2464 = vmatpush1.bf16.msra.mxu0 %v2445
        %2465 = vmatprep.subr.bf16.mxu0 0
        %2466 = vmatpush1.bf16.msra.mxu0 %v2446
        %2467 = vmatprep.subr.bf16.mxu0 0
        %2468 = vmatpush1.bf16.msra.mxu0 %v2447
        %2469 = vmatprep.subr.bf16.mxu0 0
        %2470 = vmatpush1.bf16.msra.mxu0 %v2448
        %2471 = vmatprep.subr.bf16.mxu0 0
        %2472 = vmatpush1.bf16.msra.mxu0 %v2449
        %2473 = vmatprep.subr.bf16.mxu0 0
        %2474 = vmatpush1.bf16.msra.mxu0 %v2450
        %2475 = vmatprep.subr.bf16.mxu0 0
        %2476 = vmatpush1.bf16.msra.mxu0 0
        %2477 = vmatprep.subr.bf16.mxu0 0
        %2478 = vmatpush1.bf16.msra.mxu0 0
        %2479 = vmatprep.subr.bf16.mxu0 0
        %2480 = vmatpush1.bf16.msra.mxu0 0
        %2481 = vmatprep.subr.bf16.mxu0 0
        %2482 = vmatpush1.bf16.msra.mxu0 0
        %2483 = vmatprep.subr.bf16.mxu0 0
        %2484 = vmatpush1.bf16.msra.mxu0 0
        %2485 = vmatprep.subr.bf16.mxu0 0
        %2486 = vmatpush1.bf16.msra.mxu0 0
        %2487 = vmatprep.subr.bf16.mxu0 0
        %2488 = vmatpush1.bf16.msra.mxu0 0
        %2489 = vmatprep.subr.bf16.mxu0 0
        %2490 = vmatpush1.bf16.msra.mxu0 0
        %2491 = vmatprep.mubr.bf16.mxu0 0
        %2492 = vmatmul.mubr.bf16.gmra.mrb[0].mxu0 %v2391
        %v2493 = vpop.f32.mrb[0].mxu0
        %v2494 = vadd.f32 0.0, %v2493
        %v2495 = vpop.f32.mrb[0].mxu0
        %v2496 = vpop.f32.mrb[0].mxu0
        %v2497 = vadd.f32 0.0, %v2496
        %v2498 = vpop.f32.mrb[0].mxu0
        %2499 = vmatprep.mubr.bf16.mxu0 0
        %2500 = vmatmul.mubr.bf16.gmra.mrb[0].mxu0 %v2392
        %v2501 = vpop.f32.mrb[0].mxu0
        %v2502 = vadd.f32 0.0, %v2501
        %v2503 = vpop.f32.mrb[0].mxu0
        %v2504 = vpop.f32.mrb[0].mxu0
        %v2505 = vadd.f32 0.0, %v2504
        %v2506 = vpop.f32.mrb[0].mxu0
        %2507 = vmatprep.mubr.bf16.mxu0 0
        %2508 = vmatmul.mubr.bf16.gmra.mrb[0].mxu0 %v2393
        %v2509 = vpop.f32.mrb[0].mxu0
        %v2510 = vadd.f32 0.0, %v2509
        %v2511 = vpop.f32.mrb[0].mxu0
        %v2512 = vpop.f32.mrb[0].mxu0
        %v2513 = vadd.f32 0.0, %v2512
        %v2514 = vpop.f32.mrb[0].mxu0
        %2515 = vmatprep.mubr.bf16.mxu0 0
        %2516 = vmatmul.mubr.bf16.gmra.mrb[0].mxu0 %v2394
        %v2517 = vpop.f32.mrb[0].mxu0
        %v2518 = vadd.f32 0.0, %v2517
        %v2519 = vpop.f32.mrb[0].mxu0
        %v2520 = vpop.f32.mrb[0].mxu0
        %v2521 = vadd.f32 0.0, %v2520
        %v2522 = vpop.f32.mrb[0].mxu0
        %2523 = vdwg.mxu0
        %v2524 = vadd.f32 %v2214, %v2494
        %v2525 = vadd.f32 %v2215, %v2497
        %v2526 = vadd.f32 %v2216, %v2502
        %v2527 = vadd.f32 %v2217, %v2505
        %v2528 = vadd.f32 %v2218, %v2510
        %v2529 = vadd.f32 %v2219, %v2513
        %v2530 = vadd.f32 %v2220, %v2518
        %v2531 = vadd.f32 %v2221, %v2521
        %v2532 = vld [vmem:[%s12] sm:$0x1]
        %v2533 = vld [vmem:[%s13] sm:$0x1]
        %v2534 = vsel %vm612, %v2524, 0.0
        %2535 = vadd.xlane.f32.xlu0 %v2534
        %v2536 = vpop.xlane.xlu0 %2535
        %v2537 = vsel %vm612, %v2525, 0.0
        %2538 = vadd.xlane.f32.xlu0 %v2537
        %v2539 = vpop.xlane.xlu0 %2538
        %v2540 = vsel %vm612, %v2526, 0.0
        %2541 = vadd.xlane.f32.xlu0 %v2540
        %v2542 = vpop.xlane.xlu0 %2541
        %v2543 = vsel %vm612, %v2527, 0.0
        %2544 = vadd.xlane.f32.xlu0 %v2543
        %v2545 = vpop.xlane.xlu0 %2544
        %v2546 = vsel %vm612, %v2528, 0.0
        %2547 = vadd.xlane.f32.xlu0 %v2546
        %v2548 = vpop.xlane.xlu0 %2547
        %v2549 = vsel %vm612, %v2529, 0.0
        %2550 = vadd.xlane.f32.xlu0 %v2549
        %v2551 = vpop.xlane.xlu0 %2550
        %v2552 = vsel %vm612, %v2530, 0.0
        %2553 = vadd.xlane.f32.xlu0 %v2552
        %v2554 = vpop.xlane.xlu0 %2553
        %v2555 = vsel %vm612, %v2531, 0.0
        %2556 = vadd.xlane.f32.xlu0 %v2555
        %v2557 = vpop.xlane.xlu0 %2556
        %v2558 = vmul.f32 %v2536, %v637
        %v2559 = vmul.f32 %v2539, %v637
        %v2560 = vmul.f32 %v2542, %v637
        %v2561 = vmul.f32 %v2545, %v637
        %v2562 = vmul.f32 %v2548, %v637
        %v2563 = vmul.f32 %v2551, %v637
        %v2564 = vmul.f32 %v2554, %v637
        %v2565 = vmul.f32 %v2557, %v637
        %v2566 = vsub.f32 %v2524, %v2558
        %v2567 = vsub.f32 %v2525, %v2559
        %v2568 = vsub.f32 %v2526, %v2560
        %v2569 = vsub.f32 %v2527, %v2561
        %v2570 = vsub.f32 %v2528, %v2562
        %v2571 = vsub.f32 %v2529, %v2563
        %v2572 = vsub.f32 %v2530, %v2564
        %v2573 = vsub.f32 %v2531, %v2565
        %v2574 = vmul.f32 %v2566, %v2566
        %v2575 = vmul.f32 %v2567, %v2567
        %v2576 = vmul.f32 %v2568, %v2568
        %v2577 = vmul.f32 %v2569, %v2569
        %v2578 = vmul.f32 %v2570, %v2570
        %v2579 = vmul.f32 %v2571, %v2571
        %v2580 = vmul.f32 %v2572, %v2572
        %v2581 = vmul.f32 %v2573, %v2573
        %v2582 = vsel %vm612, %v2574, 0.0
        %2583 = vadd.xlane.f32.xlu0 %v2582
        %v2584 = vpop.xlane.xlu0 %2583
        %v2585 = vsel %vm612, %v2575, 0.0
        %2586 = vadd.xlane.f32.xlu0 %v2585
        %v2587 = vpop.xlane.xlu0 %2586
        %v2588 = vsel %vm612, %v2576, 0.0
        %2589 = vadd.xlane.f32.xlu0 %v2588
        %v2590 = vpop.xlane.xlu0 %2589
        %v2591 = vsel %vm612, %v2577, 0.0
        %2592 = vadd.xlane.f32.xlu0 %v2591
        %v2593 = vpop.xlane.xlu0 %2592
        %v2594 = vsel %vm612, %v2578, 0.0
        %2595 = vadd.xlane.f32.xlu0 %v2594
        %v2596 = vpop.xlane.xlu0 %2595
        %v2597 = vsel %vm612, %v2579, 0.0
        %2598 = vadd.xlane.f32.xlu0 %v2597
        %v2599 = vpop.xlane.xlu0 %2598
        %v2600 = vsel %vm612, %v2580, 0.0
        %2601 = vadd.xlane.f32.xlu0 %v2600
        %v2602 = vpop.xlane.xlu0 %2601
        %v2603 = vsel %vm612, %v2581, 0.0
        %2604 = vadd.xlane.f32.xlu0 %v2603
        %v2605 = vpop.xlane.xlu0 %2604
        %v2606 = vmul.f32 %v2584, %v637
        %v2607 = vmul.f32 %v2587, %v637
        %v2608 = vmul.f32 %v2590, %v637
        %v2609 = vmul.f32 %v2593, %v637
        %v2610 = vmul.f32 %v2596, %v637
        %v2611 = vmul.f32 %v2599, %v637
        %v2612 = vmul.f32 %v2602, %v637
        %v2613 = vmul.f32 %v2605, %v637
        %v2614 = vadd.f32 %v2606, 1e-12
        %v2615 = vadd.f32 %v2607, 1e-12
        %v2616 = vadd.f32 %v2608, 1e-12
        %v2617 = vadd.f32 %v2609, 1e-12
        %v2618 = vadd.f32 %v2610, 1e-12
        %v2619 = vadd.f32 %v2611, 1e-12
        %v2620 = vadd.f32 %v2612, 1e-12
        %v2621 = vadd.f32 %v2613, 1e-12
        %v2622 = vrsqrt.pop %v2614
        %v2623 = vrsqrt.pop %v2615
        %v2624 = vrsqrt.pop %v2616
        %v2625 = vrsqrt.pop %v2617
        %v2626 = vrsqrt.pop %v2618
        %v2627 = vrsqrt.pop %v2619
        %v2628 = vrsqrt.pop %v2620
        %v2629 = vrsqrt.pop %v2621
        %v2630 = vmul.f32 %v2566, %v2622
        %v2631 = vmul.f32 %v2567, %v2623
        %v2632 = vmul.f32 %v2568, %v2624
        %v2633 = vmul.f32 %v2569, %v2625
        %v2634 = vmul.f32 %v2570, %v2626
        %v2635 = vmul.f32 %v2571, %v2627
        %v2636 = vmul.f32 %v2572, %v2628
        %v2637 = vmul.f32 %v2573, %v2629
        %v2639 = vlaneseq
        %v2640 = vshrl.u32 %v2639, 7
        %v2641 = vsub.s32 0, %v2640
        %v2642 = vrot.slane %v2532, %v2641
        %v2644 = vmul.f32 %v2630, %v2642
        %v2645 = vmul.f32 %v2631, %v2642
        %v2646 = vmul.f32 %v2632, %v2642
        %v2647 = vmul.f32 %v2633, %v2642
        %v2648 = vmul.f32 %v2634, %v2642
        %v2649 = vmul.f32 %v2635, %v2642
        %v2650 = vmul.f32 %v2636, %v2642
        %v2651 = vmul.f32 %v2637, %v2642
        %v2653 = vlaneseq
        %v2654 = vshrl.u32 %v2653, 7
        %v2655 = vsub.s32 0, %v2654
        %v2656 = vrot.slane %v2533, %v2655
        %v2658 = vadd.f32 %v2644, %v2656
        %v2659 = vadd.f32 %v2645, %v2656
        %v2660 = vadd.f32 %v2646, %v2656
        %v2661 = vadd.f32 %v2647, %v2656
        %v2662 = vadd.f32 %v2648, %v2656
        %v2663 = vadd.f32 %v2649, %v2656
        %v2664 = vadd.f32 %v2650, %v2656
        %v2665 = vadd.f32 %v2651, %v2656
        %v2666 = vpack.c.bf16 %v2658, %v2658
        %v2667 = vpack.c.bf16 %v2659, %v2659
        %v2668 = vpack.c.bf16 %v2660, %v2660
        %v2669 = vpack.c.bf16 %v2661, %v2661
        %v2670 = vpack.c.bf16 %v2662, %v2662
        %v2671 = vpack.c.bf16 %v2663, %v2663
        %v2672 = vpack.c.bf16 %v2664, %v2664
        %v2673 = vpack.c.bf16 %v2665, %v2665
        %v2674 = vld [vmem:[%s14] sm:$0xf]
        %v2675 = vld [vmem:[%s14 + $0x4] sm:$0xf]
        %v2676 = vld [vmem:[%s14 + $0x8] sm:$0xf]
        %v2677 = vld [vmem:[%s14 + $0xc] sm:$0xf]
        %v2678 = vld [vmem:[%s15] sm:$0x1]
        %v2680 = vlaneseq
        %v2681 = vshrl.u32 %v2680, 7
        %v2682 = vsub.s32 0, %v2681
        %v2683 = vrot.slane %v2678, %v2682
        %v2693 = vunpack.c.l.b16 %v2666
        %v2694 = vunpack.c.l.b16 %v2667
        %v2695 = vunpack.c.l.b16 %v2668
        %v2696 = vunpack.c.l.b16 %v2669
        %v2697 = vunpack.c.l.b16 %v2670
        %v2698 = vunpack.c.l.b16 %v2671
        %v2699 = vunpack.c.l.b16 %v2672
        %v2700 = vunpack.c.l.b16 %v2673
        %v2701 = vrot.slane %v2694, 7
        %vm2702 = vcmask 1041409
        %v2703 = vsel %vm2702, %v2701, %v2693
        %v2704 = vrot.slane %v2695, 6
        %vm2705 = vcmask 1042434
        %v2706 = vsel %vm2705, %v2704, %v2703
        %v2707 = vrot.slane %v2696, 5
        %vm2708 = vcmask 1043459
        %v2709 = vsel %vm2708, %v2707, %v2706
        %v2710 = vrot.slane %v2697, 4
        %vm2711 = vcmask 1044484
        %v2712 = vsel %vm2711, %v2710, %v2709
        %v2713 = vrot.slane %v2698, 3
        %vm2714 = vcmask 1045509
        %v2715 = vsel %vm2714, %v2713, %v2712
        %v2716 = vrot.slane %v2699, 2
        %vm2717 = vcmask 1046534
        %v2718 = vsel %vm2717, %v2716, %v2715
        %v2719 = vrot.slane %v2700, 1
        %vm2720 = vcmask 1047559
        %v2721 = vsel %vm2720, %v2719, %v2718
        %v2722 = vpack.c.b16 %v2721, %v2721
        %v2727 = vunpack.c.l.b16 %v2674
        %v2728 = vunpack.c.l.b16 %v2675
        %v2729 = vunpack.c.l.b16 %v2676
        %v2730 = vunpack.c.l.b16 %v2677
        %v2731 = vpack.c.b16 %v2728, %v2727
        %v2732 = vpack.c.b16 %v2730, %v2729
        %v2736 = vsel %vm612, %v2722, 0
        %2738 = vmatprep.subr.bf16.mxu0 0
        %2739 = vmatpush1.bf16.msra.mxu0 %v2731
        %2740 = vmatprep.subr.bf16.mxu0 0
        %2741 = vmatpush1.bf16.msra.mxu0 %v2732
        %2742 = vmatprep.subr.bf16.mxu0 0
        %2743 = vmatpush1.bf16.msra.mxu0 0
        %2744 = vmatprep.subr.bf16.mxu0 0
        %2745 = vmatpush1.bf16.msra.mxu0 0
        %2746 = vmatprep.subr.bf16.mxu0 0
        %2747 = vmatpush1.bf16.msra.mxu0 0
        %2748 = vmatprep.subr.bf16.mxu0 0
        %2749 = vmatpush1.bf16.msra.mxu0 0
        %2750 = vmatprep.subr.bf16.mxu0 0
        %2751 = vmatpush1.bf16.msra.mxu0 0
        %2752 = vmatprep.subr.bf16.mxu0 0
        %2753 = vmatpush1.bf16.msra.mxu0 0
        %2754 = vmatprep.subr.bf16.mxu0 0
        %2755 = vmatpush1.bf16.msra.mxu0 0
        %2756 = vmatprep.subr.bf16.mxu0 0
        %2757 = vmatpush1.bf16.msra.mxu0 0
        %2758 = vmatprep.subr.bf16.mxu0 0
        %2759 = vmatpush1.bf16.msra.mxu0 0
        %2760 = vmatprep.subr.bf16.mxu0 0
        %2761 = vmatpush1.bf16.msra.mxu0 0
        %2762 = vmatprep.subr.bf16.mxu0 0
        %2763 = vmatpush1.bf16.msra.mxu0 0
        %2764 = vmatprep.subr.bf16.mxu0 0
        %2765 = vmatpush1.bf16.msra.mxu0 0
        %2766 = vmatprep.subr.bf16.mxu0 0
        %2767 = vmatpush1.bf16.msra.mxu0 0
        %2768 = vmatprep.subr.bf16.mxu0 0
        %2769 = vmatpush1.bf16.msra.mxu0 0
        %2770 = vmatprep.mubr.bf16.mxu0 0
        %2771 = vmatmul.mubr.bf16.gmra.mrb[0].mxu0 %v2736
        %v2772 = vpop.f32.mrb[0].mxu0
        %v2773 = vadd.f32 %v2683, %v2772
        %v2774 = vpop.f32.mrb[0].mxu0
        %v2775 = vpop.f32.mrb[0].mxu0
        %v2776 = vpop.f32.mrb[0].mxu0
        %2777 = vdwg.mxu0
        %2778 = vst [vmem:[%s573] sm:$0xff] %v2773
        %s2779 = sand.u32 %s386, 1
        %s2780 = scalar_lea.sflag [#allocation4], %s2779
        %s2781 = sand.u32 %s386, 1
        %s2782 = smul.addr %s2781, 8
        %s2783 = scalar_lea.vmem [#allocation8], %s2782
        // Predicated region
        $region97: #{tpu_custom_call.1} parent=83 // pred_check
          %p2784 = pneg %p396
        $region98: #{tpu_custom_call.1} parent=83 // pred_check_branch
          %2786 = sbr.rel (%p2784) target = $region100
        $region99: #{tpu_custom_call.1} parent=83 // pred_region
          %s2788 = ssub.s32 128, 128
          %2789 = vsyncadd %s2780, %s2788
          %s2790 = smul.addr %s32, 128
          %s2791 = scalar_lea.hbm %s16, %s2790
          %s2793 = sshll.u32 %s2783, 4
          %s2794 = int_to_ptr.vmem [resolvable:$true] %s2793
          %2796 = dma.vmem_to_hbm [thread:$0]  %s2794, 128, %s2791, %s2780
        $region100: #{tpu_custom_call.1} parent=83 // pred_fallthru
          _
      $region84: #{tpu_custom_call.1} parent=5 // pred_fallthru
        _
      %p2797 = scmp.le.s32.totalorder 2, %s27
      // Predicated region
      $region101: #{tpu_custom_call.1} parent=5 // pred_check
        %p2798 = pneg %p2797
      $region102: #{tpu_custom_call.1} parent=5 // pred_check_branch
        %2800 = sbr.rel (%p2798) target = $region104
      $region103: #{tpu_custom_call.1} parent=5 // pred_region
        %s2801 = ssub.s32 %s27, 2
        // Predicated region
        $region105: #{tpu_custom_call.1} parent=103 // pred_check
          %p2802 = pneg %p402
        $region106: #{tpu_custom_call.1} parent=103 // pred_check_branch
          %2804 = sbr.rel (%p2802) target = $region108
        $region107: #{tpu_custom_call.1} parent=103 // pred_region
          %s2805 = sand.u32 %s387, 1
          %s2806 = scalar_lea.sflag [#allocation4], %s2805
          %s2807 = sand.u32 %s387, 1
          %s2808 = smul.addr %s2807, 8
          %s2809 = scalar_lea.vmem [#allocation8], %s2808
          %2810 = dma.done %s2806, 128
        $region108: #{tpu_custom_call.1} parent=103 // pred_fallthru
          _
      $region104: #{tpu_custom_call.1} parent=5 // pred_fallthru
        _
    $region6: #{tpu_custom_call.1} parent=1 // loop_footer
      %s31 = sadd.s32 1, %s27
    $region7: #{tpu_custom_call.1} parent=1 // loop_footer_branch
      %26 = sbr.rel target = $region3
    $region8: #{tpu_custom_call.1} parent=1 // loop_exit
      _
    %2811 = vsyncpa [#allocation3], 1
    %s2812 = scalar_lea.sflag [#allocation3], 1
    %2813 = vsyncpa %s2812, 1
    %2814 = vsyncpa [#allocation6], 1
    %2815 = vsyncpa [#allocation4], 1
    %s2816 = scalar_lea.sflag [#allocation4], 1
    %2817 = vsyncpa %s2816, 1

</llo_original>
